<compile_context>
chip_gen: v5e
topology: v5e:2x2
jax: 0.10.0
libtpu: 0.0.40
codegen_flags: <defaults>
</compile_context>

<pallas_src>
import functools

import jax
import jax.numpy as jnp
from jax.experimental import pallas as pl
from jax.experimental.pallas import tpu as pltpu


# ----------------------------------------------------------------------------
# Model dimensions
# ----------------------------------------------------------------------------
SEQ = 50                      # Conv1d(in_channels=50) => token sequence length
EMB = 32                      # Embedding(1000, 32)    => conv "length" axis
C1 = 256                      # conv1 out channels
C2 = 50                       # conv2 out channels
L0 = EMB + 2                  # 34  conv1 input length (padding=1)
L1 = L0 - 5 + 1               # 30  conv1 output length
L2 = (L1 + 2 - 3) // 3 + 1    # 10  maxpool(k=3, s=3, p=1) output length
L3 = L2 + 2 - 5 + 1           # 8   conv2 output length
FLAT = C2 * L3                # 400 (see TODO above re: declared 350)
NCLS = 10
K1 = 5 * SEQ + 1              # 251 im2col features + constant-1 bias column
K1PAD = 256                   # padded K for the conv1 matmul


def _round_up(x, m):
    return -(-x // m) * m


# ----------------------------------------------------------------------------
# Fused Pallas kernel
# ----------------------------------------------------------------------------
def _fused_kernel(x_ref, w1_ref, wf_ref, b3_ref, w4_ref, b4_ref,
                  o_ref, h1_ref, pooled_ref, *, tb):
    """conv1(+bias)+ReLU -> maxpool -> (conv2·Flatten·BN·fc1 folded) -> ReLU
       -> fc2 -> softmax, all resident in VMEM.

    Row layout is position-major, batch-minor:
      x_ref      : (L1*tb, 256) bf16  row = l*tb + b  (im2col + bias column)
      h1_ref     : (L1*tb, 256) bf16  row = l*tb + b  (post bias+ReLU)
      pooled_ref : (tb, L2*256) bf16  lanes [j*256, (j+1)*256) = pool window j
    """
    # ---- Conv1d(50->256, k=5, p=1) + bias + ReLU: ONE K=256 bf16 matmul ----
    h1_ref[...] = jnp.maximum(
        jnp.dot(x_ref[...], w1_ref[...], preferred_element_type=jnp.float32),
        0.0).astype(jnp.bfloat16)

    # ---- MaxPool1d(3,3,pad=1): window j pools conv1 positions {3j-1,3j,3j+1}
    # Position -1 is the pool's -inf padding -> simply dropped (2-way max).
    # (0 would also be a valid identity here since h1 is post-ReLU, >= 0.)
    for j in range(L2):
        lo = 3 * j - 1
        if lo < 0:
            mx = jnp.maximum(h1_ref[0:tb, :], h1_ref[tb:2 * tb, :])
        else:
            mx = jnp.maximum(
                jnp.maximum(h1_ref[lo * tb:(lo + 1) * tb, :],
                            h1_ref[(lo + 1) * tb:(lo + 2) * tb, :]),
                h1_ref[(lo + 2) * tb:(lo + 3) * tb, :])
        pooled_ref[:, j * C1:(j + 1) * C1] = mx

    # ---- Folded conv2·Flatten·BN·fc1: ONE K=2560 bf16 matmul + bias + ReLU --
    h3 = jnp.maximum(
        jnp.dot(pooled_ref[...], wf_ref[...],
                preferred_element_type=jnp.float32) + b3_ref[...], 0.0)

    # ---- Linear(256, 10) + Softmax -----------------------------------------
    logits = jnp.dot(h3.astype(jnp.bfloat16), w4_ref[...],
                     preferred_element_type=jnp.float32) + b4_ref[...]
    logits = logits - jnp.max(logits, axis=-1, keepdims=True)
    e = jnp.exp(logits)
    inv = pl.reciprocal(jnp.sum(e, axis=-1, keepdims=True), approx=True)
    o_ref[...] = (e * inv).astype(o_ref.dtype)


def cnn_forward(fp, tokens, block_b=None):
    """Forward pass. tokens: (B, 50) int32 ids in [0, 1000)."""
    B = tokens.shape[0]
    if block_b is None:
        # MXU-friendly batch tile; B > 128 gives nb >= 2 grid steps (v7x 2 TCs).
        block_b = min(128, _round_up(B, 16))
    nb = -(-B // block_b)
    Bp = nb * block_b
    if Bp != B:
        tokens = jnp.pad(tokens, ((0, Bp - B), (0, 0)))

    # Embedding gather + conv1 im2col (XLA glue) in position-major/batch-minor
    # layout, grouped by batch tile so each grid step reads a contiguous block.
    x = jnp.take(fp["emb_t"], tokens, axis=1)                  # (32, Bp, 50)
    xp = jnp.pad(x, ((1, 1), (0, 0), (0, 0)))                  # (34, Bp, 50)
    im = jnp.concatenate(
        [xp[k:k + L1] for k in range(5)]                       # 5 conv shifts
        + [jnp.ones((L1, Bp, 1), xp.dtype)], axis=-1)          # bias column
    im = jnp.pad(im, ((0, 0), (0, 0), (0, K1PAD - K1)))        # (30, Bp, 256)
    im = im.astype(jnp.bfloat16)
    im = im.reshape(L1, nb, block_b, K1PAD).transpose(1, 0, 2, 3)
    im = im.reshape(nb * L1 * block_b, K1PAD)                  # rows: tile, l, b

    kern = functools.partial(_fused_kernel, tb=block_b)
    out = pl.pallas_call(
        kern,
        out_shape=jax.ShapeDtypeStruct((Bp, NCLS), jnp.float32),
        grid=(nb,),
        in_specs=[
            pl.BlockSpec((L1 * block_b, K1PAD), lambda i: (i, 0)),  # im2col x
            pl.BlockSpec((K1PAD, C1), lambda i: (0, 0)),            # conv1 w (+b row)
            pl.BlockSpec((L2 * C1, C1), lambda i: (0, 0)),          # folded w
            pl.BlockSpec((1, C1), lambda i: (0, 0)),                # folded b
            pl.BlockSpec((C1, NCLS), lambda i: (0, 0)),             # fc2 w
            pl.BlockSpec((1, NCLS), lambda i: (0, 0)),              # fc2 b
        ],
        out_specs=pl.BlockSpec((block_b, NCLS), lambda i: (i, 0)),
        scratch_shapes=[
            pltpu.VMEM((L1 * block_b, C1), jnp.bfloat16),   # h1 (post bias+ReLU)
            pltpu.VMEM((block_b, L2 * C1), jnp.bfloat16),   # lane-concat pooled windows
        ],
        compiler_params=pltpu.CompilerParams(
            dimension_semantics=("parallel",),
            vmem_limit_bytes=32 * 1024 * 1024),
    )(im, fp["w1p"], fp["wfold"], fp["b3f"], fp["w4"], fp["b4"])
    return out[:B]


# ----------------------------------------------------------------------------
# Parameters (deterministic synthetic init; shapes follow the nn.Module)
# ----------------------------------------------------------------------------
def init_params(key):
    ks = jax.random.split(key, 13)
    p = {}
    p["emb"] = 0.1 * jax.random.normal(ks[0], (1000, EMB), jnp.float32)
    p["w1"] = 0.05 * jax.random.normal(ks[1], (C1, SEQ, 5), jnp.float32)
    p["b1"] = 0.01 * jax.random.normal(ks[2], (C1,), jnp.float32)
    p["w2"] = 0.05 * jax.random.normal(ks[3], (C2, C1, 5), jnp.float32)
    p["b2"] = 0.01 * jax.random.normal(ks[4], (C2,), jnp.float32)
    p["bn_gamma"] = 1.0 + 0.1 * jax.random.normal(ks[5], (FLAT,), jnp.float32)
    p["bn_beta"] = 0.1 * jax.random.normal(ks[6], (FLAT,), jnp.float32)
    p["bn_mean"] = 0.1 * jax.random.normal(ks[7], (FLAT,), jnp.float32)
    p["bn_var"] = 1.0 + 0.1 * jnp.abs(jax.random.normal(ks[8], (FLAT,), jnp.float32))
    p["w3"] = 0.05 * jax.random.normal(ks[9], (FLAT, C1), jnp.float32)
    p["b3"] = 0.01 * jax.random.normal(ks[10], (C1,), jnp.float32)
    p["w4"] = 0.05 * jax.random.normal(ks[11], (C1, NCLS), jnp.float32)
    p["b4"] = 0.01 * jax.random.normal(ks[12], (NCLS,), jnp.float32)
    return p


def fold_params(p):
    """One-time prep: fold conv1 bias, BN(eval), Flatten order, conv2 and
    remaining biases into kernel-ready (mostly bf16) weights."""
    fp = {}
    fp["emb_t"] = p["emb"].T                                        # (32, 1000)

    # conv1 weight for the im2col layout (feature index = k*50 + ci);
    # row 250 carries the bias (matching im2col column is constant 1.0).
    w1m = p["w1"].transpose(2, 1, 0).reshape(5 * SEQ, C1)           # (250, 256)
    w1p = jnp.zeros((K1PAD, C1), jnp.float32)
    w1p = w1p.at[:5 * SEQ].set(w1m)
    w1p = w1p.at[5 * SEQ].set(p["b1"])
    fp["w1p"] = w1p.astype(jnp.bfloat16)                            # (256, 256)

    eps = 1e-5
    scale = p["bn_gamma"] / jnp.sqrt(p["bn_var"] + eps)             # (400,)
    shift = p["bn_beta"] - p["bn_mean"] * scale                     # (400,)
    w3s = (scale[:, None] * p["w3"]).reshape(C2, L3, C1)            # (50, 8, 256)

    # Wfold[q, ci, n] = sum_{c, m+k = q+1} w2[c, ci, k] * w3s[c, m, n]
    # (conv2 padding=1: q < 0 or q >= L2 hits the zero pad and is dropped)
    t = jnp.einsum("cik,cmn->kmin", p["w2"], w3s)                   # (5, 8, 256, 256)
    wfold = jnp.zeros((L2, C1, C1), jnp.float32)
    for k in range(5):
        for m in range(L3):
            q = m + k - 1
            if 0 <= q < L2:
                wfold = wfold.at[q].add(t[k, m])
    # (2560, 256): row index = q*256 + ci, matching the lane-concat pooled layout
    fp["wfold"] = wfold.reshape(L2 * C1, C1).astype(jnp.bfloat16)

    b3f = p["b3"] + shift @ p["w3"] + p["b2"] @ w3s.sum(axis=1)     # (256,)
    fp["b3f"] = b3f.reshape(1, C1)

    fp["w4"] = p["w4"].astype(jnp.bfloat16)                         # (256, 10)
    fp["b4"] = p["b4"].reshape(1, NCLS)
    return fp


# ----------------------------------------------------------------------------
# Plain-JAX f32 reference of the original (unfolded) module, eval mode
# ----------------------------------------------------------------------------
def reference_forward(p, tokens):
    B = tokens.shape[0]
    x = jnp.take(p["emb"], tokens, axis=0)                          # (B, 50, 32)
    xp = jnp.pad(x, ((0, 0), (0, 0), (1, 1)))                       # (B, 50, 34)
    pat1 = jnp.stack([xp[:, :, k:k + L1] for k in range(5)], axis=-1)
    h1 = jnp.einsum("bclk,ock->bol", pat1, p["w1"]) + p["b1"][None, :, None]
    h1 = jnp.maximum(h1, 0.0)                                       # (B, 256, 30)
    h1p = jnp.pad(h1, ((0, 0), (0, 0), (1, 1)))                     # zero pad ok: h1 >= 0
    pooled = jnp.max(h1p[:, :, :3 * L2].reshape(B, C1, L2, 3), axis=-1)
    pp = jnp.pad(pooled, ((0, 0), (0, 0), (1, 1)))                  # (B, 256, 12)
    pat2 = jnp.stack([pp[:, :, k:k + L3] for k in range(5)], axis=-1)
    h2 = jnp.einsum("bcmk,ock->bom", pat2, p["w2"]) + p["b2"][None, :, None]
    flat = h2.reshape(B, FLAT)
    scale = p["bn_gamma"] / jnp.sqrt(p["bn_var"] + 1e-5)
    bn = (flat - p["bn_mean"]) * scale + p["bn_beta"]
    h3 = jnp.maximum(bn @ p["w3"] + p["b3"], 0.0)
    logits = h3 @ p["w4"] + p["b4"]
    return jax.nn.softmax(logits, axis=-1)


if __name__ == "__main__":
    key = jax.random.PRNGKey(0)
    pkey, xkey = jax.random.split(key)
    params = init_params(pkey)
    folded = fold_params(params)

    # Input: (batch=2, seq_len=50) integer token ids in [0, 1000)
    tokens = jax.random.randint(xkey, (2, SEQ), 0, 1000, dtype=jnp.int32)

    out = jax.jit(cnn_forward)(folded, tokens)
    out = jax.block_until_ready(out)

    assert out.shape == (2, NCLS), out.shape
    assert bool(jnp.all(jnp.isfinite(out)))
    assert bool(jnp.allclose(jnp.sum(out, axis=-1), 1.0, atol=1e-2))

    # Loose check against the unfolded f32 reference (bf16 matmuls inside).
    ref = reference_forward(params, tokens)
    assert bool(jnp.allclose(out, ref, atol=2e-2)), float(jnp.max(jnp.abs(out - ref)))

    print("KERNEL_OK")
</pallas_src>

<mosaic_0001>
module attributes {stable_mosaic.version = 11 : i64} {
  func.func @_fused_kernel(%arg0: i32, %arg1: memref<480x256xbf16, #tpu.memory_space<vmem>>, %arg2: memref<256x256xbf16, #tpu.memory_space<vmem>>, %arg3: memref<2560x256xbf16, #tpu.memory_space<vmem>>, %arg4: memref<1x256xf32, #tpu.memory_space<vmem>>, %arg5: memref<256x10xbf16, #tpu.memory_space<vmem>>, %arg6: memref<1x10xf32, #tpu.memory_space<vmem>>, %arg7: memref<16x10xf32, #tpu.memory_space<vmem>>, %arg8: memref<480x256xbf16, #tpu.memory_space<vmem>>, %arg9: memref<16x2560xbf16, #tpu.memory_space<vmem>>) attributes {dimension_semantics = [#tpu.dimension_semantics<parallel>], iteration_bounds = array<i64: 1>, scalar_prefetch = 0 : i64, scratch_operands = 2 : i64, tpu.core_type = #tpu.core_type<tc>, window_params = [{transform_indices = @transform_0, window_bounds = array<i64: 480, 256>}, {pipeline_mode = #tpu.pipeline_mode<synchronous>, transform_indices = @transform_1, window_bounds = array<i64: 256, 256>}, {pipeline_mode = #tpu.pipeline_mode<synchronous>, transform_indices = @transform_2, window_bounds = array<i64: 2560, 256>}, {pipeline_mode = #tpu.pipeline_mode<synchronous>, transform_indices = @transform_3, window_bounds = array<i64: 1, 256>}, {pipeline_mode = #tpu.pipeline_mode<synchronous>, transform_indices = @transform_4, window_bounds = array<i64: 256, 10>}, {pipeline_mode = #tpu.pipeline_mode<synchronous>, transform_indices = @transform_5, window_bounds = array<i64: 1, 10>}, {transform_indices = @transform_6, window_bounds = array<i64: 16, 10>}]} {
    %c0 = arith.constant 0 : index
    %c0_0 = arith.constant 0 : index
    %0 = vector.load %arg1[%c0, %c0_0] : memref<480x256xbf16, #tpu.memory_space<vmem>>, vector<480x256xbf16>
    %c0_1 = arith.constant 0 : index
    %c0_2 = arith.constant 0 : index
    %1 = vector.load %arg2[%c0_1, %c0_2] : memref<256x256xbf16, #tpu.memory_space<vmem>>, vector<256x256xbf16>
    %cst = arith.constant dense<0.000000e+00> : vector<480x256xf32>
    %2 = tpu.matmul %0, %1, %cst {dimension_numbers = #tpu.dot_dimension_numbers<[1], [0], [0], [1], [0, 0, 1, 1], [], []>} : vector<480x256xbf16>, vector<256x256xbf16>, vector<480x256xf32> -> vector<480x256xf32>
    %cst_3 = arith.constant 0.000000e+00 : f32
    %3 = vector.broadcast %cst_3 : f32 to vector<480x256xf32>
    %4 = arith.maximumf %2, %3 : vector<480x256xf32>
    %5 = arith.truncf %4 : vector<480x256xf32> to vector<480x256xbf16>
    %c0_4 = arith.constant 0 : index
    %c0_5 = arith.constant 0 : index
    %6 = vector.load %arg8[%c0_4, %c0_5] : memref<480x256xbf16, #tpu.memory_space<vmem>>, vector<480x256xbf16>
    tpu.vector_store %arg8[%c0_4, %c0_5], %5 {strides = array<i32>} : memref<480x256xbf16, #tpu.memory_space<vmem>>, vector<480x256xbf16>,
    %c0_6 = arith.constant 0 : index
    %c0_7 = arith.constant 0 : index
    %7 = vector.load %arg8[%c0_6, %c0_7] : memref<480x256xbf16, #tpu.memory_space<vmem>>, vector<16x256xbf16>
    %c16 = arith.constant 16 : index
    %c0_8 = arith.constant 0 : index
    %8 = vector.load %arg8[%c16, %c0_8] : memref<480x256xbf16, #tpu.memory_space<vmem>>, vector<16x256xbf16>
    %9 = arith.maximumf %7, %8 : vector<16x256xbf16>
    %c0_9 = arith.constant 0 : index
    %c0_10 = arith.constant 0 : index
    %10 = vector.load %arg9[%c0_9, %c0_10] : memref<16x2560xbf16, #tpu.memory_space<vmem>>, vector<16x256xbf16>
    tpu.vector_store %arg9[%c0_9, %c0_10], %9 {strides = array<i32>} : memref<16x2560xbf16, #tpu.memory_space<vmem>>, vector<16x256xbf16>,
    %c32 = arith.constant 32 : index
    %c0_11 = arith.constant 0 : index
    %11 = vector.load %arg8[%c32, %c0_11] : memref<480x256xbf16, #tpu.memory_space<vmem>>, vector<16x256xbf16>
    %c48 = arith.constant 48 : index
    %c0_12 = arith.constant 0 : index
    %12 = vector.load %arg8[%c48, %c0_12] : memref<480x256xbf16, #tpu.memory_space<vmem>>, vector<16x256xbf16>
    %13 = arith.maximumf %11, %12 : vector<16x256xbf16>
    %c64 = arith.constant 64 : index
    %c0_13 = arith.constant 0 : index
    %14 = vector.load %arg8[%c64, %c0_13] : memref<480x256xbf16, #tpu.memory_space<vmem>>, vector<16x256xbf16>
    %15 = arith.maximumf %13, %14 : vector<16x256xbf16>
    %c0_14 = arith.constant 0 : index
    %c256 = arith.constant 256 : index
    %16 = vector.load %arg9[%c0_14, %c256] : memref<16x2560xbf16, #tpu.memory_space<vmem>>, vector<16x256xbf16>
    tpu.vector_store %arg9[%c0_14, %c256], %15 {strides = array<i32>} : memref<16x2560xbf16, #tpu.memory_space<vmem>>, vector<16x256xbf16>,
    %c80 = arith.constant 80 : index
    %c0_15 = arith.constant 0 : index
    %17 = vector.load %arg8[%c80, %c0_15] : memref<480x256xbf16, #tpu.memory_space<vmem>>, vector<16x256xbf16>
    %c96 = arith.constant 96 : index
    %c0_16 = arith.constant 0 : index
    %18 = vector.load %arg8[%c96, %c0_16] : memref<480x256xbf16, #tpu.memory_space<vmem>>, vector<16x256xbf16>
    %19 = arith.maximumf %17, %18 : vector<16x256xbf16>
    %c112 = arith.constant 112 : index
    %c0_17 = arith.constant 0 : index
    %20 = vector.load %arg8[%c112, %c0_17] : memref<480x256xbf16, #tpu.memory_space<vmem>>, vector<16x256xbf16>
    %21 = arith.maximumf %19, %20 : vector<16x256xbf16>
    %c0_18 = arith.constant 0 : index
    %c512 = arith.constant 512 : index
    %22 = vector.load %arg9[%c0_18, %c512] : memref<16x2560xbf16, #tpu.memory_space<vmem>>, vector<16x256xbf16>
    tpu.vector_store %arg9[%c0_18, %c512], %21 {strides = array<i32>} : memref<16x2560xbf16, #tpu.memory_space<vmem>>, vector<16x256xbf16>,
    %c128 = arith.constant 128 : index
    %c0_19 = arith.constant 0 : index
    %23 = vector.load %arg8[%c128, %c0_19] : memref<480x256xbf16, #tpu.memory_space<vmem>>, vector<16x256xbf16>
    %c144 = arith.constant 144 : index
    %c0_20 = arith.constant 0 : index
    %24 = vector.load %arg8[%c144, %c0_20] : memref<480x256xbf16, #tpu.memory_space<vmem>>, vector<16x256xbf16>
    %25 = arith.maximumf %23, %24 : vector<16x256xbf16>
    %c160 = arith.constant 160 : index
    %c0_21 = arith.constant 0 : index
    %26 = vector.load %arg8[%c160, %c0_21] : memref<480x256xbf16, #tpu.memory_space<vmem>>, vector<16x256xbf16>
    %27 = arith.maximumf %25, %26 : vector<16x256xbf16>
    %c0_22 = arith.constant 0 : index
    %c768 = arith.constant 768 : index
    %28 = vector.load %arg9[%c0_22, %c768] : memref<16x2560xbf16, #tpu.memory_space<vmem>>, vector<16x256xbf16>
    tpu.vector_store %arg9[%c0_22, %c768], %27 {strides = array<i32>} : memref<16x2560xbf16, #tpu.memory_space<vmem>>, vector<16x256xbf16>,
    %c176 = arith.constant 176 : index
    %c0_23 = arith.constant 0 : index
    %29 = vector.load %arg8[%c176, %c0_23] : memref<480x256xbf16, #tpu.memory_space<vmem>>, vector<16x256xbf16>
    %c192 = arith.constant 192 : index
    %c0_24 = arith.constant 0 : index
    %30 = vector.load %arg8[%c192, %c0_24] : memref<480x256xbf16, #tpu.memory_space<vmem>>, vector<16x256xbf16>
    %31 = arith.maximumf %29, %30 : vector<16x256xbf16>
    %c208 = arith.constant 208 : index
    %c0_25 = arith.constant 0 : index
    %32 = vector.load %arg8[%c208, %c0_25] : memref<480x256xbf16, #tpu.memory_space<vmem>>, vector<16x256xbf16>
    %33 = arith.maximumf %31, %32 : vector<16x256xbf16>
    %c0_26 = arith.constant 0 : index
    %c1024 = arith.constant 1024 : index
    %34 = vector.load %arg9[%c0_26, %c1024] : memref<16x2560xbf16, #tpu.memory_space<vmem>>, vector<16x256xbf16>
    tpu.vector_store %arg9[%c0_26, %c1024], %33 {strides = array<i32>} : memref<16x2560xbf16, #tpu.memory_space<vmem>>, vector<16x256xbf16>,
    %c224 = arith.constant 224 : index
    %c0_27 = arith.constant 0 : index
    %35 = vector.load %arg8[%c224, %c0_27] : memref<480x256xbf16, #tpu.memory_space<vmem>>, vector<16x256xbf16>
    %c240 = arith.constant 240 : index
    %c0_28 = arith.constant 0 : index
    %36 = vector.load %arg8[%c240, %c0_28] : memref<480x256xbf16, #tpu.memory_space<vmem>>, vector<16x256xbf16>
    %37 = arith.maximumf %35, %36 : vector<16x256xbf16>
    %c256_29 = arith.constant 256 : index
    %c0_30 = arith.constant 0 : index
    %38 = vector.load %arg8[%c256_29, %c0_30] : memref<480x256xbf16, #tpu.memory_space<vmem>>, vector<16x256xbf16>
    %39 = arith.maximumf %37, %38 : vector<16x256xbf16>
    %c0_31 = arith.constant 0 : index
    %c1280 = arith.constant 1280 : index
    %40 = vector.load %arg9[%c0_31, %c1280] : memref<16x2560xbf16, #tpu.memory_space<vmem>>, vector<16x256xbf16>
    tpu.vector_store %arg9[%c0_31, %c1280], %39 {strides = array<i32>} : memref<16x2560xbf16, #tpu.memory_space<vmem>>, vector<16x256xbf16>,
    %c272 = arith.constant 272 : index
    %c0_32 = arith.constant 0 : index
    %41 = vector.load %arg8[%c272, %c0_32] : memref<480x256xbf16, #tpu.memory_space<vmem>>, vector<16x256xbf16>
    %c288 = arith.constant 288 : index
    %c0_33 = arith.constant 0 : index
    %42 = vector.load %arg8[%c288, %c0_33] : memref<480x256xbf16, #tpu.memory_space<vmem>>, vector<16x256xbf16>
    %43 = arith.maximumf %41, %42 : vector<16x256xbf16>
    %c304 = arith.constant 304 : index
    %c0_34 = arith.constant 0 : index
    %44 = vector.load %arg8[%c304, %c0_34] : memref<480x256xbf16, #tpu.memory_space<vmem>>, vector<16x256xbf16>
    %45 = arith.maximumf %43, %44 : vector<16x256xbf16>
    %c0_35 = arith.constant 0 : index
    %c1536 = arith.constant 1536 : index
    %46 = vector.load %arg9[%c0_35, %c1536] : memref<16x2560xbf16, #tpu.memory_space<vmem>>, vector<16x256xbf16>
    tpu.vector_store %arg9[%c0_35, %c1536], %45 {strides = array<i32>} : memref<16x2560xbf16, #tpu.memory_space<vmem>>, vector<16x256xbf16>,
    %c320 = arith.constant 320 : index
    %c0_36 = arith.constant 0 : index
    %47 = vector.load %arg8[%c320, %c0_36] : memref<480x256xbf16, #tpu.memory_space<vmem>>, vector<16x256xbf16>
    %c336 = arith.constant 336 : index
    %c0_37 = arith.constant 0 : index
    %48 = vector.load %arg8[%c336, %c0_37] : memref<480x256xbf16, #tpu.memory_space<vmem>>, vector<16x256xbf16>
    %49 = arith.maximumf %47, %48 : vector<16x256xbf16>
    %c352 = arith.constant 352 : index
    %c0_38 = arith.constant 0 : index
    %50 = vector.load %arg8[%c352, %c0_38] : memref<480x256xbf16, #tpu.memory_space<vmem>>, vector<16x256xbf16>
    %51 = arith.maximumf %49, %50 : vector<16x256xbf16>
    %c0_39 = arith.constant 0 : index
    %c1792 = arith.constant 1792 : index
    %52 = vector.load %arg9[%c0_39, %c1792] : memref<16x2560xbf16, #tpu.memory_space<vmem>>, vector<16x256xbf16>
    tpu.vector_store %arg9[%c0_39, %c1792], %51 {strides = array<i32>} : memref<16x2560xbf16, #tpu.memory_space<vmem>>, vector<16x256xbf16>,
    %c368 = arith.constant 368 : index
    %c0_40 = arith.constant 0 : index
    %53 = vector.load %arg8[%c368, %c0_40] : memref<480x256xbf16, #tpu.memory_space<vmem>>, vector<16x256xbf16>
    %c384 = arith.constant 384 : index
    %c0_41 = arith.constant 0 : index
    %54 = vector.load %arg8[%c384, %c0_41] : memref<480x256xbf16, #tpu.memory_space<vmem>>, vector<16x256xbf16>
    %55 = arith.maximumf %53, %54 : vector<16x256xbf16>
    %c400 = arith.constant 400 : index
    %c0_42 = arith.constant 0 : index
    %56 = vector.load %arg8[%c400, %c0_42] : memref<480x256xbf16, #tpu.memory_space<vmem>>, vector<16x256xbf16>
    %57 = arith.maximumf %55, %56 : vector<16x256xbf16>
    %c0_43 = arith.constant 0 : index
    %c2048 = arith.constant 2048 : index
    %58 = vector.load %arg9[%c0_43, %c2048] : memref<16x2560xbf16, #tpu.memory_space<vmem>>, vector<16x256xbf16>
    tpu.vector_store %arg9[%c0_43, %c2048], %57 {strides = array<i32>} : memref<16x2560xbf16, #tpu.memory_space<vmem>>, vector<16x256xbf16>,
    %c416 = arith.constant 416 : index
    %c0_44 = arith.constant 0 : index
    %59 = vector.load %arg8[%c416, %c0_44] : memref<480x256xbf16, #tpu.memory_space<vmem>>, vector<16x256xbf16>
    %c432 = arith.constant 432 : index
    %c0_45 = arith.constant 0 : index
    %60 = vector.load %arg8[%c432, %c0_45] : memref<480x256xbf16, #tpu.memory_space<vmem>>, vector<16x256xbf16>
    %61 = arith.maximumf %59, %60 : vector<16x256xbf16>
    %c448 = arith.constant 448 : index
    %c0_46 = arith.constant 0 : index
    %62 = vector.load %arg8[%c448, %c0_46] : memref<480x256xbf16, #tpu.memory_space<vmem>>, vector<16x256xbf16>
    %63 = arith.maximumf %61, %62 : vector<16x256xbf16>
    %c0_47 = arith.constant 0 : index
    %c2304 = arith.constant 2304 : index
    %64 = vector.load %arg9[%c0_47, %c2304] : memref<16x2560xbf16, #tpu.memory_space<vmem>>, vector<16x256xbf16>
    tpu.vector_store %arg9[%c0_47, %c2304], %63 {strides = array<i32>} : memref<16x2560xbf16, #tpu.memory_space<vmem>>, vector<16x256xbf16>,
    %c0_48 = arith.constant 0 : index
    %c0_49 = arith.constant 0 : index
    %65 = vector.load %arg9[%c0_48, %c0_49] : memref<16x2560xbf16, #tpu.memory_space<vmem>>, vector<16x2560xbf16>
    %c0_50 = arith.constant 0 : index
    %c0_51 = arith.constant 0 : index
    %66 = vector.load %arg3[%c0_50, %c0_51] : memref<2560x256xbf16, #tpu.memory_space<vmem>>, vector<2560x256xbf16>
    %cst_52 = arith.constant dense<0.000000e+00> : vector<16x256xf32>
    %67 = tpu.matmul %65, %66, %cst_52 {dimension_numbers = #tpu.dot_dimension_numbers<[1], [0], [0], [1], [0, 0, 1, 1], [], []>} : vector<16x2560xbf16>, vector<2560x256xbf16>, vector<16x256xf32> -> vector<16x256xf32>
    %c0_53 = arith.constant 0 : index
    %c0_54 = arith.constant 0 : index
    %68 = vector.load %arg4[%c0_53, %c0_54] : memref<1x256xf32, #tpu.memory_space<vmem>>, vector<1x256xf32>
    %69 = vector.broadcast %68 : vector<1x256xf32> to vector<16x256xf32>
    %70 = arith.addf %67, %69 : vector<16x256xf32>
    %cst_55 = arith.constant 0.000000e+00 : f32
    %71 = vector.broadcast %cst_55 : f32 to vector<16x256xf32>
    %72 = arith.maximumf %70, %71 : vector<16x256xf32>
    %73 = arith.truncf %72 : vector<16x256xf32> to vector<16x256xbf16>
    %c0_56 = arith.constant 0 : index
    %c0_57 = arith.constant 0 : index
    %74 = vector.load %arg5[%c0_56, %c0_57] : memref<256x10xbf16, #tpu.memory_space<vmem>>, vector<256x10xbf16>
    %cst_58 = arith.constant dense<0.000000e+00> : vector<16x10xf32>
    %75 = tpu.matmul %73, %74, %cst_58 {dimension_numbers = #tpu.dot_dimension_numbers<[1], [0], [0], [1], [0, 0, 1, 1], [], []>} : vector<16x256xbf16>, vector<256x10xbf16>, vector<16x10xf32> -> vector<16x10xf32>
    %c0_59 = arith.constant 0 : index
    %c0_60 = arith.constant 0 : index
    %76 = vector.load %arg6[%c0_59, %c0_60] : memref<1x10xf32, #tpu.memory_space<vmem>>, vector<1x10xf32>
    %77 = vector.broadcast %76 : vector<1x10xf32> to vector<16x10xf32>
    %78 = arith.addf %75, %77 : vector<16x10xf32>
    %cst_61 = arith.constant dense<0xFF800000> : vector<16xf32>
    %79 = vector.multi_reduction <maximumf>, %78, %cst_61 [1] : vector<16x10xf32> to vector<16xf32>
    %80 = vector.shape_cast %79 : vector<16xf32> to vector<16x1xf32>
    %81 = vector.broadcast %80 : vector<16x1xf32> to vector<16x10xf32>
    %82 = arith.subf %78, %81 : vector<16x10xf32>
    %83 = math.exp %82 : vector<16x10xf32>
    %cst_62 = arith.constant dense<0.000000e+00> : vector<16xf32>
    %84 = vector.multi_reduction <add>, %83, %cst_62 [1] : vector<16x10xf32> to vector<16xf32>
    %85 = vector.shape_cast %84 : vector<16xf32> to vector<16x1xf32>
    %86 = tpu.reciprocal %85 {approx = true} : vector<16x1xf32> -> vector<16x1xf32>
    %87 = vector.broadcast %86 : vector<16x1xf32> to vector<16x10xf32>
    %88 = arith.mulf %83, %87 : vector<16x10xf32>
    %c0_63 = arith.constant 0 : index
    %c0_64 = arith.constant 0 : index
    %89 = vector.load %arg7[%c0_63, %c0_64] : memref<16x10xf32, #tpu.memory_space<vmem>>, vector<16x10xf32>
    tpu.vector_store %arg7[%c0_63, %c0_64], %88 {strides = array<i32>} : memref<16x10xf32, #tpu.memory_space<vmem>>, vector<16x10xf32>,
    return
  }
  func.func @transform_0(%arg0: i32) -> (i32, i32) {
    %c0_i32 = arith.constant 0 : i32
    %c0_i32_0 = arith.constant 0 : i32
    return %arg0, %c0_i32 : i32, i32
  }
  func.func @transform_1(%arg0: i32) -> (i32, i32) {
    %c0_i32 = arith.constant 0 : i32
    %c0_i32_0 = arith.constant 0 : i32
    %c0_i32_1 = arith.constant 0 : i32
    return %c0_i32, %c0_i32_0 : i32, i32
  }
  func.func @transform_2(%arg0: i32) -> (i32, i32) {
    %c0_i32 = arith.constant 0 : i32
    %c0_i32_0 = arith.constant 0 : i32
    %c0_i32_1 = arith.constant 0 : i32
    return %c0_i32, %c0_i32_0 : i32, i32
  }
  func.func @transform_3(%arg0: i32) -> (i32, i32) {
    %c0_i32 = arith.constant 0 : i32
    %c0_i32_0 = arith.constant 0 : i32
    %c0_i32_1 = arith.constant 0 : i32
    return %c0_i32, %c0_i32_0 : i32, i32
  }
  func.func @transform_4(%arg0: i32) -> (i32, i32) {
    %c0_i32 = arith.constant 0 : i32
    %c0_i32_0 = arith.constant 0 : i32
    %c0_i32_1 = arith.constant 0 : i32
    return %c0_i32, %c0_i32_0 : i32, i32
  }
  func.func @transform_5(%arg0: i32) -> (i32, i32) {
    %c0_i32 = arith.constant 0 : i32
    %c0_i32_0 = arith.constant 0 : i32
    %c0_i32_1 = arith.constant 0 : i32
    return %c0_i32, %c0_i32_0 : i32, i32
  }
  func.func @transform_6(%arg0: i32) -> (i32, i32) {
    %c0_i32 = arith.constant 0 : i32
    %c0_i32_0 = arith.constant 0 : i32
    return %arg0, %c0_i32 : i32, i32
  }
}

</mosaic_0001>

<llo_original>
// kernel: cnn_forward.1
$region0: #{cnn_forward.1}
  #allocation0 [shape = 'u32[]', space=smem, size = 0x4, offset = 0x4, fixed_abs, tag = 'smem constant byte address 0x4 - core index']
  #allocation1 [shape = 'u32[72,128]{1,0:T(1,128)}', space=vmem, size = 0x9000, scoped, tag = 'internal scratch']
  #allocation2 [shape = 'bf16[480,256]{1,0:T(8,128)(2,1)}', space=vmem, size = 0x3c000, scoped, tag = 'scratch operand']
  #allocation3 [shape = 'bf16[16,2560]{1,0:T(8,128)(2,1)}', space=vmem, size = 0x14000, scoped, tag = 'scratch operand']
  %s0 = inlined_call_operand.vmem [shape: bf16[480,256], index: 0, kind: input, shape index: {}]
  %s1 = inlined_call_operand.vmem [shape: bf16[256,256], index: 1, kind: input, shape index: {}]
  %s2 = inlined_call_operand.vmem [shape: bf16[2560,256], index: 2, kind: input, shape index: {}]
  %s3 = inlined_call_operand.vmem [shape: f32[1,256], index: 3, kind: input, shape index: {}]
  %s4 = inlined_call_operand.vmem [shape: bf16[256,10], index: 4, kind: input, shape index: {}]
  %s5 = inlined_call_operand.vmem [shape: f32[1,10], index: 5, kind: input, shape index: {}]
  %s6 = inlined_call_operand.vmem [shape: f32[16,10], index: 6, kind: output, shape index: {}]
  %s7 = sld [smem:[#allocation0]]
  $region34: #{cnn_forward.1} parent=0
    _
  %s9 = ssub.s32 1, %s7
  %s10 = scalar_select 0, %s9, %s7
  // Predicated region
  $region2: #{cnn_forward.1} parent=0 // pred_check
    _
  $region3: #{cnn_forward.1} parent=0 // pred_check_branch
    %12 = sbr.rel (0) target = $region5
  $region4: #{cnn_forward.1} parent=0 // pred_region
    _
  $region5: #{cnn_forward.1} parent=0 // pred_fallthru
    _
  // Predicated region
  $region6: #{cnn_forward.1} parent=0 // pred_check
    _
  $region7: #{cnn_forward.1} parent=0 // pred_check_branch
    %14 = sbr.rel (0) target = $region9
  $region8: #{cnn_forward.1} parent=0 // pred_region
    _
  $region9: #{cnn_forward.1} parent=0 // pred_fallthru
    _
  // Predicated region
  $region10: #{cnn_forward.1} parent=0 // pred_check
    _
  $region11: #{cnn_forward.1} parent=0 // pred_check_branch
    %16 = sbr.rel (0) target = $region13
  $region12: #{cnn_forward.1} parent=0 // pred_region
    _
  $region13: #{cnn_forward.1} parent=0 // pred_fallthru
    _
  // Predicated region
  $region14: #{cnn_forward.1} parent=0 // pred_check
    _
  $region15: #{cnn_forward.1} parent=0 // pred_check_branch
    %18 = sbr.rel (0) target = $region17
  $region16: #{cnn_forward.1} parent=0 // pred_region
    _
  $region17: #{cnn_forward.1} parent=0 // pred_fallthru
    _
  // Predicated region
  $region18: #{cnn_forward.1} parent=0 // pred_check
    _
  $region19: #{cnn_forward.1} parent=0 // pred_check_branch
    %20 = sbr.rel (0) target = $region21
  $region20: #{cnn_forward.1} parent=0 // pred_region
    _
  $region21: #{cnn_forward.1} parent=0 // pred_fallthru
    _
  // Predicated region
  $region22: #{cnn_forward.1} parent=0 // pred_check
    _
  $region23: #{cnn_forward.1} parent=0 // pred_check_branch
    %22 = sbr.rel (0) target = $region25
  $region24: #{cnn_forward.1} parent=0 // pred_region
    _
  $region25: #{cnn_forward.1} parent=0 // pred_fallthru
    _
  %v23 = vld [vmem:[%s0] sm:$0xff]
  %v24 = vld [vmem:[%s0 + $0x8] sm:$0xff]
  %v25 = vld [vmem:[%s0 + $0x10] sm:$0xff]
  %v26 = vld [vmem:[%s0 + $0x18] sm:$0xff]
  %v27 = vld [vmem:[%s0 + $0x20] sm:$0xff]
  %v28 = vld [vmem:[%s0 + $0x28] sm:$0xff]
  %v29 = vld [vmem:[%s0 + $0x30] sm:$0xff]
  %v30 = vld [vmem:[%s0 + $0x38] sm:$0xff]
  %v31 = vld [vmem:[%s0 + $0x40] sm:$0xff]
  %v32 = vld [vmem:[%s0 + $0x48] sm:$0xff]
  %v33 = vld [vmem:[%s0 + $0x50] sm:$0xff]
  %v34 = vld [vmem:[%s0 + $0x58] sm:$0xff]
  %v35 = vld [vmem:[%s0 + $0x60] sm:$0xff]
  %v36 = vld [vmem:[%s0 + $0x68] sm:$0xff]
  %v37 = vld [vmem:[%s0 + $0x70] sm:$0xff]
  %v38 = vld [vmem:[%s0 + $0x78] sm:$0xff]
  %v39 = vld [vmem:[%s0 + $0x80] sm:$0xff]
  %v40 = vld [vmem:[%s0 + $0x88] sm:$0xff]
  %v41 = vld [vmem:[%s0 + $0x90] sm:$0xff]
  %v42 = vld [vmem:[%s0 + $0x98] sm:$0xff]
  %v43 = vld [vmem:[%s0 + $0xa0] sm:$0xff]
  %v44 = vld [vmem:[%s0 + $0xa8] sm:$0xff]
  %v45 = vld [vmem:[%s0 + $0xb0] sm:$0xff]
  %v46 = vld [vmem:[%s0 + $0xb8] sm:$0xff]
  %v47 = vld [vmem:[%s0 + $0xc0] sm:$0xff]
  %v48 = vld [vmem:[%s0 + $0xc8] sm:$0xff]
  %v49 = vld [vmem:[%s0 + $0xd0] sm:$0xff]
  %v50 = vld [vmem:[%s0 + $0xd8] sm:$0xff]
  %v51 = vld [vmem:[%s0 + $0xe0] sm:$0xff]
  %v52 = vld [vmem:[%s0 + $0xe8] sm:$0xff]
  %v53 = vld [vmem:[%s0 + $0xf0] sm:$0xff]
  %v54 = vld [vmem:[%s0 + $0xf8] sm:$0xff]
  %v55 = vld [vmem:[%s0 + $0x100] sm:$0xff]
  %v56 = vld [vmem:[%s0 + $0x108] sm:$0xff]
  %v57 = vld [vmem:[%s0 + $0x110] sm:$0xff]
  %v58 = vld [vmem:[%s0 + $0x118] sm:$0xff]
  %v59 = vld [vmem:[%s0 + $0x120] sm:$0xff]
  %v60 = vld [vmem:[%s0 + $0x128] sm:$0xff]
  %v61 = vld [vmem:[%s0 + $0x130] sm:$0xff]
  %v62 = vld [vmem:[%s0 + $0x138] sm:$0xff]
  %v63 = vld [vmem:[%s0 + $0x140] sm:$0xff]
  %v64 = vld [vmem:[%s0 + $0x148] sm:$0xff]
  %v65 = vld [vmem:[%s0 + $0x150] sm:$0xff]
  %v66 = vld [vmem:[%s0 + $0x158] sm:$0xff]
  %v67 = vld [vmem:[%s0 + $0x160] sm:$0xff]
  %v68 = vld [vmem:[%s0 + $0x168] sm:$0xff]
  %v69 = vld [vmem:[%s0 + $0x170] sm:$0xff]
  %v70 = vld [vmem:[%s0 + $0x178] sm:$0xff]
  %v71 = vld [vmem:[%s0 + $0x180] sm:$0xff]
  %v72 = vld [vmem:[%s0 + $0x188] sm:$0xff]
  %v73 = vld [vmem:[%s0 + $0x190] sm:$0xff]
  %v74 = vld [vmem:[%s0 + $0x198] sm:$0xff]
  %v75 = vld [vmem:[%s0 + $0x1a0] sm:$0xff]
  %v76 = vld [vmem:[%s0 + $0x1a8] sm:$0xff]
  %v77 = vld [vmem:[%s0 + $0x1b0] sm:$0xff]
  %v78 = vld [vmem:[%s0 + $0x1b8] sm:$0xff]
  %v79 = vld [vmem:[%s0 + $0x1c0] sm:$0xff]
  %v80 = vld [vmem:[%s0 + $0x1c8] sm:$0xff]
  %v81 = vld [vmem:[%s0 + $0x1d0] sm:$0xff]
  %v82 = vld [vmem:[%s0 + $0x1d8] sm:$0xff]
  %v83 = vld [vmem:[%s1] sm:$0xff]
  %v84 = vld [vmem:[%s1 + $0x8] sm:$0xff]
  %v85 = vld [vmem:[%s1 + $0x10] sm:$0xff]
  %v86 = vld [vmem:[%s1 + $0x18] sm:$0xff]
  %v87 = vld [vmem:[%s1 + $0x20] sm:$0xff]
  %v88 = vld [vmem:[%s1 + $0x28] sm:$0xff]
  %v89 = vld [vmem:[%s1 + $0x30] sm:$0xff]
  %v90 = vld [vmem:[%s1 + $0x38] sm:$0xff]
  %v91 = vld [vmem:[%s1 + $0x40] sm:$0xff]
  %v92 = vld [vmem:[%s1 + $0x48] sm:$0xff]
  %v93 = vld [vmem:[%s1 + $0x50] sm:$0xff]
  %v94 = vld [vmem:[%s1 + $0x58] sm:$0xff]
  %v95 = vld [vmem:[%s1 + $0x60] sm:$0xff]
  %v96 = vld [vmem:[%s1 + $0x68] sm:$0xff]
  %v97 = vld [vmem:[%s1 + $0x70] sm:$0xff]
  %v98 = vld [vmem:[%s1 + $0x78] sm:$0xff]
  %v99 = vld [vmem:[%s1 + $0x80] sm:$0xff]
  %v100 = vld [vmem:[%s1 + $0x88] sm:$0xff]
  %v101 = vld [vmem:[%s1 + $0x90] sm:$0xff]
  %v102 = vld [vmem:[%s1 + $0x98] sm:$0xff]
  %v103 = vld [vmem:[%s1 + $0xa0] sm:$0xff]
  %v104 = vld [vmem:[%s1 + $0xa8] sm:$0xff]
  %v105 = vld [vmem:[%s1 + $0xb0] sm:$0xff]
  %v106 = vld [vmem:[%s1 + $0xb8] sm:$0xff]
  %v107 = vld [vmem:[%s1 + $0xc0] sm:$0xff]
  %v108 = vld [vmem:[%s1 + $0xc8] sm:$0xff]
  %v109 = vld [vmem:[%s1 + $0xd0] sm:$0xff]
  %v110 = vld [vmem:[%s1 + $0xd8] sm:$0xff]
  %v111 = vld [vmem:[%s1 + $0xe0] sm:$0xff]
  %v112 = vld [vmem:[%s1 + $0xe8] sm:$0xff]
  %v113 = vld [vmem:[%s1 + $0xf0] sm:$0xff]
  %v114 = vld [vmem:[%s1 + $0xf8] sm:$0xff]
  %v175 = vunpack.c.l.b16 %v23
  %v176 = vunpack.c.h.b16 %v23
  %v177 = vunpack.c.l.b16 %v24
  %v178 = vunpack.c.h.b16 %v24
  %v179 = vunpack.c.l.b16 %v25
  %v180 = vunpack.c.h.b16 %v25
  %v181 = vunpack.c.l.b16 %v26
  %v182 = vunpack.c.h.b16 %v26
  %v183 = vunpack.c.l.b16 %v27
  %v184 = vunpack.c.h.b16 %v27
  %v185 = vunpack.c.l.b16 %v28
  %v186 = vunpack.c.h.b16 %v28
  %v187 = vunpack.c.l.b16 %v29
  %v188 = vunpack.c.h.b16 %v29
  %v189 = vunpack.c.l.b16 %v30
  %v190 = vunpack.c.h.b16 %v30
  %v191 = vunpack.c.l.b16 %v31
  %v192 = vunpack.c.h.b16 %v31
  %v193 = vunpack.c.l.b16 %v32
  %v194 = vunpack.c.h.b16 %v32
  %v195 = vunpack.c.l.b16 %v33
  %v196 = vunpack.c.h.b16 %v33
  %v197 = vunpack.c.l.b16 %v34
  %v198 = vunpack.c.h.b16 %v34
  %v199 = vunpack.c.l.b16 %v35
  %v200 = vunpack.c.h.b16 %v35
  %v201 = vunpack.c.l.b16 %v36
  %v202 = vunpack.c.h.b16 %v36
  %v203 = vunpack.c.l.b16 %v37
  %v204 = vunpack.c.h.b16 %v37
  %v205 = vunpack.c.l.b16 %v38
  %v206 = vunpack.c.h.b16 %v38
  %v207 = vunpack.c.l.b16 %v39
  %v208 = vunpack.c.h.b16 %v39
  %v209 = vunpack.c.l.b16 %v40
  %v210 = vunpack.c.h.b16 %v40
  %v211 = vunpack.c.l.b16 %v41
  %v212 = vunpack.c.h.b16 %v41
  %v213 = vunpack.c.l.b16 %v42
  %v214 = vunpack.c.h.b16 %v42
  %v215 = vunpack.c.l.b16 %v43
  %v216 = vunpack.c.h.b16 %v43
  %v217 = vunpack.c.l.b16 %v44
  %v218 = vunpack.c.h.b16 %v44
  %v219 = vunpack.c.l.b16 %v45
  %v220 = vunpack.c.h.b16 %v45
  %v221 = vunpack.c.l.b16 %v46
  %v222 = vunpack.c.h.b16 %v46
  %v223 = vunpack.c.l.b16 %v47
  %v224 = vunpack.c.h.b16 %v47
  %v225 = vunpack.c.l.b16 %v48
  %v226 = vunpack.c.h.b16 %v48
  %v227 = vunpack.c.l.b16 %v49
  %v228 = vunpack.c.h.b16 %v49
  %v229 = vunpack.c.l.b16 %v50
  %v230 = vunpack.c.h.b16 %v50
  %v231 = vunpack.c.l.b16 %v51
  %v232 = vunpack.c.h.b16 %v51
  %v233 = vunpack.c.l.b16 %v52
  %v234 = vunpack.c.h.b16 %v52
  %v235 = vunpack.c.l.b16 %v53
  %v236 = vunpack.c.h.b16 %v53
  %v237 = vunpack.c.l.b16 %v54
  %v238 = vunpack.c.h.b16 %v54
  %v239 = vunpack.c.l.b16 %v55
  %v240 = vunpack.c.h.b16 %v55
  %v241 = vunpack.c.l.b16 %v56
  %v242 = vunpack.c.h.b16 %v56
  %v243 = vunpack.c.l.b16 %v57
  %v244 = vunpack.c.h.b16 %v57
  %v245 = vunpack.c.l.b16 %v58
  %v246 = vunpack.c.h.b16 %v58
  %v247 = vunpack.c.l.b16 %v59
  %v248 = vunpack.c.h.b16 %v59
  %v249 = vunpack.c.l.b16 %v60
  %v250 = vunpack.c.h.b16 %v60
  %v251 = vunpack.c.l.b16 %v61
  %v252 = vunpack.c.h.b16 %v61
  %v253 = vunpack.c.l.b16 %v62
  %v254 = vunpack.c.h.b16 %v62
  %v255 = vunpack.c.l.b16 %v63
  %v256 = vunpack.c.h.b16 %v63
  %v257 = vunpack.c.l.b16 %v64
  %v258 = vunpack.c.h.b16 %v64
  %v259 = vunpack.c.l.b16 %v65
  %v260 = vunpack.c.h.b16 %v65
  %v261 = vunpack.c.l.b16 %v66
  %v262 = vunpack.c.h.b16 %v66
  %v263 = vunpack.c.l.b16 %v67
  %v264 = vunpack.c.h.b16 %v67
  %v265 = vunpack.c.l.b16 %v68
  %v266 = vunpack.c.h.b16 %v68
  %v267 = vunpack.c.l.b16 %v69
  %v268 = vunpack.c.h.b16 %v69
  %v269 = vunpack.c.l.b16 %v70
  %v270 = vunpack.c.h.b16 %v70
  %v271 = vunpack.c.l.b16 %v71
  %v272 = vunpack.c.h.b16 %v71
  %v273 = vunpack.c.l.b16 %v72
  %v274 = vunpack.c.h.b16 %v72
  %v275 = vunpack.c.l.b16 %v73
  %v276 = vunpack.c.h.b16 %v73
  %v277 = vunpack.c.l.b16 %v74
  %v278 = vunpack.c.h.b16 %v74
  %v279 = vunpack.c.l.b16 %v75
  %v280 = vunpack.c.h.b16 %v75
  %v281 = vunpack.c.l.b16 %v76
  %v282 = vunpack.c.h.b16 %v76
  %v283 = vunpack.c.l.b16 %v77
  %v284 = vunpack.c.h.b16 %v77
  %v285 = vunpack.c.l.b16 %v78
  %v286 = vunpack.c.h.b16 %v78
  %v287 = vunpack.c.l.b16 %v79
  %v288 = vunpack.c.h.b16 %v79
  %v289 = vunpack.c.l.b16 %v80
  %v290 = vunpack.c.h.b16 %v80
  %v291 = vunpack.c.l.b16 %v81
  %v292 = vunpack.c.h.b16 %v81
  %v293 = vunpack.c.l.b16 %v82
  %v294 = vunpack.c.h.b16 %v82
  %v295 = vpack.c.b16 %v177, %v175
  %v296 = vpack.c.b16 %v178, %v176
  %v297 = vpack.c.b16 %v181, %v179
  %v298 = vpack.c.b16 %v182, %v180
  %v299 = vpack.c.b16 %v185, %v183
  %v300 = vpack.c.b16 %v186, %v184
  %v301 = vpack.c.b16 %v189, %v187
  %v302 = vpack.c.b16 %v190, %v188
  %v303 = vpack.c.b16 %v193, %v191
  %v304 = vpack.c.b16 %v194, %v192
  %v305 = vpack.c.b16 %v197, %v195
  %v306 = vpack.c.b16 %v198, %v196
  %v307 = vpack.c.b16 %v201, %v199
  %v308 = vpack.c.b16 %v202, %v200
  %v309 = vpack.c.b16 %v205, %v203
  %v310 = vpack.c.b16 %v206, %v204
  %v311 = vpack.c.b16 %v209, %v207
  %v312 = vpack.c.b16 %v210, %v208
  %v313 = vpack.c.b16 %v213, %v211
  %v314 = vpack.c.b16 %v214, %v212
  %v315 = vpack.c.b16 %v217, %v215
  %v316 = vpack.c.b16 %v218, %v216
  %v317 = vpack.c.b16 %v221, %v219
  %v318 = vpack.c.b16 %v222, %v220
  %v319 = vpack.c.b16 %v225, %v223
  %v320 = vpack.c.b16 %v226, %v224
  %v321 = vpack.c.b16 %v229, %v227
  %v322 = vpack.c.b16 %v230, %v228
  %v323 = vpack.c.b16 %v233, %v231
  %v324 = vpack.c.b16 %v234, %v232
  %v325 = vpack.c.b16 %v237, %v235
  %v326 = vpack.c.b16 %v238, %v236
  %v327 = vpack.c.b16 %v241, %v239
  %v328 = vpack.c.b16 %v242, %v240
  %v329 = vpack.c.b16 %v245, %v243
  %v330 = vpack.c.b16 %v246, %v244
  %v331 = vpack.c.b16 %v249, %v247
  %v332 = vpack.c.b16 %v250, %v248
  %v333 = vpack.c.b16 %v253, %v251
  %v334 = vpack.c.b16 %v254, %v252
  %v335 = vpack.c.b16 %v257, %v255
  %v336 = vpack.c.b16 %v258, %v256
  %v337 = vpack.c.b16 %v261, %v259
  %v338 = vpack.c.b16 %v262, %v260
  %v339 = vpack.c.b16 %v265, %v263
  %v340 = vpack.c.b16 %v266, %v264
  %v341 = vpack.c.b16 %v269, %v267
  %v342 = vpack.c.b16 %v270, %v268
  %v343 = vpack.c.b16 %v273, %v271
  %v344 = vpack.c.b16 %v274, %v272
  %v345 = vpack.c.b16 %v277, %v275
  %v346 = vpack.c.b16 %v278, %v276
  %v347 = vpack.c.b16 %v281, %v279
  %v348 = vpack.c.b16 %v282, %v280
  %v349 = vpack.c.b16 %v285, %v283
  %v350 = vpack.c.b16 %v286, %v284
  %v351 = vpack.c.b16 %v289, %v287
  %v352 = vpack.c.b16 %v290, %v288
  %v353 = vpack.c.b16 %v293, %v291
  %v354 = vpack.c.b16 %v294, %v292
  %v447 = vunpack.c.l.b16 %v83
  %v448 = vunpack.c.h.b16 %v83
  %v449 = vunpack.c.l.b16 %v84
  %v450 = vunpack.c.h.b16 %v84
  %v451 = vunpack.c.l.b16 %v85
  %v452 = vunpack.c.h.b16 %v85
  %v453 = vunpack.c.l.b16 %v86
  %v454 = vunpack.c.h.b16 %v86
  %v455 = vunpack.c.l.b16 %v87
  %v456 = vunpack.c.h.b16 %v87
  %v457 = vunpack.c.l.b16 %v88
  %v458 = vunpack.c.h.b16 %v88
  %v459 = vunpack.c.l.b16 %v89
  %v460 = vunpack.c.h.b16 %v89
  %v461 = vunpack.c.l.b16 %v90
  %v462 = vunpack.c.h.b16 %v90
  %v463 = vunpack.c.l.b16 %v91
  %v464 = vunpack.c.h.b16 %v91
  %v465 = vunpack.c.l.b16 %v92
  %v466 = vunpack.c.h.b16 %v92
  %v467 = vunpack.c.l.b16 %v93
  %v468 = vunpack.c.h.b16 %v93
  %v469 = vunpack.c.l.b16 %v94
  %v470 = vunpack.c.h.b16 %v94
  %v471 = vunpack.c.l.b16 %v95
  %v472 = vunpack.c.h.b16 %v95
  %v473 = vunpack.c.l.b16 %v96
  %v474 = vunpack.c.h.b16 %v96
  %v475 = vunpack.c.l.b16 %v97
  %v476 = vunpack.c.h.b16 %v97
  %v477 = vunpack.c.l.b16 %v98
  %v478 = vunpack.c.h.b16 %v98
  %v479 = vunpack.c.l.b16 %v99
  %v480 = vunpack.c.h.b16 %v99
  %v481 = vunpack.c.l.b16 %v100
  %v482 = vunpack.c.h.b16 %v100
  %v483 = vunpack.c.l.b16 %v101
  %v484 = vunpack.c.h.b16 %v101
  %v485 = vunpack.c.l.b16 %v102
  %v486 = vunpack.c.h.b16 %v102
  %v487 = vunpack.c.l.b16 %v103
  %v488 = vunpack.c.h.b16 %v103
  %v489 = vunpack.c.l.b16 %v104
  %v490 = vunpack.c.h.b16 %v104
  %v491 = vunpack.c.l.b16 %v105
  %v492 = vunpack.c.h.b16 %v105
  %v493 = vunpack.c.l.b16 %v106
  %v494 = vunpack.c.h.b16 %v106
  %v495 = vunpack.c.l.b16 %v107
  %v496 = vunpack.c.h.b16 %v107
  %v497 = vunpack.c.l.b16 %v108
  %v498 = vunpack.c.h.b16 %v108
  %v499 = vunpack.c.l.b16 %v109
  %v500 = vunpack.c.h.b16 %v109
  %v501 = vunpack.c.l.b16 %v110
  %v502 = vunpack.c.h.b16 %v110
  %v503 = vunpack.c.l.b16 %v111
  %v504 = vunpack.c.h.b16 %v111
  %v505 = vunpack.c.l.b16 %v112
  %v506 = vunpack.c.h.b16 %v112
  %v507 = vunpack.c.l.b16 %v113
  %v508 = vunpack.c.h.b16 %v113
  %v509 = vunpack.c.l.b16 %v114
  %v510 = vunpack.c.h.b16 %v114
  %v511 = vpack.c.b16 %v449, %v447
  %v512 = vpack.c.b16 %v450, %v448
  %v513 = vpack.c.b16 %v453, %v451
  %v514 = vpack.c.b16 %v454, %v452
  %v515 = vpack.c.b16 %v457, %v455
  %v516 = vpack.c.b16 %v458, %v456
  %v517 = vpack.c.b16 %v461, %v459
  %v518 = vpack.c.b16 %v462, %v460
  %v519 = vpack.c.b16 %v465, %v463
  %v520 = vpack.c.b16 %v466, %v464
  %v521 = vpack.c.b16 %v469, %v467
  %v522 = vpack.c.b16 %v470, %v468
  %v523 = vpack.c.b16 %v473, %v471
  %v524 = vpack.c.b16 %v474, %v472
  %v525 = vpack.c.b16 %v477, %v475
  %v526 = vpack.c.b16 %v478, %v476
  %v527 = vpack.c.b16 %v481, %v479
  %v528 = vpack.c.b16 %v482, %v480
  %v529 = vpack.c.b16 %v485, %v483
  %v530 = vpack.c.b16 %v486, %v484
  %v531 = vpack.c.b16 %v489, %v487
  %v532 = vpack.c.b16 %v490, %v488
  %v533 = vpack.c.b16 %v493, %v491
  %v534 = vpack.c.b16 %v494, %v492
  %v535 = vpack.c.b16 %v497, %v495
  %v536 = vpack.c.b16 %v498, %v496
  %v537 = vpack.c.b16 %v501, %v499
  %v538 = vpack.c.b16 %v502, %v500
  %v539 = vpack.c.b16 %v505, %v503
  %v540 = vpack.c.b16 %v506, %v504
  %v541 = vpack.c.b16 %v509, %v507
  %v542 = vpack.c.b16 %v510, %v508
  %575 = vmatpush.bf16.msra.mxu0 %v525
  %576 = vmatpush.bf16.msra.mxu0 %v523
  %577 = vmatpush.bf16.msra.mxu0 %v521
  %578 = vmatpush.bf16.msra.mxu0 %v519
  %579 = vmatpush.bf16.msra.mxu0 %v517
  %580 = vmatpush.bf16.msra.mxu0 %v515
  %581 = vmatpush.bf16.msra.mxu0 %v513
  %582 = vmatpush.bf16.msra.mxu0 %v511
  %583 = vmatmul.bf16.gmra.mxu0 %v295
  %v584 = vpop.f32.mrf.mxu0
  %v585 = vadd.f32 0.0, %v584
  %v586 = vpop.f32.mrf.mxu0
  %v587 = vadd.f32 0.0, %v586
  %588 = vmatmul.bf16.gmra.mxu0 %v297
  %v589 = vpop.f32.mrf.mxu0
  %v590 = vadd.f32 0.0, %v589
  %v591 = vpop.f32.mrf.mxu0
  %v592 = vadd.f32 0.0, %v591
  %593 = vmatmul.bf16.gmra.mxu0 %v299
  %v594 = vpop.f32.mrf.mxu0
  %v595 = vadd.f32 0.0, %v594
  %v596 = vpop.f32.mrf.mxu0
  %v597 = vadd.f32 0.0, %v596
  %598 = vmatmul.bf16.gmra.mxu0 %v301
  %v599 = vpop.f32.mrf.mxu0
  %v600 = vadd.f32 0.0, %v599
  %v601 = vpop.f32.mrf.mxu0
  %v602 = vadd.f32 0.0, %v601
  %603 = vmatmul.bf16.gmra.mxu0 %v303
  %v604 = vpop.f32.mrf.mxu0
  %v605 = vadd.f32 0.0, %v604
  %v606 = vpop.f32.mrf.mxu0
  %v607 = vadd.f32 0.0, %v606
  %608 = vmatmul.bf16.gmra.mxu0 %v305
  %v609 = vpop.f32.mrf.mxu0
  %v610 = vadd.f32 0.0, %v609
  %v611 = vpop.f32.mrf.mxu0
  %v612 = vadd.f32 0.0, %v611
  %613 = vmatmul.bf16.gmra.mxu0 %v307
  %v614 = vpop.f32.mrf.mxu0
  %v615 = vadd.f32 0.0, %v614
  %v616 = vpop.f32.mrf.mxu0
  %v617 = vadd.f32 0.0, %v616
  %618 = vmatmul.bf16.gmra.mxu0 %v309
  %v619 = vpop.f32.mrf.mxu0
  %v620 = vadd.f32 0.0, %v619
  %v621 = vpop.f32.mrf.mxu0
  %v622 = vadd.f32 0.0, %v621
  %623 = vmatmul.bf16.gmra.mxu0 %v311
  %v624 = vpop.f32.mrf.mxu0
  %v625 = vadd.f32 0.0, %v624
  %v626 = vpop.f32.mrf.mxu0
  %v627 = vadd.f32 0.0, %v626
  %628 = vmatmul.bf16.gmra.mxu0 %v313
  %v629 = vpop.f32.mrf.mxu0
  %v630 = vadd.f32 0.0, %v629
  %v631 = vpop.f32.mrf.mxu0
  %v632 = vadd.f32 0.0, %v631
  %633 = vmatmul.bf16.gmra.mxu0 %v315
  %v634 = vpop.f32.mrf.mxu0
  %v635 = vadd.f32 0.0, %v634
  %v636 = vpop.f32.mrf.mxu0
  %v637 = vadd.f32 0.0, %v636
  %638 = vmatmul.bf16.gmra.mxu0 %v317
  %v639 = vpop.f32.mrf.mxu0
  %v640 = vadd.f32 0.0, %v639
  %v641 = vpop.f32.mrf.mxu0
  %v642 = vadd.f32 0.0, %v641
  %643 = vmatmul.bf16.gmra.mxu0 %v319
  %v644 = vpop.f32.mrf.mxu0
  %v645 = vadd.f32 0.0, %v644
  %v646 = vpop.f32.mrf.mxu0
  %v647 = vadd.f32 0.0, %v646
  %648 = vmatmul.bf16.gmra.mxu0 %v321
  %v649 = vpop.f32.mrf.mxu0
  %v650 = vadd.f32 0.0, %v649
  %v651 = vpop.f32.mrf.mxu0
  %v652 = vadd.f32 0.0, %v651
  %653 = vmatmul.bf16.gmra.mxu0 %v323
  %v654 = vpop.f32.mrf.mxu0
  %v655 = vadd.f32 0.0, %v654
  %v656 = vpop.f32.mrf.mxu0
  %v657 = vadd.f32 0.0, %v656
  %658 = vmatmul.bf16.gmra.mxu0 %v325
  %v659 = vpop.f32.mrf.mxu0
  %v660 = vadd.f32 0.0, %v659
  %v661 = vpop.f32.mrf.mxu0
  %v662 = vadd.f32 0.0, %v661
  %663 = vmatmul.bf16.gmra.mxu0 %v327
  %v664 = vpop.f32.mrf.mxu0
  %v665 = vadd.f32 0.0, %v664
  %v666 = vpop.f32.mrf.mxu0
  %v667 = vadd.f32 0.0, %v666
  %668 = vmatmul.bf16.gmra.mxu0 %v329
  %v669 = vpop.f32.mrf.mxu0
  %v670 = vadd.f32 0.0, %v669
  %v671 = vpop.f32.mrf.mxu0
  %v672 = vadd.f32 0.0, %v671
  %673 = vmatmul.bf16.gmra.mxu0 %v331
  %v674 = vpop.f32.mrf.mxu0
  %v675 = vadd.f32 0.0, %v674
  %v676 = vpop.f32.mrf.mxu0
  %v677 = vadd.f32 0.0, %v676
  %678 = vmatmul.bf16.gmra.mxu0 %v333
  %v679 = vpop.f32.mrf.mxu0
  %v680 = vadd.f32 0.0, %v679
  %v681 = vpop.f32.mrf.mxu0
  %v682 = vadd.f32 0.0, %v681
  %683 = vmatmul.bf16.gmra.mxu0 %v335
  %v684 = vpop.f32.mrf.mxu0
  %v685 = vadd.f32 0.0, %v684
  %v686 = vpop.f32.mrf.mxu0
  %v687 = vadd.f32 0.0, %v686
  %688 = vmatmul.bf16.gmra.mxu0 %v337
  %v689 = vpop.f32.mrf.mxu0
  %v690 = vadd.f32 0.0, %v689
  %v691 = vpop.f32.mrf.mxu0
  %v692 = vadd.f32 0.0, %v691
  %693 = vmatmul.bf16.gmra.mxu0 %v339
  %v694 = vpop.f32.mrf.mxu0
  %v695 = vadd.f32 0.0, %v694
  %v696 = vpop.f32.mrf.mxu0
  %v697 = vadd.f32 0.0, %v696
  %698 = vmatmul.bf16.gmra.mxu0 %v341
  %v699 = vpop.f32.mrf.mxu0
  %v700 = vadd.f32 0.0, %v699
  %v701 = vpop.f32.mrf.mxu0
  %v702 = vadd.f32 0.0, %v701
  %703 = vmatmul.bf16.gmra.mxu0 %v343
  %v704 = vpop.f32.mrf.mxu0
  %v705 = vadd.f32 0.0, %v704
  %v706 = vpop.f32.mrf.mxu0
  %v707 = vadd.f32 0.0, %v706
  %708 = vmatmul.bf16.gmra.mxu0 %v345
  %v709 = vpop.f32.mrf.mxu0
  %v710 = vadd.f32 0.0, %v709
  %v711 = vpop.f32.mrf.mxu0
  %v712 = vadd.f32 0.0, %v711
  %713 = vmatmul.bf16.gmra.mxu0 %v347
  %v714 = vpop.f32.mrf.mxu0
  %v715 = vadd.f32 0.0, %v714
  %v716 = vpop.f32.mrf.mxu0
  %v717 = vadd.f32 0.0, %v716
  %718 = vmatmul.bf16.gmra.mxu0 %v349
  %v719 = vpop.f32.mrf.mxu0
  %v720 = vadd.f32 0.0, %v719
  %v721 = vpop.f32.mrf.mxu0
  %v722 = vadd.f32 0.0, %v721
  %723 = vmatmul.bf16.gmra.mxu0 %v351
  %v724 = vpop.f32.mrf.mxu0
  %v725 = vadd.f32 0.0, %v724
  %v726 = vpop.f32.mrf.mxu0
  %v727 = vadd.f32 0.0, %v726
  %728 = vmatmul.bf16.gmra.mxu0 %v353
  %v729 = vpop.f32.mrf.mxu0
  %v730 = vadd.f32 0.0, %v729
  %v731 = vpop.f32.mrf.mxu0
  %v732 = vadd.f32 0.0, %v731
  %733 = vdwg.mxu0
  %734 = vmatpush.bf16.msra.mxu0 %v541
  %735 = vmatpush.bf16.msra.mxu0 %v539
  %736 = vmatpush.bf16.msra.mxu0 %v537
  %737 = vmatpush.bf16.msra.mxu0 %v535
  %738 = vmatpush.bf16.msra.mxu0 %v533
  %739 = vmatpush.bf16.msra.mxu0 %v531
  %740 = vmatpush.bf16.msra.mxu0 %v529
  %741 = vmatpush.bf16.msra.mxu0 %v527
  %742 = vmatmul.bf16.gmra.mxu0 %v296
  %v743 = vpop.f32.mrf.mxu0
  %v744 = vadd.f32 %v585, %v743
  %v745 = vpop.f32.mrf.mxu0
  %v746 = vadd.f32 %v587, %v745
  %747 = vmatmul.bf16.gmra.mxu0 %v298
  %v748 = vpop.f32.mrf.mxu0
  %v749 = vadd.f32 %v590, %v748
  %v750 = vpop.f32.mrf.mxu0
  %v751 = vadd.f32 %v592, %v750
  %752 = vmatmul.bf16.gmra.mxu0 %v300
  %v753 = vpop.f32.mrf.mxu0
  %v754 = vadd.f32 %v595, %v753
  %v755 = vpop.f32.mrf.mxu0
  %v756 = vadd.f32 %v597, %v755
  %757 = vmatmul.bf16.gmra.mxu0 %v302
  %v758 = vpop.f32.mrf.mxu0
  %v759 = vadd.f32 %v600, %v758
  %v760 = vpop.f32.mrf.mxu0
  %v761 = vadd.f32 %v602, %v760
  %762 = vmatmul.bf16.gmra.mxu0 %v304
  %v763 = vpop.f32.mrf.mxu0
  %v764 = vadd.f32 %v605, %v763
  %v765 = vpop.f32.mrf.mxu0
  %v766 = vadd.f32 %v607, %v765
  %767 = vmatmul.bf16.gmra.mxu0 %v306
  %v768 = vpop.f32.mrf.mxu0
  %v769 = vadd.f32 %v610, %v768
  %v770 = vpop.f32.mrf.mxu0
  %v771 = vadd.f32 %v612, %v770
  %772 = vmatmul.bf16.gmra.mxu0 %v308
  %v773 = vpop.f32.mrf.mxu0
  %v774 = vadd.f32 %v615, %v773
  %v775 = vpop.f32.mrf.mxu0
  %v776 = vadd.f32 %v617, %v775
  %777 = vmatmul.bf16.gmra.mxu0 %v310
  %v778 = vpop.f32.mrf.mxu0
  %v779 = vadd.f32 %v620, %v778
  %v780 = vpop.f32.mrf.mxu0
  %v781 = vadd.f32 %v622, %v780
  %782 = vmatmul.bf16.gmra.mxu0 %v312
  %v783 = vpop.f32.mrf.mxu0
  %v784 = vadd.f32 %v625, %v783
  %v785 = vpop.f32.mrf.mxu0
  %v786 = vadd.f32 %v627, %v785
  %787 = vmatmul.bf16.gmra.mxu0 %v314
  %v788 = vpop.f32.mrf.mxu0
  %v789 = vadd.f32 %v630, %v788
  %v790 = vpop.f32.mrf.mxu0
  %v791 = vadd.f32 %v632, %v790
  %792 = vmatmul.bf16.gmra.mxu0 %v316
  %v793 = vpop.f32.mrf.mxu0
  %v794 = vadd.f32 %v635, %v793
  %v795 = vpop.f32.mrf.mxu0
  %v796 = vadd.f32 %v637, %v795
  %797 = vmatmul.bf16.gmra.mxu0 %v318
  %v798 = vpop.f32.mrf.mxu0
  %v799 = vadd.f32 %v640, %v798
  %v800 = vpop.f32.mrf.mxu0
  %v801 = vadd.f32 %v642, %v800
  %802 = vmatmul.bf16.gmra.mxu0 %v320
  %v803 = vpop.f32.mrf.mxu0
  %v804 = vadd.f32 %v645, %v803
  %v805 = vpop.f32.mrf.mxu0
  %v806 = vadd.f32 %v647, %v805
  %807 = vmatmul.bf16.gmra.mxu0 %v322
  %v808 = vpop.f32.mrf.mxu0
  %v809 = vadd.f32 %v650, %v808
  %v810 = vpop.f32.mrf.mxu0
  %v811 = vadd.f32 %v652, %v810
  %812 = vmatmul.bf16.gmra.mxu0 %v324
  %v813 = vpop.f32.mrf.mxu0
  %v814 = vadd.f32 %v655, %v813
  %v815 = vpop.f32.mrf.mxu0
  %v816 = vadd.f32 %v657, %v815
  %817 = vmatmul.bf16.gmra.mxu0 %v326
  %v818 = vpop.f32.mrf.mxu0
  %v819 = vadd.f32 %v660, %v818
  %v820 = vpop.f32.mrf.mxu0
  %v821 = vadd.f32 %v662, %v820
  %822 = vmatmul.bf16.gmra.mxu0 %v328
  %v823 = vpop.f32.mrf.mxu0
  %v824 = vadd.f32 %v665, %v823
  %v825 = vpop.f32.mrf.mxu0
  %v826 = vadd.f32 %v667, %v825
  %827 = vmatmul.bf16.gmra.mxu0 %v330
  %v828 = vpop.f32.mrf.mxu0
  %v829 = vadd.f32 %v670, %v828
  %v830 = vpop.f32.mrf.mxu0
  %v831 = vadd.f32 %v672, %v830
  %832 = vmatmul.bf16.gmra.mxu0 %v332
  %v833 = vpop.f32.mrf.mxu0
  %v834 = vadd.f32 %v675, %v833
  %v835 = vpop.f32.mrf.mxu0
  %v836 = vadd.f32 %v677, %v835
  %837 = vmatmul.bf16.gmra.mxu0 %v334
  %v838 = vpop.f32.mrf.mxu0
  %v839 = vadd.f32 %v680, %v838
  %v840 = vpop.f32.mrf.mxu0
  %v841 = vadd.f32 %v682, %v840
  %842 = vmatmul.bf16.gmra.mxu0 %v336
  %v843 = vpop.f32.mrf.mxu0
  %v844 = vadd.f32 %v685, %v843
  %v845 = vpop.f32.mrf.mxu0
  %v846 = vadd.f32 %v687, %v845
  %847 = vmatmul.bf16.gmra.mxu0 %v338
  %v848 = vpop.f32.mrf.mxu0
  %v849 = vadd.f32 %v690, %v848
  %v850 = vpop.f32.mrf.mxu0
  %v851 = vadd.f32 %v692, %v850
  %852 = vmatmul.bf16.gmra.mxu0 %v340
  %v853 = vpop.f32.mrf.mxu0
  %v854 = vadd.f32 %v695, %v853
  %v855 = vpop.f32.mrf.mxu0
  %v856 = vadd.f32 %v697, %v855
  %857 = vmatmul.bf16.gmra.mxu0 %v342
  %v858 = vpop.f32.mrf.mxu0
  %v859 = vadd.f32 %v700, %v858
  %v860 = vpop.f32.mrf.mxu0
  %v861 = vadd.f32 %v702, %v860
  %862 = vmatmul.bf16.gmra.mxu0 %v344
  %v863 = vpop.f32.mrf.mxu0
  %v864 = vadd.f32 %v705, %v863
  %v865 = vpop.f32.mrf.mxu0
  %v866 = vadd.f32 %v707, %v865
  %867 = vmatmul.bf16.gmra.mxu0 %v346
  %v868 = vpop.f32.mrf.mxu0
  %v869 = vadd.f32 %v710, %v868
  %v870 = vpop.f32.mrf.mxu0
  %v871 = vadd.f32 %v712, %v870
  %872 = vmatmul.bf16.gmra.mxu0 %v348
  %v873 = vpop.f32.mrf.mxu0
  %v874 = vadd.f32 %v715, %v873
  %v875 = vpop.f32.mrf.mxu0
  %v876 = vadd.f32 %v717, %v875
  %877 = vmatmul.bf16.gmra.mxu0 %v350
  %v878 = vpop.f32.mrf.mxu0
  %v879 = vadd.f32 %v720, %v878
  %v880 = vpop.f32.mrf.mxu0
  %v881 = vadd.f32 %v722, %v880
  %882 = vmatmul.bf16.gmra.mxu0 %v352
  %v883 = vpop.f32.mrf.mxu0
  %v884 = vadd.f32 %v725, %v883
  %v885 = vpop.f32.mrf.mxu0
  %v886 = vadd.f32 %v727, %v885
  %887 = vmatmul.bf16.gmra.mxu0 %v354
  %v888 = vpop.f32.mrf.mxu0
  %v889 = vadd.f32 %v730, %v888
  %v890 = vpop.f32.mrf.mxu0
  %v891 = vadd.f32 %v732, %v890
  %892 = vdwg.mxu0
  %893 = vmatpush.bf16.msra.mxu0 %v526
  %894 = vmatpush.bf16.msra.mxu0 %v524
  %895 = vmatpush.bf16.msra.mxu0 %v522
  %896 = vmatpush.bf16.msra.mxu0 %v520
  %897 = vmatpush.bf16.msra.mxu0 %v518
  %898 = vmatpush.bf16.msra.mxu0 %v516
  %899 = vmatpush.bf16.msra.mxu0 %v514
  %900 = vmatpush.bf16.msra.mxu0 %v512
  %901 = vmatmul.bf16.gmra.mxu0 %v295
  %v902 = vpop.f32.mrf.mxu0
  %v903 = vadd.f32 0.0, %v902
  %v904 = vpop.f32.mrf.mxu0
  %v905 = vadd.f32 0.0, %v904
  %906 = vmatmul.bf16.gmra.mxu0 %v297
  %v907 = vpop.f32.mrf.mxu0
  %v908 = vadd.f32 0.0, %v907
  %v909 = vpop.f32.mrf.mxu0
  %v910 = vadd.f32 0.0, %v909
  %911 = vmatmul.bf16.gmra.mxu0 %v299
  %v912 = vpop.f32.mrf.mxu0
  %v913 = vadd.f32 0.0, %v912
  %v914 = vpop.f32.mrf.mxu0
  %v915 = vadd.f32 0.0, %v914
  %916 = vmatmul.bf16.gmra.mxu0 %v301
  %v917 = vpop.f32.mrf.mxu0
  %v918 = vadd.f32 0.0, %v917
  %v919 = vpop.f32.mrf.mxu0
  %v920 = vadd.f32 0.0, %v919
  %921 = vmatmul.bf16.gmra.mxu0 %v303
  %v922 = vpop.f32.mrf.mxu0
  %v923 = vadd.f32 0.0, %v922
  %v924 = vpop.f32.mrf.mxu0
  %v925 = vadd.f32 0.0, %v924
  %926 = vmatmul.bf16.gmra.mxu0 %v305
  %v927 = vpop.f32.mrf.mxu0
  %v928 = vadd.f32 0.0, %v927
  %v929 = vpop.f32.mrf.mxu0
  %v930 = vadd.f32 0.0, %v929
  %931 = vmatmul.bf16.gmra.mxu0 %v307
  %v932 = vpop.f32.mrf.mxu0
  %v933 = vadd.f32 0.0, %v932
  %v934 = vpop.f32.mrf.mxu0
  %v935 = vadd.f32 0.0, %v934
  %936 = vmatmul.bf16.gmra.mxu0 %v309
  %v937 = vpop.f32.mrf.mxu0
  %v938 = vadd.f32 0.0, %v937
  %v939 = vpop.f32.mrf.mxu0
  %v940 = vadd.f32 0.0, %v939
  %941 = vmatmul.bf16.gmra.mxu0 %v311
  %v942 = vpop.f32.mrf.mxu0
  %v943 = vadd.f32 0.0, %v942
  %v944 = vpop.f32.mrf.mxu0
  %v945 = vadd.f32 0.0, %v944
  %946 = vmatmul.bf16.gmra.mxu0 %v313
  %v947 = vpop.f32.mrf.mxu0
  %v948 = vadd.f32 0.0, %v947
  %v949 = vpop.f32.mrf.mxu0
  %v950 = vadd.f32 0.0, %v949
  %951 = vmatmul.bf16.gmra.mxu0 %v315
  %v952 = vpop.f32.mrf.mxu0
  %v953 = vadd.f32 0.0, %v952
  %v954 = vpop.f32.mrf.mxu0
  %v955 = vadd.f32 0.0, %v954
  %956 = vmatmul.bf16.gmra.mxu0 %v317
  %v957 = vpop.f32.mrf.mxu0
  %v958 = vadd.f32 0.0, %v957
  %v959 = vpop.f32.mrf.mxu0
  %v960 = vadd.f32 0.0, %v959
  %961 = vmatmul.bf16.gmra.mxu0 %v319
  %v962 = vpop.f32.mrf.mxu0
  %v963 = vadd.f32 0.0, %v962
  %v964 = vpop.f32.mrf.mxu0
  %v965 = vadd.f32 0.0, %v964
  %966 = vmatmul.bf16.gmra.mxu0 %v321
  %v967 = vpop.f32.mrf.mxu0
  %v968 = vadd.f32 0.0, %v967
  %v969 = vpop.f32.mrf.mxu0
  %v970 = vadd.f32 0.0, %v969
  %971 = vmatmul.bf16.gmra.mxu0 %v323
  %v972 = vpop.f32.mrf.mxu0
  %v973 = vadd.f32 0.0, %v972
  %v974 = vpop.f32.mrf.mxu0
  %v975 = vadd.f32 0.0, %v974
  %976 = vmatmul.bf16.gmra.mxu0 %v325
  %v977 = vpop.f32.mrf.mxu0
  %v978 = vadd.f32 0.0, %v977
  %v979 = vpop.f32.mrf.mxu0
  %v980 = vadd.f32 0.0, %v979
  %981 = vmatmul.bf16.gmra.mxu0 %v327
  %v982 = vpop.f32.mrf.mxu0
  %v983 = vadd.f32 0.0, %v982
  %v984 = vpop.f32.mrf.mxu0
  %v985 = vadd.f32 0.0, %v984
  %986 = vmatmul.bf16.gmra.mxu0 %v329
  %v987 = vpop.f32.mrf.mxu0
  %v988 = vadd.f32 0.0, %v987
  %v989 = vpop.f32.mrf.mxu0
  %v990 = vadd.f32 0.0, %v989
  %991 = vmatmul.bf16.gmra.mxu0 %v331
  %v992 = vpop.f32.mrf.mxu0
  %v993 = vadd.f32 0.0, %v992
  %v994 = vpop.f32.mrf.mxu0
  %v995 = vadd.f32 0.0, %v994
  %996 = vmatmul.bf16.gmra.mxu0 %v333
  %v997 = vpop.f32.mrf.mxu0
  %v998 = vadd.f32 0.0, %v997
  %v999 = vpop.f32.mrf.mxu0
  %v1000 = vadd.f32 0.0, %v999
  %1001 = vmatmul.bf16.gmra.mxu0 %v335
  %v1002 = vpop.f32.mrf.mxu0
  %v1003 = vadd.f32 0.0, %v1002
  %v1004 = vpop.f32.mrf.mxu0
  %v1005 = vadd.f32 0.0, %v1004
  %1006 = vmatmul.bf16.gmra.mxu0 %v337
  %v1007 = vpop.f32.mrf.mxu0
  %v1008 = vadd.f32 0.0, %v1007
  %v1009 = vpop.f32.mrf.mxu0
  %v1010 = vadd.f32 0.0, %v1009
  %1011 = vmatmul.bf16.gmra.mxu0 %v339
  %v1012 = vpop.f32.mrf.mxu0
  %v1013 = vadd.f32 0.0, %v1012
  %v1014 = vpop.f32.mrf.mxu0
  %v1015 = vadd.f32 0.0, %v1014
  %1016 = vmatmul.bf16.gmra.mxu0 %v341
  %v1017 = vpop.f32.mrf.mxu0
  %v1018 = vadd.f32 0.0, %v1017
  %v1019 = vpop.f32.mrf.mxu0
  %v1020 = vadd.f32 0.0, %v1019
  %1021 = vmatmul.bf16.gmra.mxu0 %v343
  %v1022 = vpop.f32.mrf.mxu0
  %v1023 = vadd.f32 0.0, %v1022
  %v1024 = vpop.f32.mrf.mxu0
  %v1025 = vadd.f32 0.0, %v1024
  %1026 = vmatmul.bf16.gmra.mxu0 %v345
  %v1027 = vpop.f32.mrf.mxu0
  %v1028 = vadd.f32 0.0, %v1027
  %v1029 = vpop.f32.mrf.mxu0
  %v1030 = vadd.f32 0.0, %v1029
  %1031 = vmatmul.bf16.gmra.mxu0 %v347
  %v1032 = vpop.f32.mrf.mxu0
  %v1033 = vadd.f32 0.0, %v1032
  %v1034 = vpop.f32.mrf.mxu0
  %v1035 = vadd.f32 0.0, %v1034
  %1036 = vmatmul.bf16.gmra.mxu0 %v349
  %v1037 = vpop.f32.mrf.mxu0
  %v1038 = vadd.f32 0.0, %v1037
  %v1039 = vpop.f32.mrf.mxu0
  %v1040 = vadd.f32 0.0, %v1039
  %1041 = vmatmul.bf16.gmra.mxu0 %v351
  %v1042 = vpop.f32.mrf.mxu0
  %v1043 = vadd.f32 0.0, %v1042
  %v1044 = vpop.f32.mrf.mxu0
  %v1045 = vadd.f32 0.0, %v1044
  %1046 = vmatmul.bf16.gmra.mxu0 %v353
  %v1047 = vpop.f32.mrf.mxu0
  %v1048 = vadd.f32 0.0, %v1047
  %v1049 = vpop.f32.mrf.mxu0
  %v1050 = vadd.f32 0.0, %v1049
  %1051 = vdwg.mxu0
  %1052 = vmatpush.bf16.msra.mxu0 %v542
  %1053 = vmatpush.bf16.msra.mxu0 %v540
  %1054 = vmatpush.bf16.msra.mxu0 %v538
  %1055 = vmatpush.bf16.msra.mxu0 %v536
  %1056 = vmatpush.bf16.msra.mxu0 %v534
  %1057 = vmatpush.bf16.msra.mxu0 %v532
  %1058 = vmatpush.bf16.msra.mxu0 %v530
  %1059 = vmatpush.bf16.msra.mxu0 %v528
  %1060 = vmatmul.bf16.gmra.mxu0 %v296
  %v1061 = vpop.f32.mrf.mxu0
  %v1062 = vadd.f32 %v903, %v1061
  %v1063 = vpop.f32.mrf.mxu0
  %v1064 = vadd.f32 %v905, %v1063
  %1065 = vmatmul.bf16.gmra.mxu0 %v298
  %v1066 = vpop.f32.mrf.mxu0
  %v1067 = vadd.f32 %v908, %v1066
  %v1068 = vpop.f32.mrf.mxu0
  %v1069 = vadd.f32 %v910, %v1068
  %1070 = vmatmul.bf16.gmra.mxu0 %v300
  %v1071 = vpop.f32.mrf.mxu0
  %v1072 = vadd.f32 %v913, %v1071
  %v1073 = vpop.f32.mrf.mxu0
  %v1074 = vadd.f32 %v915, %v1073
  %1075 = vmatmul.bf16.gmra.mxu0 %v302
  %v1076 = vpop.f32.mrf.mxu0
  %v1077 = vadd.f32 %v918, %v1076
  %v1078 = vpop.f32.mrf.mxu0
  %v1079 = vadd.f32 %v920, %v1078
  %1080 = vmatmul.bf16.gmra.mxu0 %v304
  %v1081 = vpop.f32.mrf.mxu0
  %v1082 = vadd.f32 %v923, %v1081
  %v1083 = vpop.f32.mrf.mxu0
  %v1084 = vadd.f32 %v925, %v1083
  %1085 = vmatmul.bf16.gmra.mxu0 %v306
  %v1086 = vpop.f32.mrf.mxu0
  %v1087 = vadd.f32 %v928, %v1086
  %v1088 = vpop.f32.mrf.mxu0
  %v1089 = vadd.f32 %v930, %v1088
  %1090 = vmatmul.bf16.gmra.mxu0 %v308
  %v1091 = vpop.f32.mrf.mxu0
  %v1092 = vadd.f32 %v933, %v1091
  %v1093 = vpop.f32.mrf.mxu0
  %v1094 = vadd.f32 %v935, %v1093
  %1095 = vmatmul.bf16.gmra.mxu0 %v310
  %v1096 = vpop.f32.mrf.mxu0
  %v1097 = vadd.f32 %v938, %v1096
  %v1098 = vpop.f32.mrf.mxu0
  %v1099 = vadd.f32 %v940, %v1098
  %1100 = vmatmul.bf16.gmra.mxu0 %v312
  %v1101 = vpop.f32.mrf.mxu0
  %v1102 = vadd.f32 %v943, %v1101
  %v1103 = vpop.f32.mrf.mxu0
  %v1104 = vadd.f32 %v945, %v1103
  %1105 = vmatmul.bf16.gmra.mxu0 %v314
  %v1106 = vpop.f32.mrf.mxu0
  %v1107 = vadd.f32 %v948, %v1106
  %v1108 = vpop.f32.mrf.mxu0
  %v1109 = vadd.f32 %v950, %v1108
  %1110 = vmatmul.bf16.gmra.mxu0 %v316
  %v1111 = vpop.f32.mrf.mxu0
  %v1112 = vadd.f32 %v953, %v1111
  %v1113 = vpop.f32.mrf.mxu0
  %v1114 = vadd.f32 %v955, %v1113
  %1115 = vmatmul.bf16.gmra.mxu0 %v318
  %v1116 = vpop.f32.mrf.mxu0
  %v1117 = vadd.f32 %v958, %v1116
  %v1118 = vpop.f32.mrf.mxu0
  %v1119 = vadd.f32 %v960, %v1118
  %1120 = vmatmul.bf16.gmra.mxu0 %v320
  %v1121 = vpop.f32.mrf.mxu0
  %v1122 = vadd.f32 %v963, %v1121
  %v1123 = vpop.f32.mrf.mxu0
  %v1124 = vadd.f32 %v965, %v1123
  %1125 = vmatmul.bf16.gmra.mxu0 %v322
  %v1126 = vpop.f32.mrf.mxu0
  %v1127 = vadd.f32 %v968, %v1126
  %v1128 = vpop.f32.mrf.mxu0
  %v1129 = vadd.f32 %v970, %v1128
  %1130 = vmatmul.bf16.gmra.mxu0 %v324
  %v1131 = vpop.f32.mrf.mxu0
  %v1132 = vadd.f32 %v973, %v1131
  %v1133 = vpop.f32.mrf.mxu0
  %v1134 = vadd.f32 %v975, %v1133
  %1135 = vmatmul.bf16.gmra.mxu0 %v326
  %v1136 = vpop.f32.mrf.mxu0
  %v1137 = vadd.f32 %v978, %v1136
  %v1138 = vpop.f32.mrf.mxu0
  %v1139 = vadd.f32 %v980, %v1138
  %1140 = vmatmul.bf16.gmra.mxu0 %v328
  %v1141 = vpop.f32.mrf.mxu0
  %v1142 = vadd.f32 %v983, %v1141
  %v1143 = vpop.f32.mrf.mxu0
  %v1144 = vadd.f32 %v985, %v1143
  %1145 = vmatmul.bf16.gmra.mxu0 %v330
  %v1146 = vpop.f32.mrf.mxu0
  %v1147 = vadd.f32 %v988, %v1146
  %v1148 = vpop.f32.mrf.mxu0
  %v1149 = vadd.f32 %v990, %v1148
  %1150 = vmatmul.bf16.gmra.mxu0 %v332
  %v1151 = vpop.f32.mrf.mxu0
  %v1152 = vadd.f32 %v993, %v1151
  %v1153 = vpop.f32.mrf.mxu0
  %v1154 = vadd.f32 %v995, %v1153
  %1155 = vmatmul.bf16.gmra.mxu0 %v334
  %v1156 = vpop.f32.mrf.mxu0
  %v1157 = vadd.f32 %v998, %v1156
  %v1158 = vpop.f32.mrf.mxu0
  %v1159 = vadd.f32 %v1000, %v1158
  %1160 = vmatmul.bf16.gmra.mxu0 %v336
  %v1161 = vpop.f32.mrf.mxu0
  %v1162 = vadd.f32 %v1003, %v1161
  %v1163 = vpop.f32.mrf.mxu0
  %v1164 = vadd.f32 %v1005, %v1163
  %1165 = vmatmul.bf16.gmra.mxu0 %v338
  %v1166 = vpop.f32.mrf.mxu0
  %v1167 = vadd.f32 %v1008, %v1166
  %v1168 = vpop.f32.mrf.mxu0
  %v1169 = vadd.f32 %v1010, %v1168
  %1170 = vmatmul.bf16.gmra.mxu0 %v340
  %v1171 = vpop.f32.mrf.mxu0
  %v1172 = vadd.f32 %v1013, %v1171
  %v1173 = vpop.f32.mrf.mxu0
  %v1174 = vadd.f32 %v1015, %v1173
  %1175 = vmatmul.bf16.gmra.mxu0 %v342
  %v1176 = vpop.f32.mrf.mxu0
  %v1177 = vadd.f32 %v1018, %v1176
  %v1178 = vpop.f32.mrf.mxu0
  %v1179 = vadd.f32 %v1020, %v1178
  %1180 = vmatmul.bf16.gmra.mxu0 %v344
  %v1181 = vpop.f32.mrf.mxu0
  %v1182 = vadd.f32 %v1023, %v1181
  %v1183 = vpop.f32.mrf.mxu0
  %v1184 = vadd.f32 %v1025, %v1183
  %1185 = vmatmul.bf16.gmra.mxu0 %v346
  %v1186 = vpop.f32.mrf.mxu0
  %v1187 = vadd.f32 %v1028, %v1186
  %v1188 = vpop.f32.mrf.mxu0
  %v1189 = vadd.f32 %v1030, %v1188
  %1190 = vmatmul.bf16.gmra.mxu0 %v348
  %v1191 = vpop.f32.mrf.mxu0
  %v1192 = vadd.f32 %v1033, %v1191
  %v1193 = vpop.f32.mrf.mxu0
  %v1194 = vadd.f32 %v1035, %v1193
  %1195 = vmatmul.bf16.gmra.mxu0 %v350
  %v1196 = vpop.f32.mrf.mxu0
  %v1197 = vadd.f32 %v1038, %v1196
  %v1198 = vpop.f32.mrf.mxu0
  %v1199 = vadd.f32 %v1040, %v1198
  %1200 = vmatmul.bf16.gmra.mxu0 %v352
  %v1201 = vpop.f32.mrf.mxu0
  %v1202 = vadd.f32 %v1043, %v1201
  %v1203 = vpop.f32.mrf.mxu0
  %v1204 = vadd.f32 %v1045, %v1203
  %1205 = vmatmul.bf16.gmra.mxu0 %v354
  %v1206 = vpop.f32.mrf.mxu0
  %v1207 = vadd.f32 %v1048, %v1206
  %v1208 = vpop.f32.mrf.mxu0
  %v1209 = vadd.f32 %v1050, %v1208
  %1210 = vdwg.mxu0
  %v1211 = vmax.f32 %v744, 0.0
  %v1212 = vmax.f32 %v1062, 0.0
  %v1213 = vmax.f32 %v746, 0.0
  %v1214 = vmax.f32 %v1064, 0.0
  %v1215 = vmax.f32 %v749, 0.0
  %v1216 = vmax.f32 %v1067, 0.0
  %v1217 = vmax.f32 %v751, 0.0
  %v1218 = vmax.f32 %v1069, 0.0
  %v1219 = vmax.f32 %v754, 0.0
  %v1220 = vmax.f32 %v1072, 0.0
  %v1221 = vmax.f32 %v756, 0.0
  %v1222 = vmax.f32 %v1074, 0.0
  %v1223 = vmax.f32 %v759, 0.0
  %v1224 = vmax.f32 %v1077, 0.0
  %v1225 = vmax.f32 %v761, 0.0
  %v1226 = vmax.f32 %v1079, 0.0
  %v1227 = vmax.f32 %v764, 0.0
  %v1228 = vmax.f32 %v1082, 0.0
  %v1229 = vmax.f32 %v766, 0.0
  %v1230 = vmax.f32 %v1084, 0.0
  %v1231 = vmax.f32 %v769, 0.0
  %v1232 = vmax.f32 %v1087, 0.0
  %v1233 = vmax.f32 %v771, 0.0
  %v1234 = vmax.f32 %v1089, 0.0
  %v1235 = vmax.f32 %v774, 0.0
  %v1236 = vmax.f32 %v1092, 0.0
  %v1237 = vmax.f32 %v776, 0.0
  %v1238 = vmax.f32 %v1094, 0.0
  %v1239 = vmax.f32 %v779, 0.0
  %v1240 = vmax.f32 %v1097, 0.0
  %v1241 = vmax.f32 %v781, 0.0
  %v1242 = vmax.f32 %v1099, 0.0
  %v1243 = vmax.f32 %v784, 0.0
  %v1244 = vmax.f32 %v1102, 0.0
  %v1245 = vmax.f32 %v786, 0.0
  %v1246 = vmax.f32 %v1104, 0.0
  %v1247 = vmax.f32 %v789, 0.0
  %v1248 = vmax.f32 %v1107, 0.0
  %v1249 = vmax.f32 %v791, 0.0
  %v1250 = vmax.f32 %v1109, 0.0
  %v1251 = vmax.f32 %v794, 0.0
  %v1252 = vmax.f32 %v1112, 0.0
  %v1253 = vmax.f32 %v796, 0.0
  %v1254 = vmax.f32 %v1114, 0.0
  %v1255 = vmax.f32 %v799, 0.0
  %v1256 = vmax.f32 %v1117, 0.0
  %v1257 = vmax.f32 %v801, 0.0
  %v1258 = vmax.f32 %v1119, 0.0
  %v1259 = vmax.f32 %v804, 0.0
  %v1260 = vmax.f32 %v1122, 0.0
  %v1261 = vmax.f32 %v806, 0.0
  %v1262 = vmax.f32 %v1124, 0.0
  %v1263 = vmax.f32 %v809, 0.0
  %v1264 = vmax.f32 %v1127, 0.0
  %v1265 = vmax.f32 %v811, 0.0
  %v1266 = vmax.f32 %v1129, 0.0
  %v1267 = vmax.f32 %v814, 0.0
  %v1268 = vmax.f32 %v1132, 0.0
  %v1269 = vmax.f32 %v816, 0.0
  %v1270 = vmax.f32 %v1134, 0.0
  %v1271 = vmax.f32 %v819, 0.0
  %v1272 = vmax.f32 %v1137, 0.0
  %v1273 = vmax.f32 %v821, 0.0
  %v1274 = vmax.f32 %v1139, 0.0
  %v1275 = vmax.f32 %v824, 0.0
  %v1276 = vmax.f32 %v1142, 0.0
  %v1277 = vmax.f32 %v826, 0.0
  %v1278 = vmax.f32 %v1144, 0.0
  %v1279 = vmax.f32 %v829, 0.0
  %v1280 = vmax.f32 %v1147, 0.0
  %v1281 = vmax.f32 %v831, 0.0
  %v1282 = vmax.f32 %v1149, 0.0
  %v1283 = vmax.f32 %v834, 0.0
  %v1284 = vmax.f32 %v1152, 0.0
  %v1285 = vmax.f32 %v836, 0.0
  %v1286 = vmax.f32 %v1154, 0.0
  %v1287 = vmax.f32 %v839, 0.0
  %v1288 = vmax.f32 %v1157, 0.0
  %v1289 = vmax.f32 %v841, 0.0
  %v1290 = vmax.f32 %v1159, 0.0
  %v1291 = vmax.f32 %v844, 0.0
  %v1292 = vmax.f32 %v1162, 0.0
  %v1293 = vmax.f32 %v846, 0.0
  %v1294 = vmax.f32 %v1164, 0.0
  %v1295 = vmax.f32 %v849, 0.0
  %v1296 = vmax.f32 %v1167, 0.0
  %v1297 = vmax.f32 %v851, 0.0
  %v1298 = vmax.f32 %v1169, 0.0
  %v1299 = vmax.f32 %v854, 0.0
  %v1300 = vmax.f32 %v1172, 0.0
  %v1301 = vmax.f32 %v856, 0.0
  %v1302 = vmax.f32 %v1174, 0.0
  %v1303 = vmax.f32 %v859, 0.0
  %v1304 = vmax.f32 %v1177, 0.0
  %v1305 = vmax.f32 %v861, 0.0
  %v1306 = vmax.f32 %v1179, 0.0
  %v1307 = vmax.f32 %v864, 0.0
  %v1308 = vmax.f32 %v1182, 0.0
  %v1309 = vmax.f32 %v866, 0.0
  %v1310 = vmax.f32 %v1184, 0.0
  %v1311 = vmax.f32 %v869, 0.0
  %v1312 = vmax.f32 %v1187, 0.0
  %v1313 = vmax.f32 %v871, 0.0
  %v1314 = vmax.f32 %v1189, 0.0
  %v1315 = vmax.f32 %v874, 0.0
  %v1316 = vmax.f32 %v1192, 0.0
  %v1317 = vmax.f32 %v876, 0.0
  %v1318 = vmax.f32 %v1194, 0.0
  %v1319 = vmax.f32 %v879, 0.0
  %v1320 = vmax.f32 %v1197, 0.0
  %v1321 = vmax.f32 %v881, 0.0
  %v1322 = vmax.f32 %v1199, 0.0
  %v1323 = vmax.f32 %v884, 0.0
  %v1324 = vmax.f32 %v1202, 0.0
  %v1325 = vmax.f32 %v886, 0.0
  %v1326 = vmax.f32 %v1204, 0.0
  %v1327 = vmax.f32 %v889, 0.0
  %v1328 = vmax.f32 %v1207, 0.0
  %v1329 = vmax.f32 %v891, 0.0
  %v1330 = vmax.f32 %v1209, 0.0
  %v1331 = vpack.c.bf16 %v1212, %v1211
  %v1332 = vpack.c.bf16 %v1214, %v1213
  %v1333 = vpack.c.bf16 %v1216, %v1215
  %v1334 = vpack.c.bf16 %v1218, %v1217
  %v1335 = vpack.c.bf16 %v1220, %v1219
  %v1336 = vpack.c.bf16 %v1222, %v1221
  %v1337 = vpack.c.bf16 %v1224, %v1223
  %v1338 = vpack.c.bf16 %v1226, %v1225
  %v1339 = vpack.c.bf16 %v1228, %v1227
  %v1340 = vpack.c.bf16 %v1230, %v1229
  %v1341 = vpack.c.bf16 %v1232, %v1231
  %v1342 = vpack.c.bf16 %v1234, %v1233
  %v1343 = vpack.c.bf16 %v1236, %v1235
  %v1344 = vpack.c.bf16 %v1238, %v1237
  %v1345 = vpack.c.bf16 %v1240, %v1239
  %v1346 = vpack.c.bf16 %v1242, %v1241
  %v1347 = vpack.c.bf16 %v1244, %v1243
  %v1348 = vpack.c.bf16 %v1246, %v1245
  %v1349 = vpack.c.bf16 %v1248, %v1247
  %v1350 = vpack.c.bf16 %v1250, %v1249
  %v1351 = vpack.c.bf16 %v1252, %v1251
  %v1352 = vpack.c.bf16 %v1254, %v1253
  %v1353 = vpack.c.bf16 %v1256, %v1255
  %v1354 = vpack.c.bf16 %v1258, %v1257
  %v1355 = vpack.c.bf16 %v1260, %v1259
  %v1356 = vpack.c.bf16 %v1262, %v1261
  %v1357 = vpack.c.bf16 %v1264, %v1263
  %v1358 = vpack.c.bf16 %v1266, %v1265
  %v1359 = vpack.c.bf16 %v1268, %v1267
  %v1360 = vpack.c.bf16 %v1270, %v1269
  %v1361 = vpack.c.bf16 %v1272, %v1271
  %v1362 = vpack.c.bf16 %v1274, %v1273
  %v1363 = vpack.c.bf16 %v1276, %v1275
  %v1364 = vpack.c.bf16 %v1278, %v1277
  %v1365 = vpack.c.bf16 %v1280, %v1279
  %v1366 = vpack.c.bf16 %v1282, %v1281
  %v1367 = vpack.c.bf16 %v1284, %v1283
  %v1368 = vpack.c.bf16 %v1286, %v1285
  %v1369 = vpack.c.bf16 %v1288, %v1287
  %v1370 = vpack.c.bf16 %v1290, %v1289
  %v1371 = vpack.c.bf16 %v1292, %v1291
  %v1372 = vpack.c.bf16 %v1294, %v1293
  %v1373 = vpack.c.bf16 %v1296, %v1295
  %v1374 = vpack.c.bf16 %v1298, %v1297
  %v1375 = vpack.c.bf16 %v1300, %v1299
  %v1376 = vpack.c.bf16 %v1302, %v1301
  %v1377 = vpack.c.bf16 %v1304, %v1303
  %v1378 = vpack.c.bf16 %v1306, %v1305
  %v1379 = vpack.c.bf16 %v1308, %v1307
  %v1380 = vpack.c.bf16 %v1310, %v1309
  %v1381 = vpack.c.bf16 %v1312, %v1311
  %v1382 = vpack.c.bf16 %v1314, %v1313
  %v1383 = vpack.c.bf16 %v1316, %v1315
  %v1384 = vpack.c.bf16 %v1318, %v1317
  %v1385 = vpack.c.bf16 %v1320, %v1319
  %v1386 = vpack.c.bf16 %v1322, %v1321
  %v1387 = vpack.c.bf16 %v1324, %v1323
  %v1388 = vpack.c.bf16 %v1326, %v1325
  %v1389 = vpack.c.bf16 %v1328, %v1327
  %v1390 = vpack.c.bf16 %v1330, %v1329
  %1391 = vst [vmem:[#allocation2] sm:$0xff] %v1331
  %1392 = vst [vmem:[#allocation2 + $0x8] sm:$0xff] %v1332
  %1393 = vst [vmem:[#allocation2 + $0x10] sm:$0xff] %v1333
  %1394 = vst [vmem:[#allocation2 + $0x18] sm:$0xff] %v1334
  %1395 = vst [vmem:[#allocation2 + $0x20] sm:$0xff] %v1335
  %1396 = vst [vmem:[#allocation2 + $0x28] sm:$0xff] %v1336
  %1397 = vst [vmem:[#allocation2 + $0x30] sm:$0xff] %v1337
  %1398 = vst [vmem:[#allocation2 + $0x38] sm:$0xff] %v1338
  %1399 = vst [vmem:[#allocation2 + $0x40] sm:$0xff] %v1339
  %1400 = vst [vmem:[#allocation2 + $0x48] sm:$0xff] %v1340
  %1401 = vst [vmem:[#allocation2 + $0x50] sm:$0xff] %v1341
  %1402 = vst [vmem:[#allocation2 + $0x58] sm:$0xff] %v1342
  %1403 = vst [vmem:[#allocation2 + $0x60] sm:$0xff] %v1343
  %1404 = vst [vmem:[#allocation2 + $0x68] sm:$0xff] %v1344
  %1405 = vst [vmem:[#allocation2 + $0x70] sm:$0xff] %v1345
  %1406 = vst [vmem:[#allocation2 + $0x78] sm:$0xff] %v1346
  %1407 = vst [vmem:[#allocation2 + $0x80] sm:$0xff] %v1347
  %1408 = vst [vmem:[#allocation2 + $0x88] sm:$0xff] %v1348
  %1409 = vst [vmem:[#allocation2 + $0x90] sm:$0xff] %v1349
  %1410 = vst [vmem:[#allocation2 + $0x98] sm:$0xff] %v1350
  %1411 = vst [vmem:[#allocation2 + $0xa0] sm:$0xff] %v1351
  %1412 = vst [vmem:[#allocation2 + $0xa8] sm:$0xff] %v1352
  %1413 = vst [vmem:[#allocation2 + $0xb0] sm:$0xff] %v1353
  %1414 = vst [vmem:[#allocation2 + $0xb8] sm:$0xff] %v1354
  %1415 = vst [vmem:[#allocation2 + $0xc0] sm:$0xff] %v1355
  %1416 = vst [vmem:[#allocation2 + $0xc8] sm:$0xff] %v1356
  %1417 = vst [vmem:[#allocation2 + $0xd0] sm:$0xff] %v1357
  %1418 = vst [vmem:[#allocation2 + $0xd8] sm:$0xff] %v1358
  %1419 = vst [vmem:[#allocation2 + $0xe0] sm:$0xff] %v1359
  %1420 = vst [vmem:[#allocation2 + $0xe8] sm:$0xff] %v1360
  %1421 = vst [vmem:[#allocation2 + $0xf0] sm:$0xff] %v1361
  %1422 = vst [vmem:[#allocation2 + $0xf8] sm:$0xff] %v1362
  %1423 = vst [vmem:[#allocation2 + $0x100] sm:$0xff] %v1363
  %1424 = vst [vmem:[#allocation2 + $0x108] sm:$0xff] %v1364
  %1425 = vst [vmem:[#allocation2 + $0x110] sm:$0xff] %v1365
  %1426 = vst [vmem:[#allocation2 + $0x118] sm:$0xff] %v1366
  %1427 = vst [vmem:[#allocation2 + $0x120] sm:$0xff] %v1367
  %1428 = vst [vmem:[#allocation2 + $0x128] sm:$0xff] %v1368
  %1429 = vst [vmem:[#allocation2 + $0x130] sm:$0xff] %v1369
  %1430 = vst [vmem:[#allocation2 + $0x138] sm:$0xff] %v1370
  %1431 = vst [vmem:[#allocation2 + $0x140] sm:$0xff] %v1371
  %1432 = vst [vmem:[#allocation2 + $0x148] sm:$0xff] %v1372
  %1433 = vst [vmem:[#allocation2 + $0x150] sm:$0xff] %v1373
  %1434 = vst [vmem:[#allocation2 + $0x158] sm:$0xff] %v1374
  %1435 = vst [vmem:[#allocation2 + $0x160] sm:$0xff] %v1375
  %1436 = vst [vmem:[#allocation2 + $0x168] sm:$0xff] %v1376
  %1437 = vst [vmem:[#allocation2 + $0x170] sm:$0xff] %v1377
  %1438 = vst [vmem:[#allocation2 + $0x178] sm:$0xff] %v1378
  %1439 = vst [vmem:[#allocation2 + $0x180] sm:$0xff] %v1379
  %1440 = vst [vmem:[#allocation2 + $0x188] sm:$0xff] %v1380
  %1441 = vst [vmem:[#allocation2 + $0x190] sm:$0xff] %v1381
  %1442 = vst [vmem:[#allocation2 + $0x198] sm:$0xff] %v1382
  %1443 = vst [vmem:[#allocation2 + $0x1a0] sm:$0xff] %v1383
  %1444 = vst [vmem:[#allocation2 + $0x1a8] sm:$0xff] %v1384
  %1445 = vst [vmem:[#allocation2 + $0x1b0] sm:$0xff] %v1385
  %1446 = vst [vmem:[#allocation2 + $0x1b8] sm:$0xff] %v1386
  %1447 = vst [vmem:[#allocation2 + $0x1c0] sm:$0xff] %v1387
  %1448 = vst [vmem:[#allocation2 + $0x1c8] sm:$0xff] %v1388
  %1449 = vst [vmem:[#allocation2 + $0x1d0] sm:$0xff] %v1389
  %1450 = vst [vmem:[#allocation2 + $0x1d8] sm:$0xff] %v1390
  %v1451 = vld [vmem:[#allocation2] sm:$0xff]
  %v1452 = vld [vmem:[#allocation2 + $0x8] sm:$0xff]
  %v1453 = vld [vmem:[#allocation2 + $0x10] sm:$0xff]
  %v1454 = vld [vmem:[#allocation2 + $0x18] sm:$0xff]
  %v1455 = vunpack.c.l.bf16 %v1451
  %v1456 = vunpack.c.h.bf16 %v1451
  %v1457 = vunpack.c.l.bf16 %v1452
  %v1458 = vunpack.c.h.bf16 %v1452
  %v1459 = vunpack.c.l.bf16 %v1453
  %v1460 = vunpack.c.h.bf16 %v1453
  %v1461 = vunpack.c.l.bf16 %v1454
  %v1462 = vunpack.c.h.bf16 %v1454
  %v1463 = vmax.f32 %v1455, %v1459
  %v1464 = vmax.f32 %v1456, %v1460
  %v1465 = vmax.f32 %v1457, %v1461
  %v1466 = vmax.f32 %v1458, %v1462
  %v1467 = vpack.c.bf16 %v1464, %v1463
  %v1468 = vpack.c.bf16 %v1466, %v1465
  %1469 = vst [vmem:[#allocation3] sm:$0xff] %v1467
  %1470 = vst [vmem:[#allocation3 + $0x50] sm:$0xff] %v1468
  %v1471 = vld [vmem:[#allocation2 + $0x20] sm:$0xff]
  %v1472 = vld [vmem:[#allocation2 + $0x28] sm:$0xff]
  %v1473 = vld [vmem:[#allocation2 + $0x30] sm:$0xff]
  %v1474 = vld [vmem:[#allocation2 + $0x38] sm:$0xff]
  %v1475 = vunpack.c.l.bf16 %v1471
  %v1476 = vunpack.c.h.bf16 %v1471
  %v1477 = vunpack.c.l.bf16 %v1472
  %v1478 = vunpack.c.h.bf16 %v1472
  %v1479 = vunpack.c.l.bf16 %v1473
  %v1480 = vunpack.c.h.bf16 %v1473
  %v1481 = vunpack.c.l.bf16 %v1474
  %v1482 = vunpack.c.h.bf16 %v1474
  %v1483 = vmax.f32 %v1475, %v1479
  %v1484 = vmax.f32 %v1476, %v1480
  %v1485 = vmax.f32 %v1477, %v1481
  %v1486 = vmax.f32 %v1478, %v1482
  %v1487 = vpack.c.bf16 %v1484, %v1483
  %v1488 = vpack.c.bf16 %v1486, %v1485
  %v1489 = vld [vmem:[#allocation2 + $0x40] sm:$0xff]
  %v1490 = vld [vmem:[#allocation2 + $0x48] sm:$0xff]
  %v1491 = vunpack.c.l.bf16 %v1487
  %v1492 = vunpack.c.h.bf16 %v1487
  %v1493 = vunpack.c.l.bf16 %v1488
  %v1494 = vunpack.c.h.bf16 %v1488
  %v1495 = vunpack.c.l.bf16 %v1489
  %v1496 = vunpack.c.h.bf16 %v1489
  %v1497 = vunpack.c.l.bf16 %v1490
  %v1498 = vunpack.c.h.bf16 %v1490
  %v1499 = vmax.f32 %v1491, %v1495
  %v1500 = vmax.f32 %v1492, %v1496
  %v1501 = vmax.f32 %v1493, %v1497
  %v1502 = vmax.f32 %v1494, %v1498
  %v1503 = vpack.c.bf16 %v1500, %v1499
  %v1504 = vpack.c.bf16 %v1502, %v1501
  %1505 = vst [vmem:[#allocation3 + $0x8] sm:$0xff] %v1503
  %1506 = vst [vmem:[#allocation3 + $0x58] sm:$0xff] %v1504
  %v1507 = vld [vmem:[#allocation2 + $0x50] sm:$0xff]
  %v1508 = vld [vmem:[#allocation2 + $0x58] sm:$0xff]
  %v1509 = vld [vmem:[#allocation2 + $0x60] sm:$0xff]
  %v1510 = vld [vmem:[#allocation2 + $0x68] sm:$0xff]
  %v1511 = vunpack.c.l.bf16 %v1507
  %v1512 = vunpack.c.h.bf16 %v1507
  %v1513 = vunpack.c.l.bf16 %v1508
  %v1514 = vunpack.c.h.bf16 %v1508
  %v1515 = vunpack.c.l.bf16 %v1509
  %v1516 = vunpack.c.h.bf16 %v1509
  %v1517 = vunpack.c.l.bf16 %v1510
  %v1518 = vunpack.c.h.bf16 %v1510
  %v1519 = vmax.f32 %v1511, %v1515
  %v1520 = vmax.f32 %v1512, %v1516
  %v1521 = vmax.f32 %v1513, %v1517
  %v1522 = vmax.f32 %v1514, %v1518
  %v1523 = vpack.c.bf16 %v1520, %v1519
  %v1524 = vpack.c.bf16 %v1522, %v1521
  %v1525 = vld [vmem:[#allocation2 + $0x70] sm:$0xff]
  %v1526 = vld [vmem:[#allocation2 + $0x78] sm:$0xff]
  %v1527 = vunpack.c.l.bf16 %v1523
  %v1528 = vunpack.c.h.bf16 %v1523
  %v1529 = vunpack.c.l.bf16 %v1524
  %v1530 = vunpack.c.h.bf16 %v1524
  %v1531 = vunpack.c.l.bf16 %v1525
  %v1532 = vunpack.c.h.bf16 %v1525
  %v1533 = vunpack.c.l.bf16 %v1526
  %v1534 = vunpack.c.h.bf16 %v1526
  %v1535 = vmax.f32 %v1527, %v1531
  %v1536 = vmax.f32 %v1528, %v1532
  %v1537 = vmax.f32 %v1529, %v1533
  %v1538 = vmax.f32 %v1530, %v1534
  %v1539 = vpack.c.bf16 %v1536, %v1535
  %v1540 = vpack.c.bf16 %v1538, %v1537
  %1541 = vst [vmem:[#allocation3 + $0x10] sm:$0xff] %v1539
  %1542 = vst [vmem:[#allocation3 + $0x60] sm:$0xff] %v1540
  %v1543 = vld [vmem:[#allocation2 + $0x80] sm:$0xff]
  %v1544 = vld [vmem:[#allocation2 + $0x88] sm:$0xff]
  %v1545 = vld [vmem:[#allocation2 + $0x90] sm:$0xff]
  %v1546 = vld [vmem:[#allocation2 + $0x98] sm:$0xff]
  %v1547 = vunpack.c.l.bf16 %v1543
  %v1548 = vunpack.c.h.bf16 %v1543
  %v1549 = vunpack.c.l.bf16 %v1544
  %v1550 = vunpack.c.h.bf16 %v1544
  %v1551 = vunpack.c.l.bf16 %v1545
  %v1552 = vunpack.c.h.bf16 %v1545
  %v1553 = vunpack.c.l.bf16 %v1546
  %v1554 = vunpack.c.h.bf16 %v1546
  %v1555 = vmax.f32 %v1547, %v1551
  %v1556 = vmax.f32 %v1548, %v1552
  %v1557 = vmax.f32 %v1549, %v1553
  %v1558 = vmax.f32 %v1550, %v1554
  %v1559 = vpack.c.bf16 %v1556, %v1555
  %v1560 = vpack.c.bf16 %v1558, %v1557
  %v1561 = vld [vmem:[#allocation2 + $0xa0] sm:$0xff]
  %v1562 = vld [vmem:[#allocation2 + $0xa8] sm:$0xff]
  %v1563 = vunpack.c.l.bf16 %v1559
  %v1564 = vunpack.c.h.bf16 %v1559
  %v1565 = vunpack.c.l.bf16 %v1560
  %v1566 = vunpack.c.h.bf16 %v1560
  %v1567 = vunpack.c.l.bf16 %v1561
  %v1568 = vunpack.c.h.bf16 %v1561
  %v1569 = vunpack.c.l.bf16 %v1562
  %v1570 = vunpack.c.h.bf16 %v1562
  %v1571 = vmax.f32 %v1563, %v1567
  %v1572 = vmax.f32 %v1564, %v1568
  %v1573 = vmax.f32 %v1565, %v1569
  %v1574 = vmax.f32 %v1566, %v1570
  %v1575 = vpack.c.bf16 %v1572, %v1571
  %v1576 = vpack.c.bf16 %v1574, %v1573
  %1577 = vst [vmem:[#allocation3 + $0x18] sm:$0xff] %v1575
  %1578 = vst [vmem:[#allocation3 + $0x68] sm:$0xff] %v1576
  %v1579 = vld [vmem:[#allocation2 + $0xb0] sm:$0xff]
  %v1580 = vld [vmem:[#allocation2 + $0xb8] sm:$0xff]
  %v1581 = vld [vmem:[#allocation2 + $0xc0] sm:$0xff]
  %v1582 = vld [vmem:[#allocation2 + $0xc8] sm:$0xff]
  %v1583 = vunpack.c.l.bf16 %v1579
  %v1584 = vunpack.c.h.bf16 %v1579
  %v1585 = vunpack.c.l.bf16 %v1580
  %v1586 = vunpack.c.h.bf16 %v1580
  %v1587 = vunpack.c.l.bf16 %v1581
  %v1588 = vunpack.c.h.bf16 %v1581
  %v1589 = vunpack.c.l.bf16 %v1582
  %v1590 = vunpack.c.h.bf16 %v1582
  %v1591 = vmax.f32 %v1583, %v1587
  %v1592 = vmax.f32 %v1584, %v1588
  %v1593 = vmax.f32 %v1585, %v1589
  %v1594 = vmax.f32 %v1586, %v1590
  %v1595 = vpack.c.bf16 %v1592, %v1591
  %v1596 = vpack.c.bf16 %v1594, %v1593
  %v1597 = vld [vmem:[#allocation2 + $0xd0] sm:$0xff]
  %v1598 = vld [vmem:[#allocation2 + $0xd8] sm:$0xff]
  %v1599 = vunpack.c.l.bf16 %v1595
  %v1600 = vunpack.c.h.bf16 %v1595
  %v1601 = vunpack.c.l.bf16 %v1596
  %v1602 = vunpack.c.h.bf16 %v1596
  %v1603 = vunpack.c.l.bf16 %v1597
  %v1604 = vunpack.c.h.bf16 %v1597
  %v1605 = vunpack.c.l.bf16 %v1598
  %v1606 = vunpack.c.h.bf16 %v1598
  %v1607 = vmax.f32 %v1599, %v1603
  %v1608 = vmax.f32 %v1600, %v1604
  %v1609 = vmax.f32 %v1601, %v1605
  %v1610 = vmax.f32 %v1602, %v1606
  %v1611 = vpack.c.bf16 %v1608, %v1607
  %v1612 = vpack.c.bf16 %v1610, %v1609
  %1613 = vst [vmem:[#allocation3 + $0x20] sm:$0xff] %v1611
  %1614 = vst [vmem:[#allocation3 + $0x70] sm:$0xff] %v1612
  %v1615 = vld [vmem:[#allocation2 + $0xe0] sm:$0xff]
  %v1616 = vld [vmem:[#allocation2 + $0xe8] sm:$0xff]
  %v1617 = vld [vmem:[#allocation2 + $0xf0] sm:$0xff]
  %v1618 = vld [vmem:[#allocation2 + $0xf8] sm:$0xff]
  %v1619 = vunpack.c.l.bf16 %v1615
  %v1620 = vunpack.c.h.bf16 %v1615
  %v1621 = vunpack.c.l.bf16 %v1616
  %v1622 = vunpack.c.h.bf16 %v1616
  %v1623 = vunpack.c.l.bf16 %v1617
  %v1624 = vunpack.c.h.bf16 %v1617
  %v1625 = vunpack.c.l.bf16 %v1618
  %v1626 = vunpack.c.h.bf16 %v1618
  %v1627 = vmax.f32 %v1619, %v1623
  %v1628 = vmax.f32 %v1620, %v1624
  %v1629 = vmax.f32 %v1621, %v1625
  %v1630 = vmax.f32 %v1622, %v1626
  %v1631 = vpack.c.bf16 %v1628, %v1627
  %v1632 = vpack.c.bf16 %v1630, %v1629
  %v1633 = vld [vmem:[#allocation2 + $0x100] sm:$0xff]
  %v1634 = vld [vmem:[#allocation2 + $0x108] sm:$0xff]
  %v1635 = vunpack.c.l.bf16 %v1631
  %v1636 = vunpack.c.h.bf16 %v1631
  %v1637 = vunpack.c.l.bf16 %v1632
  %v1638 = vunpack.c.h.bf16 %v1632
  %v1639 = vunpack.c.l.bf16 %v1633
  %v1640 = vunpack.c.h.bf16 %v1633
  %v1641 = vunpack.c.l.bf16 %v1634
  %v1642 = vunpack.c.h.bf16 %v1634
  %v1643 = vmax.f32 %v1635, %v1639
  %v1644 = vmax.f32 %v1636, %v1640
  %v1645 = vmax.f32 %v1637, %v1641
  %v1646 = vmax.f32 %v1638, %v1642
  %v1647 = vpack.c.bf16 %v1644, %v1643
  %v1648 = vpack.c.bf16 %v1646, %v1645
  %1649 = vst [vmem:[#allocation3 + $0x28] sm:$0xff] %v1647
  %1650 = vst [vmem:[#allocation3 + $0x78] sm:$0xff] %v1648
  %v1651 = vld [vmem:[#allocation2 + $0x110] sm:$0xff]
  %v1652 = vld [vmem:[#allocation2 + $0x118] sm:$0xff]
  %v1653 = vld [vmem:[#allocation2 + $0x120] sm:$0xff]
  %v1654 = vld [vmem:[#allocation2 + $0x128] sm:$0xff]
  %v1655 = vunpack.c.l.bf16 %v1651
  %v1656 = vunpack.c.h.bf16 %v1651
  %v1657 = vunpack.c.l.bf16 %v1652
  %v1658 = vunpack.c.h.bf16 %v1652
  %v1659 = vunpack.c.l.bf16 %v1653
  %v1660 = vunpack.c.h.bf16 %v1653
  %v1661 = vunpack.c.l.bf16 %v1654
  %v1662 = vunpack.c.h.bf16 %v1654
  %v1663 = vmax.f32 %v1655, %v1659
  %v1664 = vmax.f32 %v1656, %v1660
  %v1665 = vmax.f32 %v1657, %v1661
  %v1666 = vmax.f32 %v1658, %v1662
  %v1667 = vpack.c.bf16 %v1664, %v1663
  %v1668 = vpack.c.bf16 %v1666, %v1665
  %v1669 = vld [vmem:[#allocation2 + $0x130] sm:$0xff]
  %v1670 = vld [vmem:[#allocation2 + $0x138] sm:$0xff]
  %v1671 = vunpack.c.l.bf16 %v1667
  %v1672 = vunpack.c.h.bf16 %v1667
  %v1673 = vunpack.c.l.bf16 %v1668
  %v1674 = vunpack.c.h.bf16 %v1668
  %v1675 = vunpack.c.l.bf16 %v1669
  %v1676 = vunpack.c.h.bf16 %v1669
  %v1677 = vunpack.c.l.bf16 %v1670
  %v1678 = vunpack.c.h.bf16 %v1670
  %v1679 = vmax.f32 %v1671, %v1675
  %v1680 = vmax.f32 %v1672, %v1676
  %v1681 = vmax.f32 %v1673, %v1677
  %v1682 = vmax.f32 %v1674, %v1678
  %v1683 = vpack.c.bf16 %v1680, %v1679
  %v1684 = vpack.c.bf16 %v1682, %v1681
  %1685 = vst [vmem:[#allocation3 + $0x30] sm:$0xff] %v1683
  %1686 = vst [vmem:[#allocation3 + $0x80] sm:$0xff] %v1684
  %v1687 = vld [vmem:[#allocation2 + $0x140] sm:$0xff]
  %v1688 = vld [vmem:[#allocation2 + $0x148] sm:$0xff]
  %v1689 = vld [vmem:[#allocation2 + $0x150] sm:$0xff]
  %v1690 = vld [vmem:[#allocation2 + $0x158] sm:$0xff]
  %v1691 = vunpack.c.l.bf16 %v1687
  %v1692 = vunpack.c.h.bf16 %v1687
  %v1693 = vunpack.c.l.bf16 %v1688
  %v1694 = vunpack.c.h.bf16 %v1688
  %v1695 = vunpack.c.l.bf16 %v1689
  %v1696 = vunpack.c.h.bf16 %v1689
  %v1697 = vunpack.c.l.bf16 %v1690
  %v1698 = vunpack.c.h.bf16 %v1690
  %v1699 = vmax.f32 %v1691, %v1695
  %v1700 = vmax.f32 %v1692, %v1696
  %v1701 = vmax.f32 %v1693, %v1697
  %v1702 = vmax.f32 %v1694, %v1698
  %v1703 = vpack.c.bf16 %v1700, %v1699
  %v1704 = vpack.c.bf16 %v1702, %v1701
  %v1705 = vld [vmem:[#allocation2 + $0x160] sm:$0xff]
  %v1706 = vld [vmem:[#allocation2 + $0x168] sm:$0xff]
  %v1707 = vunpack.c.l.bf16 %v1703
  %v1708 = vunpack.c.h.bf16 %v1703
  %v1709 = vunpack.c.l.bf16 %v1704
  %v1710 = vunpack.c.h.bf16 %v1704
  %v1711 = vunpack.c.l.bf16 %v1705
  %v1712 = vunpack.c.h.bf16 %v1705
  %v1713 = vunpack.c.l.bf16 %v1706
  %v1714 = vunpack.c.h.bf16 %v1706
  %v1715 = vmax.f32 %v1707, %v1711
  %v1716 = vmax.f32 %v1708, %v1712
  %v1717 = vmax.f32 %v1709, %v1713
  %v1718 = vmax.f32 %v1710, %v1714
  %v1719 = vpack.c.bf16 %v1716, %v1715
  %v1720 = vpack.c.bf16 %v1718, %v1717
  %1721 = vst [vmem:[#allocation3 + $0x38] sm:$0xff] %v1719
  %1722 = vst [vmem:[#allocation3 + $0x88] sm:$0xff] %v1720
  %v1723 = vld [vmem:[#allocation2 + $0x170] sm:$0xff]
  %v1724 = vld [vmem:[#allocation2 + $0x178] sm:$0xff]
  %v1725 = vld [vmem:[#allocation2 + $0x180] sm:$0xff]
  %v1726 = vld [vmem:[#allocation2 + $0x188] sm:$0xff]
  %v1727 = vunpack.c.l.bf16 %v1723
  %v1728 = vunpack.c.h.bf16 %v1723
  %v1729 = vunpack.c.l.bf16 %v1724
  %v1730 = vunpack.c.h.bf16 %v1724
  %v1731 = vunpack.c.l.bf16 %v1725
  %v1732 = vunpack.c.h.bf16 %v1725
  %v1733 = vunpack.c.l.bf16 %v1726
  %v1734 = vunpack.c.h.bf16 %v1726
  %v1735 = vmax.f32 %v1727, %v1731
  %v1736 = vmax.f32 %v1728, %v1732
  %v1737 = vmax.f32 %v1729, %v1733
  %v1738 = vmax.f32 %v1730, %v1734
  %v1739 = vpack.c.bf16 %v1736, %v1735
  %v1740 = vpack.c.bf16 %v1738, %v1737
  %v1741 = vld [vmem:[#allocation2 + $0x190] sm:$0xff]
  %v1742 = vld [vmem:[#allocation2 + $0x198] sm:$0xff]
  %v1743 = vunpack.c.l.bf16 %v1739
  %v1744 = vunpack.c.h.bf16 %v1739
  %v1745 = vunpack.c.l.bf16 %v1740
  %v1746 = vunpack.c.h.bf16 %v1740
  %v1747 = vunpack.c.l.bf16 %v1741
  %v1748 = vunpack.c.h.bf16 %v1741
  %v1749 = vunpack.c.l.bf16 %v1742
  %v1750 = vunpack.c.h.bf16 %v1742
  %v1751 = vmax.f32 %v1743, %v1747
  %v1752 = vmax.f32 %v1744, %v1748
  %v1753 = vmax.f32 %v1745, %v1749
  %v1754 = vmax.f32 %v1746, %v1750
  %v1755 = vpack.c.bf16 %v1752, %v1751
  %v1756 = vpack.c.bf16 %v1754, %v1753
  %1757 = vst [vmem:[#allocation3 + $0x40] sm:$0xff] %v1755
  %1758 = vst [vmem:[#allocation3 + $0x90] sm:$0xff] %v1756
  %v1759 = vld [vmem:[#allocation2 + $0x1a0] sm:$0xff]
  %v1760 = vld [vmem:[#allocation2 + $0x1a8] sm:$0xff]
  %v1761 = vld [vmem:[#allocation2 + $0x1b0] sm:$0xff]
  %v1762 = vld [vmem:[#allocation2 + $0x1b8] sm:$0xff]
  %v1763 = vunpack.c.l.bf16 %v1759
  %v1764 = vunpack.c.h.bf16 %v1759
  %v1765 = vunpack.c.l.bf16 %v1760
  %v1766 = vunpack.c.h.bf16 %v1760
  %v1767 = vunpack.c.l.bf16 %v1761
  %v1768 = vunpack.c.h.bf16 %v1761
  %v1769 = vunpack.c.l.bf16 %v1762
  %v1770 = vunpack.c.h.bf16 %v1762
  %v1771 = vmax.f32 %v1763, %v1767
  %v1772 = vmax.f32 %v1764, %v1768
  %v1773 = vmax.f32 %v1765, %v1769
  %v1774 = vmax.f32 %v1766, %v1770
  %v1775 = vpack.c.bf16 %v1772, %v1771
  %v1776 = vpack.c.bf16 %v1774, %v1773
  %v1777 = vld [vmem:[#allocation2 + $0x1c0] sm:$0xff]
  %v1778 = vld [vmem:[#allocation2 + $0x1c8] sm:$0xff]
  %v1779 = vunpack.c.l.bf16 %v1775
  %v1780 = vunpack.c.h.bf16 %v1775
  %v1781 = vunpack.c.l.bf16 %v1776
  %v1782 = vunpack.c.h.bf16 %v1776
  %v1783 = vunpack.c.l.bf16 %v1777
  %v1784 = vunpack.c.h.bf16 %v1777
  %v1785 = vunpack.c.l.bf16 %v1778
  %v1786 = vunpack.c.h.bf16 %v1778
  %v1787 = vmax.f32 %v1779, %v1783
  %v1788 = vmax.f32 %v1780, %v1784
  %v1789 = vmax.f32 %v1781, %v1785
  %v1790 = vmax.f32 %v1782, %v1786
  %v1791 = vpack.c.bf16 %v1788, %v1787
  %v1792 = vpack.c.bf16 %v1790, %v1789
  %1793 = vst [vmem:[#allocation3 + $0x48] sm:$0xff] %v1791
  %1794 = vst [vmem:[#allocation3 + $0x98] sm:$0xff] %v1792
  %v1795 = vld [vmem:[#allocation3] sm:$0xff]
  %v1796 = vld [vmem:[#allocation3 + $0x8] sm:$0xff]
  %v1797 = vld [vmem:[#allocation3 + $0x10] sm:$0xff]
  %v1798 = vld [vmem:[#allocation3 + $0x18] sm:$0xff]
  %v1799 = vld [vmem:[#allocation3 + $0x20] sm:$0xff]
  %v1800 = vld [vmem:[#allocation3 + $0x28] sm:$0xff]
  %v1801 = vld [vmem:[#allocation3 + $0x30] sm:$0xff]
  %v1802 = vld [vmem:[#allocation3 + $0x38] sm:$0xff]
  %v1803 = vld [vmem:[#allocation3 + $0x40] sm:$0xff]
  %v1804 = vld [vmem:[#allocation3 + $0x48] sm:$0xff]
  %v1805 = vld [vmem:[#allocation3 + $0x50] sm:$0xff]
  %v1806 = vld [vmem:[#allocation3 + $0x58] sm:$0xff]
  %v1807 = vld [vmem:[#allocation3 + $0x60] sm:$0xff]
  %v1808 = vld [vmem:[#allocation3 + $0x68] sm:$0xff]
  %v1809 = vld [vmem:[#allocation3 + $0x70] sm:$0xff]
  %v1810 = vld [vmem:[#allocation3 + $0x78] sm:$0xff]
  %v1811 = vld [vmem:[#allocation3 + $0x80] sm:$0xff]
  %v1812 = vld [vmem:[#allocation3 + $0x88] sm:$0xff]
  %v1813 = vld [vmem:[#allocation3 + $0x90] sm:$0xff]
  %v1814 = vld [vmem:[#allocation3 + $0x98] sm:$0xff]
  %v1815 = vld [vmem:[%s2] sm:$0xff]
  %v1816 = vld [vmem:[%s2 + $0x8] sm:$0xff]
  %v1817 = vld [vmem:[%s2 + $0x10] sm:$0xff]
  %v1818 = vld [vmem:[%s2 + $0x18] sm:$0xff]
  %v1819 = vld [vmem:[%s2 + $0x20] sm:$0xff]
  %v1820 = vld [vmem:[%s2 + $0x28] sm:$0xff]
  %v1821 = vld [vmem:[%s2 + $0x30] sm:$0xff]
  %v1822 = vld [vmem:[%s2 + $0x38] sm:$0xff]
  %v1823 = vld [vmem:[%s2 + $0x40] sm:$0xff]
  %v1824 = vld [vmem:[%s2 + $0x48] sm:$0xff]
  %v1825 = vld [vmem:[%s2 + $0x50] sm:$0xff]
  %v1826 = vld [vmem:[%s2 + $0x58] sm:$0xff]
  %v1827 = vld [vmem:[%s2 + $0x60] sm:$0xff]
  %v1828 = vld [vmem:[%s2 + $0x68] sm:$0xff]
  %v1829 = vld [vmem:[%s2 + $0x70] sm:$0xff]
  %v1830 = vld [vmem:[%s2 + $0x78] sm:$0xff]
  %v1831 = vld [vmem:[%s2 + $0x80] sm:$0xff]
  %v1832 = vld [vmem:[%s2 + $0x88] sm:$0xff]
  %v1833 = vld [vmem:[%s2 + $0x90] sm:$0xff]
  %v1834 = vld [vmem:[%s2 + $0x98] sm:$0xff]
  %v1835 = vld [vmem:[%s2 + $0xa0] sm:$0xff]
  %v1836 = vld [vmem:[%s2 + $0xa8] sm:$0xff]
  %v1837 = vld [vmem:[%s2 + $0xb0] sm:$0xff]
  %v1838 = vld [vmem:[%s2 + $0xb8] sm:$0xff]
  %v1839 = vld [vmem:[%s2 + $0xc0] sm:$0xff]
  %v1840 = vld [vmem:[%s2 + $0xc8] sm:$0xff]
  %v1841 = vld [vmem:[%s2 + $0xd0] sm:$0xff]
  %v1842 = vld [vmem:[%s2 + $0xd8] sm:$0xff]
  %v1843 = vld [vmem:[%s2 + $0xe0] sm:$0xff]
  %v1844 = vld [vmem:[%s2 + $0xe8] sm:$0xff]
  %v1845 = vld [vmem:[%s2 + $0xf0] sm:$0xff]
  %v1846 = vld [vmem:[%s2 + $0xf8] sm:$0xff]
  %v1847 = vld [vmem:[%s2 + $0x100] sm:$0xff]
  %v1848 = vld [vmem:[%s2 + $0x108] sm:$0xff]
  %v1849 = vld [vmem:[%s2 + $0x110] sm:$0xff]
  %v1850 = vld [vmem:[%s2 + $0x118] sm:$0xff]
  %v1851 = vld [vmem:[%s2 + $0x120] sm:$0xff]
  %v1852 = vld [vmem:[%s2 + $0x128] sm:$0xff]
  %v1853 = vld [vmem:[%s2 + $0x130] sm:$0xff]
  %v1854 = vld [vmem:[%s2 + $0x138] sm:$0xff]
  %v1855 = vld [vmem:[%s2 + $0x140] sm:$0xff]
  %v1856 = vld [vmem:[%s2 + $0x148] sm:$0xff]
  %v1857 = vld [vmem:[%s2 + $0x150] sm:$0xff]
  %v1858 = vld [vmem:[%s2 + $0x158] sm:$0xff]
  %v1859 = vld [vmem:[%s2 + $0x160] sm:$0xff]
  %v1860 = vld [vmem:[%s2 + $0x168] sm:$0xff]
  %v1861 = vld [vmem:[%s2 + $0x170] sm:$0xff]
  %v1862 = vld [vmem:[%s2 + $0x178] sm:$0xff]
  %v1863 = vld [vmem:[%s2 + $0x180] sm:$0xff]
  %v1864 = vld [vmem:[%s2 + $0x188] sm:$0xff]
  %v1865 = vld [vmem:[%s2 + $0x190] sm:$0xff]
  %v1866 = vld [vmem:[%s2 + $0x198] sm:$0xff]
  %v1867 = vld [vmem:[%s2 + $0x1a0] sm:$0xff]
  %v1868 = vld [vmem:[%s2 + $0x1a8] sm:$0xff]
  %v1869 = vld [vmem:[%s2 + $0x1b0] sm:$0xff]
  %v1870 = vld [vmem:[%s2 + $0x1b8] sm:$0xff]
  %v1871 = vld [vmem:[%s2 + $0x1c0] sm:$0xff]
  %v1872 = vld [vmem:[%s2 + $0x1c8] sm:$0xff]
  %v1873 = vld [vmem:[%s2 + $0x1d0] sm:$0xff]
  %v1874 = vld [vmem:[%s2 + $0x1d8] sm:$0xff]
  %v1875 = vld [vmem:[%s2 + $0x1e0] sm:$0xff]
  %v1876 = vld [vmem:[%s2 + $0x1e8] sm:$0xff]
  %v1877 = vld [vmem:[%s2 + $0x1f0] sm:$0xff]
  %v1878 = vld [vmem:[%s2 + $0x1f8] sm:$0xff]
  %v1879 = vld [vmem:[%s2 + $0x200] sm:$0xff]
  %v1880 = vld [vmem:[%s2 + $0x208] sm:$0xff]
  %v1881 = vld [vmem:[%s2 + $0x210] sm:$0xff]
  %v1882 = vld [vmem:[%s2 + $0x218] sm:$0xff]
  %v1883 = vld [vmem:[%s2 + $0x220] sm:$0xff]
  %v1884 = vld [vmem:[%s2 + $0x228] sm:$0xff]
  %v1885 = vld [vmem:[%s2 + $0x230] sm:$0xff]
  %v1886 = vld [vmem:[%s2 + $0x238] sm:$0xff]
  %v1887 = vld [vmem:[%s2 + $0x240] sm:$0xff]
  %v1888 = vld [vmem:[%s2 + $0x248] sm:$0xff]
  %v1889 = vld [vmem:[%s2 + $0x250] sm:$0xff]
  %v1890 = vld [vmem:[%s2 + $0x258] sm:$0xff]
  %v1891 = vld [vmem:[%s2 + $0x260] sm:$0xff]
  %v1892 = vld [vmem:[%s2 + $0x268] sm:$0xff]
  %v1893 = vld [vmem:[%s2 + $0x270] sm:$0xff]
  %v1894 = vld [vmem:[%s2 + $0x278] sm:$0xff]
  %v1895 = vld [vmem:[%s2 + $0x280] sm:$0xff]
  %v1896 = vld [vmem:[%s2 + $0x288] sm:$0xff]
  %v1897 = vld [vmem:[%s2 + $0x290] sm:$0xff]
  %v1898 = vld [vmem:[%s2 + $0x298] sm:$0xff]
  %v1899 = vld [vmem:[%s2 + $0x2a0] sm:$0xff]
  %v1900 = vld [vmem:[%s2 + $0x2a8] sm:$0xff]
  %v1901 = vld [vmem:[%s2 + $0x2b0] sm:$0xff]
  %v1902 = vld [vmem:[%s2 + $0x2b8] sm:$0xff]
  %v1903 = vld [vmem:[%s2 + $0x2c0] sm:$0xff]
  %v1904 = vld [vmem:[%s2 + $0x2c8] sm:$0xff]
  %v1905 = vld [vmem:[%s2 + $0x2d0] sm:$0xff]
  %v1906 = vld [vmem:[%s2 + $0x2d8] sm:$0xff]
  %v1907 = vld [vmem:[%s2 + $0x2e0] sm:$0xff]
  %v1908 = vld [vmem:[%s2 + $0x2e8] sm:$0xff]
  %v1909 = vld [vmem:[%s2 + $0x2f0] sm:$0xff]
  %v1910 = vld [vmem:[%s2 + $0x2f8] sm:$0xff]
  %v1911 = vld [vmem:[%s2 + $0x300] sm:$0xff]
  %v1912 = vld [vmem:[%s2 + $0x308] sm:$0xff]
  %v1913 = vld [vmem:[%s2 + $0x310] sm:$0xff]
  %v1914 = vld [vmem:[%s2 + $0x318] sm:$0xff]
  %v1915 = vld [vmem:[%s2 + $0x320] sm:$0xff]
  %v1916 = vld [vmem:[%s2 + $0x328] sm:$0xff]
  %v1917 = vld [vmem:[%s2 + $0x330] sm:$0xff]
  %v1918 = vld [vmem:[%s2 + $0x338] sm:$0xff]
  %v1919 = vld [vmem:[%s2 + $0x340] sm:$0xff]
  %v1920 = vld [vmem:[%s2 + $0x348] sm:$0xff]
  %v1921 = vld [vmem:[%s2 + $0x350] sm:$0xff]
  %v1922 = vld [vmem:[%s2 + $0x358] sm:$0xff]
  %v1923 = vld [vmem:[%s2 + $0x360] sm:$0xff]
  %v1924 = vld [vmem:[%s2 + $0x368] sm:$0xff]
  %v1925 = vld [vmem:[%s2 + $0x370] sm:$0xff]
  %v1926 = vld [vmem:[%s2 + $0x378] sm:$0xff]
  %v1927 = vld [vmem:[%s2 + $0x380] sm:$0xff]
  %v1928 = vld [vmem:[%s2 + $0x388] sm:$0xff]
  %v1929 = vld [vmem:[%s2 + $0x390] sm:$0xff]
  %v1930 = vld [vmem:[%s2 + $0x398] sm:$0xff]
  %v1931 = vld [vmem:[%s2 + $0x3a0] sm:$0xff]
  %v1932 = vld [vmem:[%s2 + $0x3a8] sm:$0xff]
  %v1933 = vld [vmem:[%s2 + $0x3b0] sm:$0xff]
  %v1934 = vld [vmem:[%s2 + $0x3b8] sm:$0xff]
  %v1935 = vld [vmem:[%s2 + $0x3c0] sm:$0xff]
  %v1936 = vld [vmem:[%s2 + $0x3c8] sm:$0xff]
  %v1937 = vld [vmem:[%s2 + $0x3d0] sm:$0xff]
  %v1938 = vld [vmem:[%s2 + $0x3d8] sm:$0xff]
  %v1939 = vld [vmem:[%s2 + $0x3e0] sm:$0xff]
  %v1940 = vld [vmem:[%s2 + $0x3e8] sm:$0xff]
  %v1941 = vld [vmem:[%s2 + $0x3f0] sm:$0xff]
  %v1942 = vld [vmem:[%s2 + $0x3f8] sm:$0xff]
  %v1943 = vld [vmem:[%s2 + $0x400] sm:$0xff]
  %v1944 = vld [vmem:[%s2 + $0x408] sm:$0xff]
  %v1945 = vld [vmem:[%s2 + $0x410] sm:$0xff]
  %v1946 = vld [vmem:[%s2 + $0x418] sm:$0xff]
  %v1947 = vld [vmem:[%s2 + $0x420] sm:$0xff]
  %v1948 = vld [vmem:[%s2 + $0x428] sm:$0xff]
  %v1949 = vld [vmem:[%s2 + $0x430] sm:$0xff]
  %v1950 = vld [vmem:[%s2 + $0x438] sm:$0xff]
  %v1951 = vld [vmem:[%s2 + $0x440] sm:$0xff]
  %v1952 = vld [vmem:[%s2 + $0x448] sm:$0xff]
  %v1953 = vld [vmem:[%s2 + $0x450] sm:$0xff]
  %v1954 = vld [vmem:[%s2 + $0x458] sm:$0xff]
  %v1955 = vld [vmem:[%s2 + $0x460] sm:$0xff]
  %v1956 = vld [vmem:[%s2 + $0x468] sm:$0xff]
  %v1957 = vld [vmem:[%s2 + $0x470] sm:$0xff]
  %v1958 = vld [vmem:[%s2 + $0x478] sm:$0xff]
  %v1959 = vld [vmem:[%s2 + $0x480] sm:$0xff]
  %v1960 = vld [vmem:[%s2 + $0x488] sm:$0xff]
  %v1961 = vld [vmem:[%s2 + $0x490] sm:$0xff]
  %v1962 = vld [vmem:[%s2 + $0x498] sm:$0xff]
  %v1963 = vld [vmem:[%s2 + $0x4a0] sm:$0xff]
  %v1964 = vld [vmem:[%s2 + $0x4a8] sm:$0xff]
  %v1965 = vld [vmem:[%s2 + $0x4b0] sm:$0xff]
  %v1966 = vld [vmem:[%s2 + $0x4b8] sm:$0xff]
  %v1967 = vld [vmem:[%s2 + $0x4c0] sm:$0xff]
  %v1968 = vld [vmem:[%s2 + $0x4c8] sm:$0xff]
  %v1969 = vld [vmem:[%s2 + $0x4d0] sm:$0xff]
  %v1970 = vld [vmem:[%s2 + $0x4d8] sm:$0xff]
  %v1971 = vld [vmem:[%s2 + $0x4e0] sm:$0xff]
  %v1972 = vld [vmem:[%s2 + $0x4e8] sm:$0xff]
  %v1973 = vld [vmem:[%s2 + $0x4f0] sm:$0xff]
  %v1974 = vld [vmem:[%s2 + $0x4f8] sm:$0xff]
  %v1975 = vld [vmem:[%s2 + $0x500] sm:$0xff]
  %v1976 = vld [vmem:[%s2 + $0x508] sm:$0xff]
  %v1977 = vld [vmem:[%s2 + $0x510] sm:$0xff]
  %v1978 = vld [vmem:[%s2 + $0x518] sm:$0xff]
  %v1979 = vld [vmem:[%s2 + $0x520] sm:$0xff]
  %v1980 = vld [vmem:[%s2 + $0x528] sm:$0xff]
  %v1981 = vld [vmem:[%s2 + $0x530] sm:$0xff]
  %v1982 = vld [vmem:[%s2 + $0x538] sm:$0xff]
  %v1983 = vld [vmem:[%s2 + $0x540] sm:$0xff]
  %v1984 = vld [vmem:[%s2 + $0x548] sm:$0xff]
  %v1985 = vld [vmem:[%s2 + $0x550] sm:$0xff]
  %v1986 = vld [vmem:[%s2 + $0x558] sm:$0xff]
  %v1987 = vld [vmem:[%s2 + $0x560] sm:$0xff]
  %v1988 = vld [vmem:[%s2 + $0x568] sm:$0xff]
  %v1989 = vld [vmem:[%s2 + $0x570] sm:$0xff]
  %v1990 = vld [vmem:[%s2 + $0x578] sm:$0xff]
  %v1991 = vld [vmem:[%s2 + $0x580] sm:$0xff]
  %v1992 = vld [vmem:[%s2 + $0x588] sm:$0xff]
  %v1993 = vld [vmem:[%s2 + $0x590] sm:$0xff]
  %v1994 = vld [vmem:[%s2 + $0x598] sm:$0xff]
  %v1995 = vld [vmem:[%s2 + $0x5a0] sm:$0xff]
  %v1996 = vld [vmem:[%s2 + $0x5a8] sm:$0xff]
  %v1997 = vld [vmem:[%s2 + $0x5b0] sm:$0xff]
  %v1998 = vld [vmem:[%s2 + $0x5b8] sm:$0xff]
  %v1999 = vld [vmem:[%s2 + $0x5c0] sm:$0xff]
  %v2000 = vld [vmem:[%s2 + $0x5c8] sm:$0xff]
  %v2001 = vld [vmem:[%s2 + $0x5d0] sm:$0xff]
  %v2002 = vld [vmem:[%s2 + $0x5d8] sm:$0xff]
  %v2003 = vld [vmem:[%s2 + $0x5e0] sm:$0xff]
  %v2004 = vld [vmem:[%s2 + $0x5e8] sm:$0xff]
  %v2005 = vld [vmem:[%s2 + $0x5f0] sm:$0xff]
  %v2006 = vld [vmem:[%s2 + $0x5f8] sm:$0xff]
  %v2007 = vld [vmem:[%s2 + $0x600] sm:$0xff]
  %v2008 = vld [vmem:[%s2 + $0x608] sm:$0xff]
  %v2009 = vld [vmem:[%s2 + $0x610] sm:$0xff]
  %v2010 = vld [vmem:[%s2 + $0x618] sm:$0xff]
  %v2011 = vld [vmem:[%s2 + $0x620] sm:$0xff]
  %v2012 = vld [vmem:[%s2 + $0x628] sm:$0xff]
  %v2013 = vld [vmem:[%s2 + $0x630] sm:$0xff]
  %v2014 = vld [vmem:[%s2 + $0x638] sm:$0xff]
  %v2015 = vld [vmem:[%s2 + $0x640] sm:$0xff]
  %v2016 = vld [vmem:[%s2 + $0x648] sm:$0xff]
  %v2017 = vld [vmem:[%s2 + $0x650] sm:$0xff]
  %v2018 = vld [vmem:[%s2 + $0x658] sm:$0xff]
  %v2019 = vld [vmem:[%s2 + $0x660] sm:$0xff]
  %v2020 = vld [vmem:[%s2 + $0x668] sm:$0xff]
  %v2021 = vld [vmem:[%s2 + $0x670] sm:$0xff]
  %v2022 = vld [vmem:[%s2 + $0x678] sm:$0xff]
  %v2023 = vld [vmem:[%s2 + $0x680] sm:$0xff]
  %v2024 = vld [vmem:[%s2 + $0x688] sm:$0xff]
  %v2025 = vld [vmem:[%s2 + $0x690] sm:$0xff]
  %v2026 = vld [vmem:[%s2 + $0x698] sm:$0xff]
  %v2027 = vld [vmem:[%s2 + $0x6a0] sm:$0xff]
  %v2028 = vld [vmem:[%s2 + $0x6a8] sm:$0xff]
  %v2029 = vld [vmem:[%s2 + $0x6b0] sm:$0xff]
  %v2030 = vld [vmem:[%s2 + $0x6b8] sm:$0xff]
  %v2031 = vld [vmem:[%s2 + $0x6c0] sm:$0xff]
  %v2032 = vld [vmem:[%s2 + $0x6c8] sm:$0xff]
  %v2033 = vld [vmem:[%s2 + $0x6d0] sm:$0xff]
  %v2034 = vld [vmem:[%s2 + $0x6d8] sm:$0xff]
  %v2035 = vld [vmem:[%s2 + $0x6e0] sm:$0xff]
  %v2036 = vld [vmem:[%s2 + $0x6e8] sm:$0xff]
  %v2037 = vld [vmem:[%s2 + $0x6f0] sm:$0xff]
  %v2038 = vld [vmem:[%s2 + $0x6f8] sm:$0xff]
  %v2039 = vld [vmem:[%s2 + $0x700] sm:$0xff]
  %v2040 = vld [vmem:[%s2 + $0x708] sm:$0xff]
  %v2041 = vld [vmem:[%s2 + $0x710] sm:$0xff]
  %v2042 = vld [vmem:[%s2 + $0x718] sm:$0xff]
  %v2043 = vld [vmem:[%s2 + $0x720] sm:$0xff]
  %v2044 = vld [vmem:[%s2 + $0x728] sm:$0xff]
  %v2045 = vld [vmem:[%s2 + $0x730] sm:$0xff]
  %v2046 = vld [vmem:[%s2 + $0x738] sm:$0xff]
  %v2047 = vld [vmem:[%s2 + $0x740] sm:$0xff]
  %v2048 = vld [vmem:[%s2 + $0x748] sm:$0xff]
  %v2049 = vld [vmem:[%s2 + $0x750] sm:$0xff]
  %v2050 = vld [vmem:[%s2 + $0x758] sm:$0xff]
  %v2051 = vld [vmem:[%s2 + $0x760] sm:$0xff]
  %v2052 = vld [vmem:[%s2 + $0x768] sm:$0xff]
  %v2053 = vld [vmem:[%s2 + $0x770] sm:$0xff]
  %v2054 = vld [vmem:[%s2 + $0x778] sm:$0xff]
  %v2055 = vld [vmem:[%s2 + $0x780] sm:$0xff]
  %v2056 = vld [vmem:[%s2 + $0x788] sm:$0xff]
  %v2057 = vld [vmem:[%s2 + $0x790] sm:$0xff]
  %v2058 = vld [vmem:[%s2 + $0x798] sm:$0xff]
  %v2059 = vld [vmem:[%s2 + $0x7a0] sm:$0xff]
  %v2060 = vld [vmem:[%s2 + $0x7a8] sm:$0xff]
  %v2061 = vld [vmem:[%s2 + $0x7b0] sm:$0xff]
  %v2062 = vld [vmem:[%s2 + $0x7b8] sm:$0xff]
  %v2063 = vld [vmem:[%s2 + $0x7c0] sm:$0xff]
  %v2064 = vld [vmem:[%s2 + $0x7c8] sm:$0xff]
  %v2065 = vld [vmem:[%s2 + $0x7d0] sm:$0xff]
  %v2066 = vld [vmem:[%s2 + $0x7d8] sm:$0xff]
  %v2067 = vld [vmem:[%s2 + $0x7e0] sm:$0xff]
  %v2068 = vld [vmem:[%s2 + $0x7e8] sm:$0xff]
  %v2069 = vld [vmem:[%s2 + $0x7f0] sm:$0xff]
  %v2070 = vld [vmem:[%s2 + $0x7f8] sm:$0xff]
  %v2071 = vld [vmem:[%s2 + $0x800] sm:$0xff]
  %v2072 = vld [vmem:[%s2 + $0x808] sm:$0xff]
  %v2073 = vld [vmem:[%s2 + $0x810] sm:$0xff]
  %v2074 = vld [vmem:[%s2 + $0x818] sm:$0xff]
  %v2075 = vld [vmem:[%s2 + $0x820] sm:$0xff]
  %v2076 = vld [vmem:[%s2 + $0x828] sm:$0xff]
  %v2077 = vld [vmem:[%s2 + $0x830] sm:$0xff]
  %v2078 = vld [vmem:[%s2 + $0x838] sm:$0xff]
  %v2079 = vld [vmem:[%s2 + $0x840] sm:$0xff]
  %v2080 = vld [vmem:[%s2 + $0x848] sm:$0xff]
  %v2081 = vld [vmem:[%s2 + $0x850] sm:$0xff]
  %v2082 = vld [vmem:[%s2 + $0x858] sm:$0xff]
  %v2083 = vld [vmem:[%s2 + $0x860] sm:$0xff]
  %v2084 = vld [vmem:[%s2 + $0x868] sm:$0xff]
  %v2085 = vld [vmem:[%s2 + $0x870] sm:$0xff]
  %v2086 = vld [vmem:[%s2 + $0x878] sm:$0xff]
  %v2087 = vld [vmem:[%s2 + $0x880] sm:$0xff]
  %v2088 = vld [vmem:[%s2 + $0x888] sm:$0xff]
  %v2089 = vld [vmem:[%s2 + $0x890] sm:$0xff]
  %v2090 = vld [vmem:[%s2 + $0x898] sm:$0xff]
  %v2091 = vld [vmem:[%s2 + $0x8a0] sm:$0xff]
  %v2092 = vld [vmem:[%s2 + $0x8a8] sm:$0xff]
  %v2093 = vld [vmem:[%s2 + $0x8b0] sm:$0xff]
  %v2094 = vld [vmem:[%s2 + $0x8b8] sm:$0xff]
  %v2095 = vld [vmem:[%s2 + $0x8c0] sm:$0xff]
  %v2096 = vld [vmem:[%s2 + $0x8c8] sm:$0xff]
  %v2097 = vld [vmem:[%s2 + $0x8d0] sm:$0xff]
  %v2098 = vld [vmem:[%s2 + $0x8d8] sm:$0xff]
  %v2099 = vld [vmem:[%s2 + $0x8e0] sm:$0xff]
  %v2100 = vld [vmem:[%s2 + $0x8e8] sm:$0xff]
  %v2101 = vld [vmem:[%s2 + $0x8f0] sm:$0xff]
  %v2102 = vld [vmem:[%s2 + $0x8f8] sm:$0xff]
  %v2103 = vld [vmem:[%s2 + $0x900] sm:$0xff]
  %v2104 = vld [vmem:[%s2 + $0x908] sm:$0xff]
  %v2105 = vld [vmem:[%s2 + $0x910] sm:$0xff]
  %v2106 = vld [vmem:[%s2 + $0x918] sm:$0xff]
  %v2107 = vld [vmem:[%s2 + $0x920] sm:$0xff]
  %v2108 = vld [vmem:[%s2 + $0x928] sm:$0xff]
  %v2109 = vld [vmem:[%s2 + $0x930] sm:$0xff]
  %v2110 = vld [vmem:[%s2 + $0x938] sm:$0xff]
  %v2111 = vld [vmem:[%s2 + $0x940] sm:$0xff]
  %v2112 = vld [vmem:[%s2 + $0x948] sm:$0xff]
  %v2113 = vld [vmem:[%s2 + $0x950] sm:$0xff]
  %v2114 = vld [vmem:[%s2 + $0x958] sm:$0xff]
  %v2115 = vld [vmem:[%s2 + $0x960] sm:$0xff]
  %v2116 = vld [vmem:[%s2 + $0x968] sm:$0xff]
  %v2117 = vld [vmem:[%s2 + $0x970] sm:$0xff]
  %v2118 = vld [vmem:[%s2 + $0x978] sm:$0xff]
  %v2119 = vld [vmem:[%s2 + $0x980] sm:$0xff]
  %v2120 = vld [vmem:[%s2 + $0x988] sm:$0xff]
  %v2121 = vld [vmem:[%s2 + $0x990] sm:$0xff]
  %v2122 = vld [vmem:[%s2 + $0x998] sm:$0xff]
  %v2123 = vld [vmem:[%s2 + $0x9a0] sm:$0xff]
  %v2124 = vld [vmem:[%s2 + $0x9a8] sm:$0xff]
  %v2125 = vld [vmem:[%s2 + $0x9b0] sm:$0xff]
  %v2126 = vld [vmem:[%s2 + $0x9b8] sm:$0xff]
  %v2127 = vld [vmem:[%s2 + $0x9c0] sm:$0xff]
  %v2128 = vld [vmem:[%s2 + $0x9c8] sm:$0xff]
  %v2129 = vld [vmem:[%s2 + $0x9d0] sm:$0xff]
  %v2130 = vld [vmem:[%s2 + $0x9d8] sm:$0xff]
  %v2131 = vld [vmem:[%s2 + $0x9e0] sm:$0xff]
  %v2132 = vld [vmem:[%s2 + $0x9e8] sm:$0xff]
  %v2133 = vld [vmem:[%s2 + $0x9f0] sm:$0xff]
  %v2134 = vld [vmem:[%s2 + $0x9f8] sm:$0xff]
  %v2135 = vld [vmem:[%s3] sm:$0x3]
  %v2137 = vperm.slane %v2135, 0
  %v2138 = vperm.slane %v2135, 1
  %v2161 = vunpack.c.l.b16 %v1795
  %v2162 = vunpack.c.h.b16 %v1795
  %v2163 = vunpack.c.l.b16 %v1796
  %v2164 = vunpack.c.h.b16 %v1796
  %v2165 = vunpack.c.l.b16 %v1797
  %v2166 = vunpack.c.h.b16 %v1797
  %v2167 = vunpack.c.l.b16 %v1798
  %v2168 = vunpack.c.h.b16 %v1798
  %v2169 = vunpack.c.l.b16 %v1799
  %v2170 = vunpack.c.h.b16 %v1799
  %v2171 = vunpack.c.l.b16 %v1800
  %v2172 = vunpack.c.h.b16 %v1800
  %v2173 = vunpack.c.l.b16 %v1801
  %v2174 = vunpack.c.h.b16 %v1801
  %v2175 = vunpack.c.l.b16 %v1802
  %v2176 = vunpack.c.h.b16 %v1802
  %v2177 = vunpack.c.l.b16 %v1803
  %v2178 = vunpack.c.h.b16 %v1803
  %v2179 = vunpack.c.l.b16 %v1804
  %v2180 = vunpack.c.h.b16 %v1804
  %v2181 = vunpack.c.l.b16 %v1805
  %v2182 = vunpack.c.h.b16 %v1805
  %v2183 = vunpack.c.l.b16 %v1806
  %v2184 = vunpack.c.h.b16 %v1806
  %v2185 = vunpack.c.l.b16 %v1807
  %v2186 = vunpack.c.h.b16 %v1807
  %v2187 = vunpack.c.l.b16 %v1808
  %v2188 = vunpack.c.h.b16 %v1808
  %v2189 = vunpack.c.l.b16 %v1809
  %v2190 = vunpack.c.h.b16 %v1809
  %v2191 = vunpack.c.l.b16 %v1810
  %v2192 = vunpack.c.h.b16 %v1810
  %v2193 = vunpack.c.l.b16 %v1811
  %v2194 = vunpack.c.h.b16 %v1811
  %v2195 = vunpack.c.l.b16 %v1812
  %v2196 = vunpack.c.h.b16 %v1812
  %v2197 = vunpack.c.l.b16 %v1813
  %v2198 = vunpack.c.h.b16 %v1813
  %v2199 = vunpack.c.l.b16 %v1814
  %v2200 = vunpack.c.h.b16 %v1814
  %v2201 = vpack.c.b16 %v2181, %v2161
  %v2202 = vpack.c.b16 %v2182, %v2162
  %v2203 = vpack.c.b16 %v2183, %v2163
  %v2204 = vpack.c.b16 %v2184, %v2164
  %v2205 = vpack.c.b16 %v2185, %v2165
  %v2206 = vpack.c.b16 %v2186, %v2166
  %v2207 = vpack.c.b16 %v2187, %v2167
  %v2208 = vpack.c.b16 %v2188, %v2168
  %v2209 = vpack.c.b16 %v2189, %v2169
  %v2210 = vpack.c.b16 %v2190, %v2170
  %v2211 = vpack.c.b16 %v2191, %v2171
  %v2212 = vpack.c.b16 %v2192, %v2172
  %v2213 = vpack.c.b16 %v2193, %v2173
  %v2214 = vpack.c.b16 %v2194, %v2174
  %v2215 = vpack.c.b16 %v2195, %v2175
  %v2216 = vpack.c.b16 %v2196, %v2176
  %v2217 = vpack.c.b16 %v2197, %v2177
  %v2218 = vpack.c.b16 %v2198, %v2178
  %v2219 = vpack.c.b16 %v2199, %v2179
  %v2220 = vpack.c.b16 %v2200, %v2180
  %v2561 = vunpack.c.l.b16 %v1815
  %v2562 = vunpack.c.h.b16 %v1815
  %v2563 = vunpack.c.l.b16 %v1816
  %v2564 = vunpack.c.h.b16 %v1816
  %v2565 = vunpack.c.l.b16 %v1817
  %v2566 = vunpack.c.h.b16 %v1817
  %v2567 = vunpack.c.l.b16 %v1818
  %v2568 = vunpack.c.h.b16 %v1818
  %v2569 = vunpack.c.l.b16 %v1819
  %v2570 = vunpack.c.h.b16 %v1819
  %v2571 = vunpack.c.l.b16 %v1820
  %v2572 = vunpack.c.h.b16 %v1820
  %v2573 = vunpack.c.l.b16 %v1821
  %v2574 = vunpack.c.h.b16 %v1821
  %v2575 = vunpack.c.l.b16 %v1822
  %v2576 = vunpack.c.h.b16 %v1822
  %v2577 = vunpack.c.l.b16 %v1823
  %v2578 = vunpack.c.h.b16 %v1823
  %v2579 = vunpack.c.l.b16 %v1824
  %v2580 = vunpack.c.h.b16 %v1824
  %v2581 = vunpack.c.l.b16 %v1825
  %v2582 = vunpack.c.h.b16 %v1825
  %v2583 = vunpack.c.l.b16 %v1826
  %v2584 = vunpack.c.h.b16 %v1826
  %v2585 = vunpack.c.l.b16 %v1827
  %v2586 = vunpack.c.h.b16 %v1827
  %v2587 = vunpack.c.l.b16 %v1828
  %v2588 = vunpack.c.h.b16 %v1828
  %v2589 = vunpack.c.l.b16 %v1829
  %v2590 = vunpack.c.h.b16 %v1829
  %v2591 = vunpack.c.l.b16 %v1830
  %v2592 = vunpack.c.h.b16 %v1830
  %v2593 = vunpack.c.l.b16 %v1831
  %v2594 = vunpack.c.h.b16 %v1831
  %v2595 = vunpack.c.l.b16 %v1832
  %v2596 = vunpack.c.h.b16 %v1832
  %v2597 = vunpack.c.l.b16 %v1833
  %v2598 = vunpack.c.h.b16 %v1833
  %v2599 = vunpack.c.l.b16 %v1834
  %v2600 = vunpack.c.h.b16 %v1834
  %v2601 = vunpack.c.l.b16 %v1835
  %v2602 = vunpack.c.h.b16 %v1835
  %v2603 = vunpack.c.l.b16 %v1836
  %v2604 = vunpack.c.h.b16 %v1836
  %v2605 = vunpack.c.l.b16 %v1837
  %v2606 = vunpack.c.h.b16 %v1837
  %v2607 = vunpack.c.l.b16 %v1838
  %v2608 = vunpack.c.h.b16 %v1838
  %v2609 = vunpack.c.l.b16 %v1839
  %v2610 = vunpack.c.h.b16 %v1839
  %v2611 = vunpack.c.l.b16 %v1840
  %v2612 = vunpack.c.h.b16 %v1840
  %v2613 = vunpack.c.l.b16 %v1841
  %v2614 = vunpack.c.h.b16 %v1841
  %v2615 = vunpack.c.l.b16 %v1842
  %v2616 = vunpack.c.h.b16 %v1842
  %v2617 = vunpack.c.l.b16 %v1843
  %v2618 = vunpack.c.h.b16 %v1843
  %v2619 = vunpack.c.l.b16 %v1844
  %v2620 = vunpack.c.h.b16 %v1844
  %v2621 = vunpack.c.l.b16 %v1845
  %v2622 = vunpack.c.h.b16 %v1845
  %v2623 = vunpack.c.l.b16 %v1846
  %v2624 = vunpack.c.h.b16 %v1846
  %v2625 = vunpack.c.l.b16 %v1847
  %v2626 = vunpack.c.h.b16 %v1847
  %v2627 = vunpack.c.l.b16 %v1848
  %v2628 = vunpack.c.h.b16 %v1848
  %v2629 = vunpack.c.l.b16 %v1849
  %v2630 = vunpack.c.h.b16 %v1849
  %v2631 = vunpack.c.l.b16 %v1850
  %v2632 = vunpack.c.h.b16 %v1850
  %v2633 = vunpack.c.l.b16 %v1851
  %v2634 = vunpack.c.h.b16 %v1851
  %v2635 = vunpack.c.l.b16 %v1852
  %v2636 = vunpack.c.h.b16 %v1852
  %v2637 = vunpack.c.l.b16 %v1853
  %v2638 = vunpack.c.h.b16 %v1853
  %v2639 = vunpack.c.l.b16 %v1854
  %v2640 = vunpack.c.h.b16 %v1854
  %v2641 = vunpack.c.l.b16 %v1855
  %v2642 = vunpack.c.h.b16 %v1855
  %v2643 = vunpack.c.l.b16 %v1856
  %v2644 = vunpack.c.h.b16 %v1856
  %v2645 = vunpack.c.l.b16 %v1857
  %v2646 = vunpack.c.h.b16 %v1857
  %v2647 = vunpack.c.l.b16 %v1858
  %v2648 = vunpack.c.h.b16 %v1858
  %v2649 = vunpack.c.l.b16 %v1859
  %v2650 = vunpack.c.h.b16 %v1859
  %v2651 = vunpack.c.l.b16 %v1860
  %v2652 = vunpack.c.h.b16 %v1860
  %v2653 = vunpack.c.l.b16 %v1861
  %v2654 = vunpack.c.h.b16 %v1861
  %v2655 = vunpack.c.l.b16 %v1862
  %v2656 = vunpack.c.h.b16 %v1862
  %v2657 = vunpack.c.l.b16 %v1863
  %v2658 = vunpack.c.h.b16 %v1863
  %v2659 = vunpack.c.l.b16 %v1864
  %v2660 = vunpack.c.h.b16 %v1864
  %v2661 = vunpack.c.l.b16 %v1865
  %v2662 = vunpack.c.h.b16 %v1865
  %v2663 = vunpack.c.l.b16 %v1866
  %v2664 = vunpack.c.h.b16 %v1866
  %v2665 = vunpack.c.l.b16 %v1867
  %v2666 = vunpack.c.h.b16 %v1867
  %v2667 = vunpack.c.l.b16 %v1868
  %v2668 = vunpack.c.h.b16 %v1868
  %v2669 = vunpack.c.l.b16 %v1869
  %v2670 = vunpack.c.h.b16 %v1869
  %v2671 = vunpack.c.l.b16 %v1870
  %v2672 = vunpack.c.h.b16 %v1870
  %v2673 = vunpack.c.l.b16 %v1871
  %v2674 = vunpack.c.h.b16 %v1871
  %v2675 = vunpack.c.l.b16 %v1872
  %v2676 = vunpack.c.h.b16 %v1872
  %v2677 = vunpack.c.l.b16 %v1873
  %v2678 = vunpack.c.h.b16 %v1873
  %v2679 = vunpack.c.l.b16 %v1874
  %v2680 = vunpack.c.h.b16 %v1874
  %v2681 = vunpack.c.l.b16 %v1875
  %v2682 = vunpack.c.h.b16 %v1875
  %v2683 = vunpack.c.l.b16 %v1876
  %v2684 = vunpack.c.h.b16 %v1876
  %v2685 = vunpack.c.l.b16 %v1877
  %v2686 = vunpack.c.h.b16 %v1877
  %v2687 = vunpack.c.l.b16 %v1878
  %v2688 = vunpack.c.h.b16 %v1878
  %v2689 = vunpack.c.l.b16 %v1879
  %v2690 = vunpack.c.h.b16 %v1879
  %v2691 = vunpack.c.l.b16 %v1880
  %v2692 = vunpack.c.h.b16 %v1880
  %v2693 = vunpack.c.l.b16 %v1881
  %v2694 = vunpack.c.h.b16 %v1881
  %v2695 = vunpack.c.l.b16 %v1882
  %v2696 = vunpack.c.h.b16 %v1882
  %v2697 = vunpack.c.l.b16 %v1883
  %v2698 = vunpack.c.h.b16 %v1883
  %v2699 = vunpack.c.l.b16 %v1884
  %v2700 = vunpack.c.h.b16 %v1884
  %v2701 = vunpack.c.l.b16 %v1885
  %v2702 = vunpack.c.h.b16 %v1885
  %v2703 = vunpack.c.l.b16 %v1886
  %v2704 = vunpack.c.h.b16 %v1886
  %v2705 = vunpack.c.l.b16 %v1887
  %v2706 = vunpack.c.h.b16 %v1887
  %v2707 = vunpack.c.l.b16 %v1888
  %v2708 = vunpack.c.h.b16 %v1888
  %v2709 = vunpack.c.l.b16 %v1889
  %v2710 = vunpack.c.h.b16 %v1889
  %v2711 = vunpack.c.l.b16 %v1890
  %v2712 = vunpack.c.h.b16 %v1890
  %v2713 = vunpack.c.l.b16 %v1891
  %v2714 = vunpack.c.h.b16 %v1891
  %v2715 = vunpack.c.l.b16 %v1892
  %v2716 = vunpack.c.h.b16 %v1892
  %v2717 = vunpack.c.l.b16 %v1893
  %v2718 = vunpack.c.h.b16 %v1893
  %v2719 = vunpack.c.l.b16 %v1894
  %v2720 = vunpack.c.h.b16 %v1894
  %v2721 = vunpack.c.l.b16 %v1895
  %v2722 = vunpack.c.h.b16 %v1895
  %v2723 = vunpack.c.l.b16 %v1896
  %v2724 = vunpack.c.h.b16 %v1896
  %v2725 = vunpack.c.l.b16 %v1897
  %v2726 = vunpack.c.h.b16 %v1897
  %v2727 = vunpack.c.l.b16 %v1898
  %v2728 = vunpack.c.h.b16 %v1898
  %v2729 = vunpack.c.l.b16 %v1899
  %v2730 = vunpack.c.h.b16 %v1899
  %v2731 = vunpack.c.l.b16 %v1900
  %v2732 = vunpack.c.h.b16 %v1900
  %v2733 = vunpack.c.l.b16 %v1901
  %v2734 = vunpack.c.h.b16 %v1901
  %v2735 = vunpack.c.l.b16 %v1902
  %v2736 = vunpack.c.h.b16 %v1902
  %v2737 = vunpack.c.l.b16 %v1903
  %v2738 = vunpack.c.h.b16 %v1903
  %v2739 = vunpack.c.l.b16 %v1904
  %v2740 = vunpack.c.h.b16 %v1904
  %v2741 = vunpack.c.l.b16 %v1905
  %v2742 = vunpack.c.h.b16 %v1905
  %v2743 = vunpack.c.l.b16 %v1906
  %v2744 = vunpack.c.h.b16 %v1906
  %v2745 = vunpack.c.l.b16 %v1907
  %v2746 = vunpack.c.h.b16 %v1907
  %v2747 = vunpack.c.l.b16 %v1908
  %v2748 = vunpack.c.h.b16 %v1908
  %v2749 = vunpack.c.l.b16 %v1909
  %v2750 = vunpack.c.h.b16 %v1909
  %v2751 = vunpack.c.l.b16 %v1910
  %v2752 = vunpack.c.h.b16 %v1910
  %v2753 = vunpack.c.l.b16 %v1911
  %v2754 = vunpack.c.h.b16 %v1911
  %v2755 = vunpack.c.l.b16 %v1912
  %v2756 = vunpack.c.h.b16 %v1912
  %v2757 = vunpack.c.l.b16 %v1913
  %v2758 = vunpack.c.h.b16 %v1913
  %v2759 = vunpack.c.l.b16 %v1914
  %v2760 = vunpack.c.h.b16 %v1914
  %v2761 = vunpack.c.l.b16 %v1915
  %v2762 = vunpack.c.h.b16 %v1915
  %v2763 = vunpack.c.l.b16 %v1916
  %v2764 = vunpack.c.h.b16 %v1916
  %v2765 = vunpack.c.l.b16 %v1917
  %v2766 = vunpack.c.h.b16 %v1917
  %v2767 = vunpack.c.l.b16 %v1918
  %v2768 = vunpack.c.h.b16 %v1918
  %v2769 = vunpack.c.l.b16 %v1919
  %v2770 = vunpack.c.h.b16 %v1919
  %v2771 = vunpack.c.l.b16 %v1920
  %v2772 = vunpack.c.h.b16 %v1920
  %v2773 = vunpack.c.l.b16 %v1921
  %v2774 = vunpack.c.h.b16 %v1921
  %v2775 = vunpack.c.l.b16 %v1922
  %v2776 = vunpack.c.h.b16 %v1922
  %v2777 = vunpack.c.l.b16 %v1923
  %v2778 = vunpack.c.h.b16 %v1923
  %v2779 = vunpack.c.l.b16 %v1924
  %v2780 = vunpack.c.h.b16 %v1924
  %v2781 = vunpack.c.l.b16 %v1925
  %v2782 = vunpack.c.h.b16 %v1925
  %v2783 = vunpack.c.l.b16 %v1926
  %v2784 = vunpack.c.h.b16 %v1926
  %v2785 = vunpack.c.l.b16 %v1927
  %v2786 = vunpack.c.h.b16 %v1927
  %v2787 = vunpack.c.l.b16 %v1928
  %v2788 = vunpack.c.h.b16 %v1928
  %v2789 = vunpack.c.l.b16 %v1929
  %v2790 = vunpack.c.h.b16 %v1929
  %v2791 = vunpack.c.l.b16 %v1930
  %v2792 = vunpack.c.h.b16 %v1930
  %v2793 = vunpack.c.l.b16 %v1931
  %v2794 = vunpack.c.h.b16 %v1931
  %v2795 = vunpack.c.l.b16 %v1932
  %v2796 = vunpack.c.h.b16 %v1932
  %v2797 = vunpack.c.l.b16 %v1933
  %v2798 = vunpack.c.h.b16 %v1933
  %v2799 = vunpack.c.l.b16 %v1934
  %v2800 = vunpack.c.h.b16 %v1934
  %v2801 = vunpack.c.l.b16 %v1935
  %v2802 = vunpack.c.h.b16 %v1935
  %v2803 = vunpack.c.l.b16 %v1936
  %v2804 = vunpack.c.h.b16 %v1936
  %v2805 = vunpack.c.l.b16 %v1937
  %v2806 = vunpack.c.h.b16 %v1937
  %v2807 = vunpack.c.l.b16 %v1938
  %v2808 = vunpack.c.h.b16 %v1938
  %v2809 = vunpack.c.l.b16 %v1939
  %v2810 = vunpack.c.h.b16 %v1939
  %v2811 = vunpack.c.l.b16 %v1940
  %v2812 = vunpack.c.h.b16 %v1940
  %v2813 = vunpack.c.l.b16 %v1941
  %v2814 = vunpack.c.h.b16 %v1941
  %v2815 = vunpack.c.l.b16 %v1942
  %v2816 = vunpack.c.h.b16 %v1942
  %v2817 = vunpack.c.l.b16 %v1943
  %v2818 = vunpack.c.h.b16 %v1943
  %v2819 = vunpack.c.l.b16 %v1944
  %v2820 = vunpack.c.h.b16 %v1944
  %v2821 = vunpack.c.l.b16 %v1945
  %v2822 = vunpack.c.h.b16 %v1945
  %v2823 = vunpack.c.l.b16 %v1946
  %v2824 = vunpack.c.h.b16 %v1946
  %v2825 = vunpack.c.l.b16 %v1947
  %v2826 = vunpack.c.h.b16 %v1947
  %v2827 = vunpack.c.l.b16 %v1948
  %v2828 = vunpack.c.h.b16 %v1948
  %v2829 = vunpack.c.l.b16 %v1949
  %v2830 = vunpack.c.h.b16 %v1949
  %v2831 = vunpack.c.l.b16 %v1950
  %v2832 = vunpack.c.h.b16 %v1950
  %v2833 = vunpack.c.l.b16 %v1951
  %v2834 = vunpack.c.h.b16 %v1951
  %v2835 = vunpack.c.l.b16 %v1952
  %v2836 = vunpack.c.h.b16 %v1952
  %v2837 = vunpack.c.l.b16 %v1953
  %v2838 = vunpack.c.h.b16 %v1953
  %v2839 = vunpack.c.l.b16 %v1954
  %v2840 = vunpack.c.h.b16 %v1954
  %v2841 = vunpack.c.l.b16 %v1955
  %v2842 = vunpack.c.h.b16 %v1955
  %v2843 = vunpack.c.l.b16 %v1956
  %v2844 = vunpack.c.h.b16 %v1956
  %v2845 = vunpack.c.l.b16 %v1957
  %v2846 = vunpack.c.h.b16 %v1957
  %v2847 = vunpack.c.l.b16 %v1958
  %v2848 = vunpack.c.h.b16 %v1958
  %v2849 = vunpack.c.l.b16 %v1959
  %v2850 = vunpack.c.h.b16 %v1959
  %v2851 = vunpack.c.l.b16 %v1960
  %v2852 = vunpack.c.h.b16 %v1960
  %v2853 = vunpack.c.l.b16 %v1961
  %v2854 = vunpack.c.h.b16 %v1961
  %v2855 = vunpack.c.l.b16 %v1962
  %v2856 = vunpack.c.h.b16 %v1962
  %v2857 = vunpack.c.l.b16 %v1963
  %v2858 = vunpack.c.h.b16 %v1963
  %v2859 = vunpack.c.l.b16 %v1964
  %v2860 = vunpack.c.h.b16 %v1964
  %v2861 = vunpack.c.l.b16 %v1965
  %v2862 = vunpack.c.h.b16 %v1965
  %v2863 = vunpack.c.l.b16 %v1966
  %v2864 = vunpack.c.h.b16 %v1966
  %v2865 = vunpack.c.l.b16 %v1967
  %v2866 = vunpack.c.h.b16 %v1967
  %v2867 = vunpack.c.l.b16 %v1968
  %v2868 = vunpack.c.h.b16 %v1968
  %v2869 = vunpack.c.l.b16 %v1969
  %v2870 = vunpack.c.h.b16 %v1969
  %v2871 = vunpack.c.l.b16 %v1970
  %v2872 = vunpack.c.h.b16 %v1970
  %v2873 = vunpack.c.l.b16 %v1971
  %v2874 = vunpack.c.h.b16 %v1971
  %v2875 = vunpack.c.l.b16 %v1972
  %v2876 = vunpack.c.h.b16 %v1972
  %v2877 = vunpack.c.l.b16 %v1973
  %v2878 = vunpack.c.h.b16 %v1973
  %v2879 = vunpack.c.l.b16 %v1974
  %v2880 = vunpack.c.h.b16 %v1974
  %v2881 = vunpack.c.l.b16 %v1975
  %v2882 = vunpack.c.h.b16 %v1975
  %v2883 = vunpack.c.l.b16 %v1976
  %v2884 = vunpack.c.h.b16 %v1976
  %v2885 = vunpack.c.l.b16 %v1977
  %v2886 = vunpack.c.h.b16 %v1977
  %v2887 = vunpack.c.l.b16 %v1978
  %v2888 = vunpack.c.h.b16 %v1978
  %v2889 = vunpack.c.l.b16 %v1979
  %v2890 = vunpack.c.h.b16 %v1979
  %v2891 = vunpack.c.l.b16 %v1980
  %v2892 = vunpack.c.h.b16 %v1980
  %v2893 = vunpack.c.l.b16 %v1981
  %v2894 = vunpack.c.h.b16 %v1981
  %v2895 = vunpack.c.l.b16 %v1982
  %v2896 = vunpack.c.h.b16 %v1982
  %v2897 = vunpack.c.l.b16 %v1983
  %v2898 = vunpack.c.h.b16 %v1983
  %v2899 = vunpack.c.l.b16 %v1984
  %v2900 = vunpack.c.h.b16 %v1984
  %v2901 = vunpack.c.l.b16 %v1985
  %v2902 = vunpack.c.h.b16 %v1985
  %v2903 = vunpack.c.l.b16 %v1986
  %v2904 = vunpack.c.h.b16 %v1986
  %v2905 = vunpack.c.l.b16 %v1987
  %v2906 = vunpack.c.h.b16 %v1987
  %v2907 = vunpack.c.l.b16 %v1988
  %v2908 = vunpack.c.h.b16 %v1988
  %v2909 = vunpack.c.l.b16 %v1989
  %v2910 = vunpack.c.h.b16 %v1989
  %v2911 = vunpack.c.l.b16 %v1990
  %v2912 = vunpack.c.h.b16 %v1990
  %v2913 = vunpack.c.l.b16 %v1991
  %v2914 = vunpack.c.h.b16 %v1991
  %v2915 = vunpack.c.l.b16 %v1992
  %v2916 = vunpack.c.h.b16 %v1992
  %v2917 = vunpack.c.l.b16 %v1993
  %v2918 = vunpack.c.h.b16 %v1993
  %v2919 = vunpack.c.l.b16 %v1994
  %v2920 = vunpack.c.h.b16 %v1994
  %v2921 = vunpack.c.l.b16 %v1995
  %v2922 = vunpack.c.h.b16 %v1995
  %v2923 = vunpack.c.l.b16 %v1996
  %v2924 = vunpack.c.h.b16 %v1996
  %v2925 = vunpack.c.l.b16 %v1997
  %v2926 = vunpack.c.h.b16 %v1997
  %v2927 = vunpack.c.l.b16 %v1998
  %v2928 = vunpack.c.h.b16 %v1998
  %v2929 = vunpack.c.l.b16 %v1999
  %v2930 = vunpack.c.h.b16 %v1999
  %v2931 = vunpack.c.l.b16 %v2000
  %v2932 = vunpack.c.h.b16 %v2000
  %v2933 = vunpack.c.l.b16 %v2001
  %v2934 = vunpack.c.h.b16 %v2001
  %v2935 = vunpack.c.l.b16 %v2002
  %v2936 = vunpack.c.h.b16 %v2002
  %v2937 = vunpack.c.l.b16 %v2003
  %v2938 = vunpack.c.h.b16 %v2003
  %v2939 = vunpack.c.l.b16 %v2004
  %v2940 = vunpack.c.h.b16 %v2004
  %v2941 = vunpack.c.l.b16 %v2005
  %v2942 = vunpack.c.h.b16 %v2005
  %v2943 = vunpack.c.l.b16 %v2006
  %v2944 = vunpack.c.h.b16 %v2006
  %v2945 = vunpack.c.l.b16 %v2007
  %v2946 = vunpack.c.h.b16 %v2007
  %v2947 = vunpack.c.l.b16 %v2008
  %v2948 = vunpack.c.h.b16 %v2008
  %v2949 = vunpack.c.l.b16 %v2009
  %v2950 = vunpack.c.h.b16 %v2009
  %v2951 = vunpack.c.l.b16 %v2010
  %v2952 = vunpack.c.h.b16 %v2010
  %v2953 = vunpack.c.l.b16 %v2011
  %v2954 = vunpack.c.h.b16 %v2011
  %v2955 = vunpack.c.l.b16 %v2012
  %v2956 = vunpack.c.h.b16 %v2012
  %v2957 = vunpack.c.l.b16 %v2013
  %v2958 = vunpack.c.h.b16 %v2013
  %v2959 = vunpack.c.l.b16 %v2014
  %v2960 = vunpack.c.h.b16 %v2014
  %v2961 = vunpack.c.l.b16 %v2015
  %v2962 = vunpack.c.h.b16 %v2015
  %v2963 = vunpack.c.l.b16 %v2016
  %v2964 = vunpack.c.h.b16 %v2016
  %v2965 = vunpack.c.l.b16 %v2017
  %v2966 = vunpack.c.h.b16 %v2017
  %v2967 = vunpack.c.l.b16 %v2018
  %v2968 = vunpack.c.h.b16 %v2018
  %v2969 = vunpack.c.l.b16 %v2019
  %v2970 = vunpack.c.h.b16 %v2019
  %v2971 = vunpack.c.l.b16 %v2020
  %v2972 = vunpack.c.h.b16 %v2020
  %v2973 = vunpack.c.l.b16 %v2021
  %v2974 = vunpack.c.h.b16 %v2021
  %v2975 = vunpack.c.l.b16 %v2022
  %v2976 = vunpack.c.h.b16 %v2022
  %v2977 = vunpack.c.l.b16 %v2023
  %v2978 = vunpack.c.h.b16 %v2023
  %v2979 = vunpack.c.l.b16 %v2024
  %v2980 = vunpack.c.h.b16 %v2024
  %v2981 = vunpack.c.l.b16 %v2025
  %v2982 = vunpack.c.h.b16 %v2025
  %v2983 = vunpack.c.l.b16 %v2026
  %v2984 = vunpack.c.h.b16 %v2026
  %v2985 = vunpack.c.l.b16 %v2027
  %v2986 = vunpack.c.h.b16 %v2027
  %v2987 = vunpack.c.l.b16 %v2028
  %v2988 = vunpack.c.h.b16 %v2028
  %v2989 = vunpack.c.l.b16 %v2029
  %v2990 = vunpack.c.h.b16 %v2029
  %v2991 = vunpack.c.l.b16 %v2030
  %v2992 = vunpack.c.h.b16 %v2030
  %v2993 = vunpack.c.l.b16 %v2031
  %v2994 = vunpack.c.h.b16 %v2031
  %v2995 = vunpack.c.l.b16 %v2032
  %v2996 = vunpack.c.h.b16 %v2032
  %v2997 = vunpack.c.l.b16 %v2033
  %v2998 = vunpack.c.h.b16 %v2033
  %v2999 = vunpack.c.l.b16 %v2034
  %v3000 = vunpack.c.h.b16 %v2034
  %v3001 = vunpack.c.l.b16 %v2035
  %v3002 = vunpack.c.h.b16 %v2035
  %v3003 = vunpack.c.l.b16 %v2036
  %v3004 = vunpack.c.h.b16 %v2036
  %v3005 = vunpack.c.l.b16 %v2037
  %v3006 = vunpack.c.h.b16 %v2037
  %v3007 = vunpack.c.l.b16 %v2038
  %v3008 = vunpack.c.h.b16 %v2038
  %v3009 = vunpack.c.l.b16 %v2039
  %v3010 = vunpack.c.h.b16 %v2039
  %v3011 = vunpack.c.l.b16 %v2040
  %v3012 = vunpack.c.h.b16 %v2040
  %v3013 = vunpack.c.l.b16 %v2041
  %v3014 = vunpack.c.h.b16 %v2041
  %v3015 = vunpack.c.l.b16 %v2042
  %v3016 = vunpack.c.h.b16 %v2042
  %v3017 = vunpack.c.l.b16 %v2043
  %v3018 = vunpack.c.h.b16 %v2043
  %v3019 = vunpack.c.l.b16 %v2044
  %v3020 = vunpack.c.h.b16 %v2044
  %v3021 = vunpack.c.l.b16 %v2045
  %v3022 = vunpack.c.h.b16 %v2045
  %v3023 = vunpack.c.l.b16 %v2046
  %v3024 = vunpack.c.h.b16 %v2046
  %v3025 = vunpack.c.l.b16 %v2047
  %v3026 = vunpack.c.h.b16 %v2047
  %v3027 = vunpack.c.l.b16 %v2048
  %v3028 = vunpack.c.h.b16 %v2048
  %v3029 = vunpack.c.l.b16 %v2049
  %v3030 = vunpack.c.h.b16 %v2049
  %v3031 = vunpack.c.l.b16 %v2050
  %v3032 = vunpack.c.h.b16 %v2050
  %v3033 = vunpack.c.l.b16 %v2051
  %v3034 = vunpack.c.h.b16 %v2051
  %v3035 = vunpack.c.l.b16 %v2052
  %v3036 = vunpack.c.h.b16 %v2052
  %v3037 = vunpack.c.l.b16 %v2053
  %v3038 = vunpack.c.h.b16 %v2053
  %v3039 = vunpack.c.l.b16 %v2054
  %v3040 = vunpack.c.h.b16 %v2054
  %v3041 = vunpack.c.l.b16 %v2055
  %v3042 = vunpack.c.h.b16 %v2055
  %v3043 = vunpack.c.l.b16 %v2056
  %v3044 = vunpack.c.h.b16 %v2056
  %v3045 = vunpack.c.l.b16 %v2057
  %v3046 = vunpack.c.h.b16 %v2057
  %v3047 = vunpack.c.l.b16 %v2058
  %v3048 = vunpack.c.h.b16 %v2058
  %v3049 = vunpack.c.l.b16 %v2059
  %v3050 = vunpack.c.h.b16 %v2059
  %v3051 = vunpack.c.l.b16 %v2060
  %v3052 = vunpack.c.h.b16 %v2060
  %v3053 = vunpack.c.l.b16 %v2061
  %v3054 = vunpack.c.h.b16 %v2061
  %v3055 = vunpack.c.l.b16 %v2062
  %v3056 = vunpack.c.h.b16 %v2062
  %v3057 = vunpack.c.l.b16 %v2063
  %v3058 = vunpack.c.h.b16 %v2063
  %v3059 = vunpack.c.l.b16 %v2064
  %v3060 = vunpack.c.h.b16 %v2064
  %v3061 = vunpack.c.l.b16 %v2065
  %v3062 = vunpack.c.h.b16 %v2065
  %v3063 = vunpack.c.l.b16 %v2066
  %v3064 = vunpack.c.h.b16 %v2066
  %v3065 = vunpack.c.l.b16 %v2067
  %v3066 = vunpack.c.h.b16 %v2067
  %v3067 = vunpack.c.l.b16 %v2068
  %v3068 = vunpack.c.h.b16 %v2068
  %v3069 = vunpack.c.l.b16 %v2069
  %v3070 = vunpack.c.h.b16 %v2069
  %v3071 = vunpack.c.l.b16 %v2070
  %v3072 = vunpack.c.h.b16 %v2070
  %v3073 = vunpack.c.l.b16 %v2071
  %v3074 = vunpack.c.h.b16 %v2071
  %v3075 = vunpack.c.l.b16 %v2072
  %v3076 = vunpack.c.h.b16 %v2072
  %v3077 = vunpack.c.l.b16 %v2073
  %v3078 = vunpack.c.h.b16 %v2073
  %v3079 = vunpack.c.l.b16 %v2074
  %v3080 = vunpack.c.h.b16 %v2074
  %v3081 = vunpack.c.l.b16 %v2075
  %v3082 = vunpack.c.h.b16 %v2075
  %v3083 = vunpack.c.l.b16 %v2076
  %v3084 = vunpack.c.h.b16 %v2076
  %v3085 = vunpack.c.l.b16 %v2077
  %v3086 = vunpack.c.h.b16 %v2077
  %v3087 = vunpack.c.l.b16 %v2078
  %v3088 = vunpack.c.h.b16 %v2078
  %v3089 = vunpack.c.l.b16 %v2079
  %v3090 = vunpack.c.h.b16 %v2079
  %v3091 = vunpack.c.l.b16 %v2080
  %v3092 = vunpack.c.h.b16 %v2080
  %v3093 = vunpack.c.l.b16 %v2081
  %v3094 = vunpack.c.h.b16 %v2081
  %v3095 = vunpack.c.l.b16 %v2082
  %v3096 = vunpack.c.h.b16 %v2082
  %v3097 = vunpack.c.l.b16 %v2083
  %v3098 = vunpack.c.h.b16 %v2083
  %v3099 = vunpack.c.l.b16 %v2084
  %v3100 = vunpack.c.h.b16 %v2084
  %v3101 = vunpack.c.l.b16 %v2085
  %v3102 = vunpack.c.h.b16 %v2085
  %v3103 = vunpack.c.l.b16 %v2086
  %v3104 = vunpack.c.h.b16 %v2086
  %v3105 = vunpack.c.l.b16 %v2087
  %v3106 = vunpack.c.h.b16 %v2087
  %v3107 = vunpack.c.l.b16 %v2088
  %v3108 = vunpack.c.h.b16 %v2088
  %v3109 = vunpack.c.l.b16 %v2089
  %v3110 = vunpack.c.h.b16 %v2089
  %v3111 = vunpack.c.l.b16 %v2090
  %v3112 = vunpack.c.h.b16 %v2090
  %v3113 = vunpack.c.l.b16 %v2091
  %v3114 = vunpack.c.h.b16 %v2091
  %v3115 = vunpack.c.l.b16 %v2092
  %v3116 = vunpack.c.h.b16 %v2092
  %v3117 = vunpack.c.l.b16 %v2093
  %v3118 = vunpack.c.h.b16 %v2093
  %v3119 = vunpack.c.l.b16 %v2094
  %v3120 = vunpack.c.h.b16 %v2094
  %v3121 = vunpack.c.l.b16 %v2095
  %v3122 = vunpack.c.h.b16 %v2095
  %v3123 = vunpack.c.l.b16 %v2096
  %v3124 = vunpack.c.h.b16 %v2096
  %v3125 = vunpack.c.l.b16 %v2097
  %v3126 = vunpack.c.h.b16 %v2097
  %v3127 = vunpack.c.l.b16 %v2098
  %v3128 = vunpack.c.h.b16 %v2098
  %v3129 = vunpack.c.l.b16 %v2099
  %v3130 = vunpack.c.h.b16 %v2099
  %v3131 = vunpack.c.l.b16 %v2100
  %v3132 = vunpack.c.h.b16 %v2100
  %v3133 = vunpack.c.l.b16 %v2101
  %v3134 = vunpack.c.h.b16 %v2101
  %v3135 = vunpack.c.l.b16 %v2102
  %v3136 = vunpack.c.h.b16 %v2102
  %v3137 = vunpack.c.l.b16 %v2103
  %v3138 = vunpack.c.h.b16 %v2103
  %v3139 = vunpack.c.l.b16 %v2104
  %v3140 = vunpack.c.h.b16 %v2104
  %v3141 = vunpack.c.l.b16 %v2105
  %v3142 = vunpack.c.h.b16 %v2105
  %v3143 = vunpack.c.l.b16 %v2106
  %v3144 = vunpack.c.h.b16 %v2106
  %v3145 = vunpack.c.l.b16 %v2107
  %v3146 = vunpack.c.h.b16 %v2107
  %v3147 = vunpack.c.l.b16 %v2108
  %v3148 = vunpack.c.h.b16 %v2108
  %v3149 = vunpack.c.l.b16 %v2109
  %v3150 = vunpack.c.h.b16 %v2109
  %v3151 = vunpack.c.l.b16 %v2110
  %v3152 = vunpack.c.h.b16 %v2110
  %v3153 = vunpack.c.l.b16 %v2111
  %v3154 = vunpack.c.h.b16 %v2111
  %v3155 = vunpack.c.l.b16 %v2112
  %v3156 = vunpack.c.h.b16 %v2112
  %v3157 = vunpack.c.l.b16 %v2113
  %v3158 = vunpack.c.h.b16 %v2113
  %v3159 = vunpack.c.l.b16 %v2114
  %v3160 = vunpack.c.h.b16 %v2114
  %v3161 = vunpack.c.l.b16 %v2115
  %v3162 = vunpack.c.h.b16 %v2115
  %v3163 = vunpack.c.l.b16 %v2116
  %v3164 = vunpack.c.h.b16 %v2116
  %v3165 = vunpack.c.l.b16 %v2117
  %v3166 = vunpack.c.h.b16 %v2117
  %v3167 = vunpack.c.l.b16 %v2118
  %v3168 = vunpack.c.h.b16 %v2118
  %v3169 = vunpack.c.l.b16 %v2119
  %v3170 = vunpack.c.h.b16 %v2119
  %v3171 = vunpack.c.l.b16 %v2120
  %v3172 = vunpack.c.h.b16 %v2120
  %v3173 = vunpack.c.l.b16 %v2121
  %v3174 = vunpack.c.h.b16 %v2121
  %v3175 = vunpack.c.l.b16 %v2122
  %v3176 = vunpack.c.h.b16 %v2122
  %v3177 = vunpack.c.l.b16 %v2123
  %v3178 = vunpack.c.h.b16 %v2123
  %v3179 = vunpack.c.l.b16 %v2124
  %v3180 = vunpack.c.h.b16 %v2124
  %v3181 = vunpack.c.l.b16 %v2125
  %v3182 = vunpack.c.h.b16 %v2125
  %v3183 = vunpack.c.l.b16 %v2126
  %v3184 = vunpack.c.h.b16 %v2126
  %v3185 = vunpack.c.l.b16 %v2127
  %v3186 = vunpack.c.h.b16 %v2127
  %v3187 = vunpack.c.l.b16 %v2128
  %v3188 = vunpack.c.h.b16 %v2128
  %v3189 = vunpack.c.l.b16 %v2129
  %v3190 = vunpack.c.h.b16 %v2129
  %v3191 = vunpack.c.l.b16 %v2130
  %v3192 = vunpack.c.h.b16 %v2130
  %v3193 = vunpack.c.l.b16 %v2131
  %v3194 = vunpack.c.h.b16 %v2131
  %v3195 = vunpack.c.l.b16 %v2132
  %v3196 = vunpack.c.h.b16 %v2132
  %v3197 = vunpack.c.l.b16 %v2133
  %v3198 = vunpack.c.h.b16 %v2133
  %v3199 = vunpack.c.l.b16 %v2134
  %v3200 = vunpack.c.h.b16 %v2134
  %v3201 = vpack.c.b16 %v2563, %v2561
  %v3202 = vpack.c.b16 %v2564, %v2562
  %v3203 = vpack.c.b16 %v2567, %v2565
  %v3204 = vpack.c.b16 %v2568, %v2566
  %v3205 = vpack.c.b16 %v2571, %v2569
  %v3206 = vpack.c.b16 %v2572, %v2570
  %v3207 = vpack.c.b16 %v2575, %v2573
  %v3208 = vpack.c.b16 %v2576, %v2574
  %v3209 = vpack.c.b16 %v2579, %v2577
  %v3210 = vpack.c.b16 %v2580, %v2578
  %v3211 = vpack.c.b16 %v2583, %v2581
  %v3212 = vpack.c.b16 %v2584, %v2582
  %v3213 = vpack.c.b16 %v2587, %v2585
  %v3214 = vpack.c.b16 %v2588, %v2586
  %v3215 = vpack.c.b16 %v2591, %v2589
  %v3216 = vpack.c.b16 %v2592, %v2590
  %v3217 = vpack.c.b16 %v2595, %v2593
  %v3218 = vpack.c.b16 %v2596, %v2594
  %v3219 = vpack.c.b16 %v2599, %v2597
  %v3220 = vpack.c.b16 %v2600, %v2598
  %v3221 = vpack.c.b16 %v2603, %v2601
  %v3222 = vpack.c.b16 %v2604, %v2602
  %v3223 = vpack.c.b16 %v2607, %v2605
  %v3224 = vpack.c.b16 %v2608, %v2606
  %v3225 = vpack.c.b16 %v2611, %v2609
  %v3226 = vpack.c.b16 %v2612, %v2610
  %v3227 = vpack.c.b16 %v2615, %v2613
  %v3228 = vpack.c.b16 %v2616, %v2614
  %v3229 = vpack.c.b16 %v2619, %v2617
  %v3230 = vpack.c.b16 %v2620, %v2618
  %v3231 = vpack.c.b16 %v2623, %v2621
  %v3232 = vpack.c.b16 %v2624, %v2622
  %v3233 = vpack.c.b16 %v2627, %v2625
  %v3234 = vpack.c.b16 %v2628, %v2626
  %v3235 = vpack.c.b16 %v2631, %v2629
  %v3236 = vpack.c.b16 %v2632, %v2630
  %v3237 = vpack.c.b16 %v2635, %v2633
  %v3238 = vpack.c.b16 %v2636, %v2634
  %v3239 = vpack.c.b16 %v2639, %v2637
  %v3240 = vpack.c.b16 %v2640, %v2638
  %v3241 = vpack.c.b16 %v2643, %v2641
  %v3242 = vpack.c.b16 %v2644, %v2642
  %v3243 = vpack.c.b16 %v2647, %v2645
  %v3244 = vpack.c.b16 %v2648, %v2646
  %v3245 = vpack.c.b16 %v2651, %v2649
  %v3246 = vpack.c.b16 %v2652, %v2650
  %v3247 = vpack.c.b16 %v2655, %v2653
  %v3248 = vpack.c.b16 %v2656, %v2654
  %v3249 = vpack.c.b16 %v2659, %v2657
  %v3250 = vpack.c.b16 %v2660, %v2658
  %v3251 = vpack.c.b16 %v2663, %v2661
  %v3252 = vpack.c.b16 %v2664, %v2662
  %v3253 = vpack.c.b16 %v2667, %v2665
  %v3254 = vpack.c.b16 %v2668, %v2666
  %v3255 = vpack.c.b16 %v2671, %v2669
  %v3256 = vpack.c.b16 %v2672, %v2670
  %v3257 = vpack.c.b16 %v2675, %v2673
  %v3258 = vpack.c.b16 %v2676, %v2674
  %v3259 = vpack.c.b16 %v2679, %v2677
  %v3260 = vpack.c.b16 %v2680, %v2678
  %v3261 = vpack.c.b16 %v2683, %v2681
  %v3262 = vpack.c.b16 %v2684, %v2682
  %v3263 = vpack.c.b16 %v2687, %v2685
  %v3264 = vpack.c.b16 %v2688, %v2686
  %v3265 = vpack.c.b16 %v2691, %v2689
  %v3266 = vpack.c.b16 %v2692, %v2690
  %v3267 = vpack.c.b16 %v2695, %v2693
  %v3268 = vpack.c.b16 %v2696, %v2694
  %v3269 = vpack.c.b16 %v2699, %v2697
  %v3270 = vpack.c.b16 %v2700, %v2698
  %v3271 = vpack.c.b16 %v2703, %v2701
  %v3272 = vpack.c.b16 %v2704, %v2702
  %v3273 = vpack.c.b16 %v2707, %v2705
  %v3274 = vpack.c.b16 %v2708, %v2706
  %v3275 = vpack.c.b16 %v2711, %v2709
  %v3276 = vpack.c.b16 %v2712, %v2710
  %v3277 = vpack.c.b16 %v2715, %v2713
  %v3278 = vpack.c.b16 %v2716, %v2714
  %v3279 = vpack.c.b16 %v2719, %v2717
  %v3280 = vpack.c.b16 %v2720, %v2718
  %v3281 = vpack.c.b16 %v2723, %v2721
  %v3282 = vpack.c.b16 %v2724, %v2722
  %v3283 = vpack.c.b16 %v2727, %v2725
  %v3284 = vpack.c.b16 %v2728, %v2726
  %v3285 = vpack.c.b16 %v2731, %v2729
  %v3286 = vpack.c.b16 %v2732, %v2730
  %v3287 = vpack.c.b16 %v2735, %v2733
  %v3288 = vpack.c.b16 %v2736, %v2734
  %v3289 = vpack.c.b16 %v2739, %v2737
  %v3290 = vpack.c.b16 %v2740, %v2738
  %v3291 = vpack.c.b16 %v2743, %v2741
  %v3292 = vpack.c.b16 %v2744, %v2742
  %v3293 = vpack.c.b16 %v2747, %v2745
  %v3294 = vpack.c.b16 %v2748, %v2746
  %v3295 = vpack.c.b16 %v2751, %v2749
  %v3296 = vpack.c.b16 %v2752, %v2750
  %v3297 = vpack.c.b16 %v2755, %v2753
  %v3298 = vpack.c.b16 %v2756, %v2754
  %v3299 = vpack.c.b16 %v2759, %v2757
  %v3300 = vpack.c.b16 %v2760, %v2758
  %v3301 = vpack.c.b16 %v2763, %v2761
  %v3302 = vpack.c.b16 %v2764, %v2762
  %v3303 = vpack.c.b16 %v2767, %v2765
  %v3304 = vpack.c.b16 %v2768, %v2766
  %v3305 = vpack.c.b16 %v2771, %v2769
  %v3306 = vpack.c.b16 %v2772, %v2770
  %v3307 = vpack.c.b16 %v2775, %v2773
  %v3308 = vpack.c.b16 %v2776, %v2774
  %v3309 = vpack.c.b16 %v2779, %v2777
  %v3310 = vpack.c.b16 %v2780, %v2778
  %v3311 = vpack.c.b16 %v2783, %v2781
  %v3312 = vpack.c.b16 %v2784, %v2782
  %v3313 = vpack.c.b16 %v2787, %v2785
  %v3314 = vpack.c.b16 %v2788, %v2786
  %v3315 = vpack.c.b16 %v2791, %v2789
  %v3316 = vpack.c.b16 %v2792, %v2790
  %v3317 = vpack.c.b16 %v2795, %v2793
  %v3318 = vpack.c.b16 %v2796, %v2794
  %v3319 = vpack.c.b16 %v2799, %v2797
  %v3320 = vpack.c.b16 %v2800, %v2798
  %v3321 = vpack.c.b16 %v2803, %v2801
  %v3322 = vpack.c.b16 %v2804, %v2802
  %v3323 = vpack.c.b16 %v2807, %v2805
  %v3324 = vpack.c.b16 %v2808, %v2806
  %v3325 = vpack.c.b16 %v2811, %v2809
  %v3326 = vpack.c.b16 %v2812, %v2810
  %v3327 = vpack.c.b16 %v2815, %v2813
  %v3328 = vpack.c.b16 %v2816, %v2814
  %v3329 = vpack.c.b16 %v2819, %v2817
  %v3330 = vpack.c.b16 %v2820, %v2818
  %v3331 = vpack.c.b16 %v2823, %v2821
  %v3332 = vpack.c.b16 %v2824, %v2822
  %v3333 = vpack.c.b16 %v2827, %v2825
  %v3334 = vpack.c.b16 %v2828, %v2826
  %v3335 = vpack.c.b16 %v2831, %v2829
  %v3336 = vpack.c.b16 %v2832, %v2830
  %v3337 = vpack.c.b16 %v2835, %v2833
  %v3338 = vpack.c.b16 %v2836, %v2834
  %v3339 = vpack.c.b16 %v2839, %v2837
  %v3340 = vpack.c.b16 %v2840, %v2838
  %v3341 = vpack.c.b16 %v2843, %v2841
  %v3342 = vpack.c.b16 %v2844, %v2842
  %v3343 = vpack.c.b16 %v2847, %v2845
  %v3344 = vpack.c.b16 %v2848, %v2846
  %v3345 = vpack.c.b16 %v2851, %v2849
  %v3346 = vpack.c.b16 %v2852, %v2850
  %v3347 = vpack.c.b16 %v2855, %v2853
  %v3348 = vpack.c.b16 %v2856, %v2854
  %v3349 = vpack.c.b16 %v2859, %v2857
  %v3350 = vpack.c.b16 %v2860, %v2858
  %v3351 = vpack.c.b16 %v2863, %v2861
  %v3352 = vpack.c.b16 %v2864, %v2862
  %v3353 = vpack.c.b16 %v2867, %v2865
  %v3354 = vpack.c.b16 %v2868, %v2866
  %v3355 = vpack.c.b16 %v2871, %v2869
  %v3356 = vpack.c.b16 %v2872, %v2870
  %v3357 = vpack.c.b16 %v2875, %v2873
  %v3358 = vpack.c.b16 %v2876, %v2874
  %v3359 = vpack.c.b16 %v2879, %v2877
  %v3360 = vpack.c.b16 %v2880, %v2878
  %v3361 = vpack.c.b16 %v2883, %v2881
  %v3362 = vpack.c.b16 %v2884, %v2882
  %v3363 = vpack.c.b16 %v2887, %v2885
  %v3364 = vpack.c.b16 %v2888, %v2886
  %v3365 = vpack.c.b16 %v2891, %v2889
  %v3366 = vpack.c.b16 %v2892, %v2890
  %v3367 = vpack.c.b16 %v2895, %v2893
  %v3368 = vpack.c.b16 %v2896, %v2894
  %v3369 = vpack.c.b16 %v2899, %v2897
  %v3370 = vpack.c.b16 %v2900, %v2898
  %v3371 = vpack.c.b16 %v2903, %v2901
  %v3372 = vpack.c.b16 %v2904, %v2902
  %v3373 = vpack.c.b16 %v2907, %v2905
  %v3374 = vpack.c.b16 %v2908, %v2906
  %v3375 = vpack.c.b16 %v2911, %v2909
  %v3376 = vpack.c.b16 %v2912, %v2910
  %v3377 = vpack.c.b16 %v2915, %v2913
  %v3378 = vpack.c.b16 %v2916, %v2914
  %v3379 = vpack.c.b16 %v2919, %v2917
  %v3380 = vpack.c.b16 %v2920, %v2918
  %v3381 = vpack.c.b16 %v2923, %v2921
  %v3382 = vpack.c.b16 %v2924, %v2922
  %v3383 = vpack.c.b16 %v2927, %v2925
  %v3384 = vpack.c.b16 %v2928, %v2926
  %v3385 = vpack.c.b16 %v2931, %v2929
  %v3386 = vpack.c.b16 %v2932, %v2930
  %v3387 = vpack.c.b16 %v2935, %v2933
  %v3388 = vpack.c.b16 %v2936, %v2934
  %v3389 = vpack.c.b16 %v2939, %v2937
  %v3390 = vpack.c.b16 %v2940, %v2938
  %v3391 = vpack.c.b16 %v2943, %v2941
  %v3392 = vpack.c.b16 %v2944, %v2942
  %v3393 = vpack.c.b16 %v2947, %v2945
  %v3394 = vpack.c.b16 %v2948, %v2946
  %v3395 = vpack.c.b16 %v2951, %v2949
  %v3396 = vpack.c.b16 %v2952, %v2950
  %v3397 = vpack.c.b16 %v2955, %v2953
  %v3398 = vpack.c.b16 %v2956, %v2954
  %v3399 = vpack.c.b16 %v2959, %v2957
  %v3400 = vpack.c.b16 %v2960, %v2958
  %v3401 = vpack.c.b16 %v2963, %v2961
  %v3402 = vpack.c.b16 %v2964, %v2962
  %v3403 = vpack.c.b16 %v2967, %v2965
  %v3404 = vpack.c.b16 %v2968, %v2966
  %v3405 = vpack.c.b16 %v2971, %v2969
  %v3406 = vpack.c.b16 %v2972, %v2970
  %v3407 = vpack.c.b16 %v2975, %v2973
  %v3408 = vpack.c.b16 %v2976, %v2974
  %v3409 = vpack.c.b16 %v2979, %v2977
  %v3410 = vpack.c.b16 %v2980, %v2978
  %v3411 = vpack.c.b16 %v2983, %v2981
  %v3412 = vpack.c.b16 %v2984, %v2982
  %v3413 = vpack.c.b16 %v2987, %v2985
  %v3414 = vpack.c.b16 %v2988, %v2986
  %v3415 = vpack.c.b16 %v2991, %v2989
  %v3416 = vpack.c.b16 %v2992, %v2990
  %v3417 = vpack.c.b16 %v2995, %v2993
  %v3418 = vpack.c.b16 %v2996, %v2994
  %v3419 = vpack.c.b16 %v2999, %v2997
  %v3420 = vpack.c.b16 %v3000, %v2998
  %v3421 = vpack.c.b16 %v3003, %v3001
  %v3422 = vpack.c.b16 %v3004, %v3002
  %v3423 = vpack.c.b16 %v3007, %v3005
  %v3424 = vpack.c.b16 %v3008, %v3006
  %v3425 = vpack.c.b16 %v3011, %v3009
  %v3426 = vpack.c.b16 %v3012, %v3010
  %v3427 = vpack.c.b16 %v3015, %v3013
  %v3428 = vpack.c.b16 %v3016, %v3014
  %v3429 = vpack.c.b16 %v3019, %v3017
  %v3430 = vpack.c.b16 %v3020, %v3018
  %v3431 = vpack.c.b16 %v3023, %v3021
  %v3432 = vpack.c.b16 %v3024, %v3022
  %v3433 = vpack.c.b16 %v3027, %v3025
  %v3434 = vpack.c.b16 %v3028, %v3026
  %v3435 = vpack.c.b16 %v3031, %v3029
  %v3436 = vpack.c.b16 %v3032, %v3030
  %v3437 = vpack.c.b16 %v3035, %v3033
  %v3438 = vpack.c.b16 %v3036, %v3034
  %v3439 = vpack.c.b16 %v3039, %v3037
  %v3440 = vpack.c.b16 %v3040, %v3038
  %v3441 = vpack.c.b16 %v3043, %v3041
  %v3442 = vpack.c.b16 %v3044, %v3042
  %v3443 = vpack.c.b16 %v3047, %v3045
  %v3444 = vpack.c.b16 %v3048, %v3046
  %v3445 = vpack.c.b16 %v3051, %v3049
  %v3446 = vpack.c.b16 %v3052, %v3050
  %v3447 = vpack.c.b16 %v3055, %v3053
  %v3448 = vpack.c.b16 %v3056, %v3054
  %v3449 = vpack.c.b16 %v3059, %v3057
  %v3450 = vpack.c.b16 %v3060, %v3058
  %v3451 = vpack.c.b16 %v3063, %v3061
  %v3452 = vpack.c.b16 %v3064, %v3062
  %v3453 = vpack.c.b16 %v3067, %v3065
  %v3454 = vpack.c.b16 %v3068, %v3066
  %v3455 = vpack.c.b16 %v3071, %v3069
  %v3456 = vpack.c.b16 %v3072, %v3070
  %v3457 = vpack.c.b16 %v3075, %v3073
  %v3458 = vpack.c.b16 %v3076, %v3074
  %v3459 = vpack.c.b16 %v3079, %v3077
  %v3460 = vpack.c.b16 %v3080, %v3078
  %v3461 = vpack.c.b16 %v3083, %v3081
  %v3462 = vpack.c.b16 %v3084, %v3082
  %v3463 = vpack.c.b16 %v3087, %v3085
  %v3464 = vpack.c.b16 %v3088, %v3086
  %v3465 = vpack.c.b16 %v3091, %v3089
  %v3466 = vpack.c.b16 %v3092, %v3090
  %v3467 = vpack.c.b16 %v3095, %v3093
  %v3468 = vpack.c.b16 %v3096, %v3094
  %v3469 = vpack.c.b16 %v3099, %v3097
  %v3470 = vpack.c.b16 %v3100, %v3098
  %v3471 = vpack.c.b16 %v3103, %v3101
  %v3472 = vpack.c.b16 %v3104, %v3102
  %v3473 = vpack.c.b16 %v3107, %v3105
  %v3474 = vpack.c.b16 %v3108, %v3106
  %v3475 = vpack.c.b16 %v3111, %v3109
  %v3476 = vpack.c.b16 %v3112, %v3110
  %v3477 = vpack.c.b16 %v3115, %v3113
  %v3478 = vpack.c.b16 %v3116, %v3114
  %v3479 = vpack.c.b16 %v3119, %v3117
  %v3480 = vpack.c.b16 %v3120, %v3118
  %v3481 = vpack.c.b16 %v3123, %v3121
  %v3482 = vpack.c.b16 %v3124, %v3122
  %v3483 = vpack.c.b16 %v3127, %v3125
  %v3484 = vpack.c.b16 %v3128, %v3126
  %v3485 = vpack.c.b16 %v3131, %v3129
  %v3486 = vpack.c.b16 %v3132, %v3130
  %v3487 = vpack.c.b16 %v3135, %v3133
  %v3488 = vpack.c.b16 %v3136, %v3134
  %v3489 = vpack.c.b16 %v3139, %v3137
  %v3490 = vpack.c.b16 %v3140, %v3138
  %v3491 = vpack.c.b16 %v3143, %v3141
  %v3492 = vpack.c.b16 %v3144, %v3142
  %v3493 = vpack.c.b16 %v3147, %v3145
  %v3494 = vpack.c.b16 %v3148, %v3146
  %v3495 = vpack.c.b16 %v3151, %v3149
  %v3496 = vpack.c.b16 %v3152, %v3150
  %v3497 = vpack.c.b16 %v3155, %v3153
  %v3498 = vpack.c.b16 %v3156, %v3154
  %v3499 = vpack.c.b16 %v3159, %v3157
  %v3500 = vpack.c.b16 %v3160, %v3158
  %v3501 = vpack.c.b16 %v3163, %v3161
  %v3502 = vpack.c.b16 %v3164, %v3162
  %v3503 = vpack.c.b16 %v3167, %v3165
  %v3504 = vpack.c.b16 %v3168, %v3166
  %v3505 = vpack.c.b16 %v3171, %v3169
  %v3506 = vpack.c.b16 %v3172, %v3170
  %v3507 = vpack.c.b16 %v3175, %v3173
  %v3508 = vpack.c.b16 %v3176, %v3174
  %v3509 = vpack.c.b16 %v3179, %v3177
  %v3510 = vpack.c.b16 %v3180, %v3178
  %v3511 = vpack.c.b16 %v3183, %v3181
  %v3512 = vpack.c.b16 %v3184, %v3182
  %v3513 = vpack.c.b16 %v3187, %v3185
  %v3514 = vpack.c.b16 %v3188, %v3186
  %v3515 = vpack.c.b16 %v3191, %v3189
  %v3516 = vpack.c.b16 %v3192, %v3190
  %v3517 = vpack.c.b16 %v3195, %v3193
  %v3518 = vpack.c.b16 %v3196, %v3194
  %v3519 = vpack.c.b16 %v3199, %v3197
  %v3520 = vpack.c.b16 %v3200, %v3198
  %3841 = vmatpush.bf16.msra.mxu0 %v3215
  %3842 = vmatpush.bf16.msra.mxu0 %v3213
  %3843 = vmatpush.bf16.msra.mxu0 %v3211
  %3844 = vmatpush.bf16.msra.mxu0 %v3209
  %3845 = vmatpush.bf16.msra.mxu0 %v3207
  %3846 = vmatpush.bf16.msra.mxu0 %v3205
  %3847 = vmatpush.bf16.msra.mxu0 %v3203
  %3848 = vmatpush.bf16.msra.mxu0 %v3201
  %3849 = vmatmul.bf16.gmra.mxu0 %v2201
  %v3850 = vpop.f32.mrf.mxu0
  %v3851 = vadd.f32 %v2137, %v3850
  %v3852 = vpop.f32.mrf.mxu0
  %v3853 = vadd.f32 %v2137, %v3852
  %3854 = vdwg.mxu0
  %3855 = vmatpush.bf16.msra.mxu0 %v3231
  %3856 = vmatpush.bf16.msra.mxu0 %v3229
  %3857 = vmatpush.bf16.msra.mxu0 %v3227
  %3858 = vmatpush.bf16.msra.mxu0 %v3225
  %3859 = vmatpush.bf16.msra.mxu0 %v3223
  %3860 = vmatpush.bf16.msra.mxu0 %v3221
  %3861 = vmatpush.bf16.msra.mxu0 %v3219
  %3862 = vmatpush.bf16.msra.mxu0 %v3217
  %3863 = vmatmul.bf16.gmra.mxu0 %v2202
  %v3864 = vpop.f32.mrf.mxu0
  %v3865 = vadd.f32 %v3851, %v3864
  %v3866 = vpop.f32.mrf.mxu0
  %v3867 = vadd.f32 %v3853, %v3866
  %3868 = vdwg.mxu0
  %3869 = vmatpush.bf16.msra.mxu0 %v3247
  %3870 = vmatpush.bf16.msra.mxu0 %v3245
  %3871 = vmatpush.bf16.msra.mxu0 %v3243
  %3872 = vmatpush.bf16.msra.mxu0 %v3241
  %3873 = vmatpush.bf16.msra.mxu0 %v3239
  %3874 = vmatpush.bf16.msra.mxu0 %v3237
  %3875 = vmatpush.bf16.msra.mxu0 %v3235
  %3876 = vmatpush.bf16.msra.mxu0 %v3233
  %3877 = vmatmul.bf16.gmra.mxu0 %v2203
  %v3878 = vpop.f32.mrf.mxu0
  %v3879 = vadd.f32 %v3865, %v3878
  %v3880 = vpop.f32.mrf.mxu0
  %v3881 = vadd.f32 %v3867, %v3880
  %3882 = vdwg.mxu0
  %3883 = vmatpush.bf16.msra.mxu0 %v3263
  %3884 = vmatpush.bf16.msra.mxu0 %v3261
  %3885 = vmatpush.bf16.msra.mxu0 %v3259
  %3886 = vmatpush.bf16.msra.mxu0 %v3257
  %3887 = vmatpush.bf16.msra.mxu0 %v3255
  %3888 = vmatpush.bf16.msra.mxu0 %v3253
  %3889 = vmatpush.bf16.msra.mxu0 %v3251
  %3890 = vmatpush.bf16.msra.mxu0 %v3249
  %3891 = vmatmul.bf16.gmra.mxu0 %v2204
  %v3892 = vpop.f32.mrf.mxu0
  %v3893 = vadd.f32 %v3879, %v3892
  %v3894 = vpop.f32.mrf.mxu0
  %v3895 = vadd.f32 %v3881, %v3894
  %3896 = vdwg.mxu0
  %3897 = vmatpush.bf16.msra.mxu0 %v3279
  %3898 = vmatpush.bf16.msra.mxu0 %v3277
  %3899 = vmatpush.bf16.msra.mxu0 %v3275
  %3900 = vmatpush.bf16.msra.mxu0 %v3273
  %3901 = vmatpush.bf16.msra.mxu0 %v3271
  %3902 = vmatpush.bf16.msra.mxu0 %v3269
  %3903 = vmatpush.bf16.msra.mxu0 %v3267
  %3904 = vmatpush.bf16.msra.mxu0 %v3265
  %3905 = vmatmul.bf16.gmra.mxu0 %v2205
  %v3906 = vpop.f32.mrf.mxu0
  %v3907 = vadd.f32 %v3893, %v3906
  %v3908 = vpop.f32.mrf.mxu0
  %v3909 = vadd.f32 %v3895, %v3908
  %3910 = vdwg.mxu0
  %3911 = vmatpush.bf16.msra.mxu0 %v3295
  %3912 = vmatpush.bf16.msra.mxu0 %v3293
  %3913 = vmatpush.bf16.msra.mxu0 %v3291
  %3914 = vmatpush.bf16.msra.mxu0 %v3289
  %3915 = vmatpush.bf16.msra.mxu0 %v3287
  %3916 = vmatpush.bf16.msra.mxu0 %v3285
  %3917 = vmatpush.bf16.msra.mxu0 %v3283
  %3918 = vmatpush.bf16.msra.mxu0 %v3281
  %3919 = vmatmul.bf16.gmra.mxu0 %v2206
  %v3920 = vpop.f32.mrf.mxu0
  %v3921 = vadd.f32 %v3907, %v3920
  %v3922 = vpop.f32.mrf.mxu0
  %v3923 = vadd.f32 %v3909, %v3922
  %3924 = vdwg.mxu0
  %3925 = vmatpush.bf16.msra.mxu0 %v3311
  %3926 = vmatpush.bf16.msra.mxu0 %v3309
  %3927 = vmatpush.bf16.msra.mxu0 %v3307
  %3928 = vmatpush.bf16.msra.mxu0 %v3305
  %3929 = vmatpush.bf16.msra.mxu0 %v3303
  %3930 = vmatpush.bf16.msra.mxu0 %v3301
  %3931 = vmatpush.bf16.msra.mxu0 %v3299
  %3932 = vmatpush.bf16.msra.mxu0 %v3297
  %3933 = vmatmul.bf16.gmra.mxu0 %v2207
  %v3934 = vpop.f32.mrf.mxu0
  %v3935 = vadd.f32 %v3921, %v3934
  %v3936 = vpop.f32.mrf.mxu0
  %v3937 = vadd.f32 %v3923, %v3936
  %3938 = vdwg.mxu0
  %3939 = vmatpush.bf16.msra.mxu0 %v3327
  %3940 = vmatpush.bf16.msra.mxu0 %v3325
  %3941 = vmatpush.bf16.msra.mxu0 %v3323
  %3942 = vmatpush.bf16.msra.mxu0 %v3321
  %3943 = vmatpush.bf16.msra.mxu0 %v3319
  %3944 = vmatpush.bf16.msra.mxu0 %v3317
  %3945 = vmatpush.bf16.msra.mxu0 %v3315
  %3946 = vmatpush.bf16.msra.mxu0 %v3313
  %3947 = vmatmul.bf16.gmra.mxu0 %v2208
  %v3948 = vpop.f32.mrf.mxu0
  %v3949 = vadd.f32 %v3935, %v3948
  %v3950 = vpop.f32.mrf.mxu0
  %v3951 = vadd.f32 %v3937, %v3950
  %3952 = vdwg.mxu0
  %3953 = vmatpush.bf16.msra.mxu0 %v3343
  %3954 = vmatpush.bf16.msra.mxu0 %v3341
  %3955 = vmatpush.bf16.msra.mxu0 %v3339
  %3956 = vmatpush.bf16.msra.mxu0 %v3337
  %3957 = vmatpush.bf16.msra.mxu0 %v3335
  %3958 = vmatpush.bf16.msra.mxu0 %v3333
  %3959 = vmatpush.bf16.msra.mxu0 %v3331
  %3960 = vmatpush.bf16.msra.mxu0 %v3329
  %3961 = vmatmul.bf16.gmra.mxu0 %v2209
  %v3962 = vpop.f32.mrf.mxu0
  %v3963 = vadd.f32 %v3949, %v3962
  %v3964 = vpop.f32.mrf.mxu0
  %v3965 = vadd.f32 %v3951, %v3964
  %3966 = vdwg.mxu0
  %3967 = vmatpush.bf16.msra.mxu0 %v3359
  %3968 = vmatpush.bf16.msra.mxu0 %v3357
  %3969 = vmatpush.bf16.msra.mxu0 %v3355
  %3970 = vmatpush.bf16.msra.mxu0 %v3353
  %3971 = vmatpush.bf16.msra.mxu0 %v3351
  %3972 = vmatpush.bf16.msra.mxu0 %v3349
  %3973 = vmatpush.bf16.msra.mxu0 %v3347
  %3974 = vmatpush.bf16.msra.mxu0 %v3345
  %3975 = vmatmul.bf16.gmra.mxu0 %v2210
  %v3976 = vpop.f32.mrf.mxu0
  %v3977 = vadd.f32 %v3963, %v3976
  %v3978 = vpop.f32.mrf.mxu0
  %v3979 = vadd.f32 %v3965, %v3978
  %3980 = vdwg.mxu0
  %3981 = vmatpush.bf16.msra.mxu0 %v3375
  %3982 = vmatpush.bf16.msra.mxu0 %v3373
  %3983 = vmatpush.bf16.msra.mxu0 %v3371
  %3984 = vmatpush.bf16.msra.mxu0 %v3369
  %3985 = vmatpush.bf16.msra.mxu0 %v3367
  %3986 = vmatpush.bf16.msra.mxu0 %v3365
  %3987 = vmatpush.bf16.msra.mxu0 %v3363
  %3988 = vmatpush.bf16.msra.mxu0 %v3361
  %3989 = vmatmul.bf16.gmra.mxu0 %v2211
  %v3990 = vpop.f32.mrf.mxu0
  %v3991 = vadd.f32 %v3977, %v3990
  %v3992 = vpop.f32.mrf.mxu0
  %v3993 = vadd.f32 %v3979, %v3992
  %3994 = vdwg.mxu0
  %3995 = vmatpush.bf16.msra.mxu0 %v3391
  %3996 = vmatpush.bf16.msra.mxu0 %v3389
  %3997 = vmatpush.bf16.msra.mxu0 %v3387
  %3998 = vmatpush.bf16.msra.mxu0 %v3385
  %3999 = vmatpush.bf16.msra.mxu0 %v3383
  %4000 = vmatpush.bf16.msra.mxu0 %v3381
  %4001 = vmatpush.bf16.msra.mxu0 %v3379
  %4002 = vmatpush.bf16.msra.mxu0 %v3377
  %4003 = vmatmul.bf16.gmra.mxu0 %v2212
  %v4004 = vpop.f32.mrf.mxu0
  %v4005 = vadd.f32 %v3991, %v4004
  %v4006 = vpop.f32.mrf.mxu0
  %v4007 = vadd.f32 %v3993, %v4006
  %4008 = vdwg.mxu0
  %4009 = vmatpush.bf16.msra.mxu0 %v3407
  %4010 = vmatpush.bf16.msra.mxu0 %v3405
  %4011 = vmatpush.bf16.msra.mxu0 %v3403
  %4012 = vmatpush.bf16.msra.mxu0 %v3401
  %4013 = vmatpush.bf16.msra.mxu0 %v3399
  %4014 = vmatpush.bf16.msra.mxu0 %v3397
  %4015 = vmatpush.bf16.msra.mxu0 %v3395
  %4016 = vmatpush.bf16.msra.mxu0 %v3393
  %4017 = vmatmul.bf16.gmra.mxu0 %v2213
  %v4018 = vpop.f32.mrf.mxu0
  %v4019 = vadd.f32 %v4005, %v4018
  %v4020 = vpop.f32.mrf.mxu0
  %v4021 = vadd.f32 %v4007, %v4020
  %4022 = vdwg.mxu0
  %4023 = vmatpush.bf16.msra.mxu0 %v3423
  %4024 = vmatpush.bf16.msra.mxu0 %v3421
  %4025 = vmatpush.bf16.msra.mxu0 %v3419
  %4026 = vmatpush.bf16.msra.mxu0 %v3417
  %4027 = vmatpush.bf16.msra.mxu0 %v3415
  %4028 = vmatpush.bf16.msra.mxu0 %v3413
  %4029 = vmatpush.bf16.msra.mxu0 %v3411
  %4030 = vmatpush.bf16.msra.mxu0 %v3409
  %4031 = vmatmul.bf16.gmra.mxu0 %v2214
  %v4032 = vpop.f32.mrf.mxu0
  %v4033 = vadd.f32 %v4019, %v4032
  %v4034 = vpop.f32.mrf.mxu0
  %v4035 = vadd.f32 %v4021, %v4034
  %4036 = vdwg.mxu0
  %4037 = vmatpush.bf16.msra.mxu0 %v3439
  %4038 = vmatpush.bf16.msra.mxu0 %v3437
  %4039 = vmatpush.bf16.msra.mxu0 %v3435
  %4040 = vmatpush.bf16.msra.mxu0 %v3433
  %4041 = vmatpush.bf16.msra.mxu0 %v3431
  %4042 = vmatpush.bf16.msra.mxu0 %v3429
  %4043 = vmatpush.bf16.msra.mxu0 %v3427
  %4044 = vmatpush.bf16.msra.mxu0 %v3425
  %4045 = vmatmul.bf16.gmra.mxu0 %v2215
  %v4046 = vpop.f32.mrf.mxu0
  %v4047 = vadd.f32 %v4033, %v4046
  %v4048 = vpop.f32.mrf.mxu0
  %v4049 = vadd.f32 %v4035, %v4048
  %4050 = vdwg.mxu0
  %4051 = vmatpush.bf16.msra.mxu0 %v3455
  %4052 = vmatpush.bf16.msra.mxu0 %v3453
  %4053 = vmatpush.bf16.msra.mxu0 %v3451
  %4054 = vmatpush.bf16.msra.mxu0 %v3449
  %4055 = vmatpush.bf16.msra.mxu0 %v3447
  %4056 = vmatpush.bf16.msra.mxu0 %v3445
  %4057 = vmatpush.bf16.msra.mxu0 %v3443
  %4058 = vmatpush.bf16.msra.mxu0 %v3441
  %4059 = vmatmul.bf16.gmra.mxu0 %v2216
  %v4060 = vpop.f32.mrf.mxu0
  %v4061 = vadd.f32 %v4047, %v4060
  %v4062 = vpop.f32.mrf.mxu0
  %v4063 = vadd.f32 %v4049, %v4062
  %4064 = vdwg.mxu0
  %4065 = vmatpush.bf16.msra.mxu0 %v3471
  %4066 = vmatpush.bf16.msra.mxu0 %v3469
  %4067 = vmatpush.bf16.msra.mxu0 %v3467
  %4068 = vmatpush.bf16.msra.mxu0 %v3465
  %4069 = vmatpush.bf16.msra.mxu0 %v3463
  %4070 = vmatpush.bf16.msra.mxu0 %v3461
  %4071 = vmatpush.bf16.msra.mxu0 %v3459
  %4072 = vmatpush.bf16.msra.mxu0 %v3457
  %4073 = vmatmul.bf16.gmra.mxu0 %v2217
  %v4074 = vpop.f32.mrf.mxu0
  %v4075 = vadd.f32 %v4061, %v4074
  %v4076 = vpop.f32.mrf.mxu0
  %v4077 = vadd.f32 %v4063, %v4076
  %4078 = vdwg.mxu0
  %4079 = vmatpush.bf16.msra.mxu0 %v3487
  %4080 = vmatpush.bf16.msra.mxu0 %v3485
  %4081 = vmatpush.bf16.msra.mxu0 %v3483
  %4082 = vmatpush.bf16.msra.mxu0 %v3481
  %4083 = vmatpush.bf16.msra.mxu0 %v3479
  %4084 = vmatpush.bf16.msra.mxu0 %v3477
  %4085 = vmatpush.bf16.msra.mxu0 %v3475
  %4086 = vmatpush.bf16.msra.mxu0 %v3473
  %4087 = vmatmul.bf16.gmra.mxu0 %v2218
  %v4088 = vpop.f32.mrf.mxu0
  %v4089 = vadd.f32 %v4075, %v4088
  %v4090 = vpop.f32.mrf.mxu0
  %v4091 = vadd.f32 %v4077, %v4090
  %4092 = vdwg.mxu0
  %4093 = vmatpush.bf16.msra.mxu0 %v3503
  %4094 = vmatpush.bf16.msra.mxu0 %v3501
  %4095 = vmatpush.bf16.msra.mxu0 %v3499
  %4096 = vmatpush.bf16.msra.mxu0 %v3497
  %4097 = vmatpush.bf16.msra.mxu0 %v3495
  %4098 = vmatpush.bf16.msra.mxu0 %v3493
  %4099 = vmatpush.bf16.msra.mxu0 %v3491
  %4100 = vmatpush.bf16.msra.mxu0 %v3489
  %4101 = vmatmul.bf16.gmra.mxu0 %v2219
  %v4102 = vpop.f32.mrf.mxu0
  %v4103 = vadd.f32 %v4089, %v4102
  %v4104 = vpop.f32.mrf.mxu0
  %v4105 = vadd.f32 %v4091, %v4104
  %4106 = vdwg.mxu0
  %4107 = vmatpush.bf16.msra.mxu0 %v3519
  %4108 = vmatpush.bf16.msra.mxu0 %v3517
  %4109 = vmatpush.bf16.msra.mxu0 %v3515
  %4110 = vmatpush.bf16.msra.mxu0 %v3513
  %4111 = vmatpush.bf16.msra.mxu0 %v3511
  %4112 = vmatpush.bf16.msra.mxu0 %v3509
  %4113 = vmatpush.bf16.msra.mxu0 %v3507
  %4114 = vmatpush.bf16.msra.mxu0 %v3505
  %4115 = vmatmul.bf16.gmra.mxu0 %v2220
  %v4116 = vpop.f32.mrf.mxu0
  %v4117 = vadd.f32 %v4103, %v4116
  %v4118 = vpop.f32.mrf.mxu0
  %v4119 = vadd.f32 %v4105, %v4118
  %4120 = vdwg.mxu0
  %4121 = vmatpush.bf16.msra.mxu0 %v3216
  %4122 = vmatpush.bf16.msra.mxu0 %v3214
  %4123 = vmatpush.bf16.msra.mxu0 %v3212
  %4124 = vmatpush.bf16.msra.mxu0 %v3210
  %4125 = vmatpush.bf16.msra.mxu0 %v3208
  %4126 = vmatpush.bf16.msra.mxu0 %v3206
  %4127 = vmatpush.bf16.msra.mxu0 %v3204
  %4128 = vmatpush.bf16.msra.mxu0 %v3202
  %4129 = vmatmul.bf16.gmra.mxu0 %v2201
  %v4130 = vpop.f32.mrf.mxu0
  %v4131 = vadd.f32 %v2138, %v4130
  %v4132 = vpop.f32.mrf.mxu0
  %v4133 = vadd.f32 %v2138, %v4132
  %4134 = vdwg.mxu0
  %4135 = vmatpush.bf16.msra.mxu0 %v3232
  %4136 = vmatpush.bf16.msra.mxu0 %v3230
  %4137 = vmatpush.bf16.msra.mxu0 %v3228
  %4138 = vmatpush.bf16.msra.mxu0 %v3226
  %4139 = vmatpush.bf16.msra.mxu0 %v3224
  %4140 = vmatpush.bf16.msra.mxu0 %v3222
  %4141 = vmatpush.bf16.msra.mxu0 %v3220
  %4142 = vmatpush.bf16.msra.mxu0 %v3218
  %4143 = vmatmul.bf16.gmra.mxu0 %v2202
  %v4144 = vpop.f32.mrf.mxu0
  %v4145 = vadd.f32 %v4131, %v4144
  %v4146 = vpop.f32.mrf.mxu0
  %v4147 = vadd.f32 %v4133, %v4146
  %4148 = vdwg.mxu0
  %4149 = vmatpush.bf16.msra.mxu0 %v3248
  %4150 = vmatpush.bf16.msra.mxu0 %v3246
  %4151 = vmatpush.bf16.msra.mxu0 %v3244
  %4152 = vmatpush.bf16.msra.mxu0 %v3242
  %4153 = vmatpush.bf16.msra.mxu0 %v3240
  %4154 = vmatpush.bf16.msra.mxu0 %v3238
  %4155 = vmatpush.bf16.msra.mxu0 %v3236
  %4156 = vmatpush.bf16.msra.mxu0 %v3234
  %4157 = vmatmul.bf16.gmra.mxu0 %v2203
  %v4158 = vpop.f32.mrf.mxu0
  %v4159 = vadd.f32 %v4145, %v4158
  %v4160 = vpop.f32.mrf.mxu0
  %v4161 = vadd.f32 %v4147, %v4160
  %4162 = vdwg.mxu0
  %4163 = vmatpush.bf16.msra.mxu0 %v3264
  %4164 = vmatpush.bf16.msra.mxu0 %v3262
  %4165 = vmatpush.bf16.msra.mxu0 %v3260
  %4166 = vmatpush.bf16.msra.mxu0 %v3258
  %4167 = vmatpush.bf16.msra.mxu0 %v3256
  %4168 = vmatpush.bf16.msra.mxu0 %v3254
  %4169 = vmatpush.bf16.msra.mxu0 %v3252
  %4170 = vmatpush.bf16.msra.mxu0 %v3250
  %4171 = vmatmul.bf16.gmra.mxu0 %v2204
  %v4172 = vpop.f32.mrf.mxu0
  %v4173 = vadd.f32 %v4159, %v4172
  %v4174 = vpop.f32.mrf.mxu0
  %v4175 = vadd.f32 %v4161, %v4174
  %4176 = vdwg.mxu0
  %4177 = vmatpush.bf16.msra.mxu0 %v3280
  %4178 = vmatpush.bf16.msra.mxu0 %v3278
  %4179 = vmatpush.bf16.msra.mxu0 %v3276
  %4180 = vmatpush.bf16.msra.mxu0 %v3274
  %4181 = vmatpush.bf16.msra.mxu0 %v3272
  %4182 = vmatpush.bf16.msra.mxu0 %v3270
  %4183 = vmatpush.bf16.msra.mxu0 %v3268
  %4184 = vmatpush.bf16.msra.mxu0 %v3266
  %4185 = vmatmul.bf16.gmra.mxu0 %v2205
  %v4186 = vpop.f32.mrf.mxu0
  %v4187 = vadd.f32 %v4173, %v4186
  %v4188 = vpop.f32.mrf.mxu0
  %v4189 = vadd.f32 %v4175, %v4188
  %4190 = vdwg.mxu0
  %4191 = vmatpush.bf16.msra.mxu0 %v3296
  %4192 = vmatpush.bf16.msra.mxu0 %v3294
  %4193 = vmatpush.bf16.msra.mxu0 %v3292
  %4194 = vmatpush.bf16.msra.mxu0 %v3290
  %4195 = vmatpush.bf16.msra.mxu0 %v3288
  %4196 = vmatpush.bf16.msra.mxu0 %v3286
  %4197 = vmatpush.bf16.msra.mxu0 %v3284
  %4198 = vmatpush.bf16.msra.mxu0 %v3282
  %4199 = vmatmul.bf16.gmra.mxu0 %v2206
  %v4200 = vpop.f32.mrf.mxu0
  %v4201 = vadd.f32 %v4187, %v4200
  %v4202 = vpop.f32.mrf.mxu0
  %v4203 = vadd.f32 %v4189, %v4202
  %4204 = vdwg.mxu0
  %4205 = vmatpush.bf16.msra.mxu0 %v3312
  %4206 = vmatpush.bf16.msra.mxu0 %v3310
  %4207 = vmatpush.bf16.msra.mxu0 %v3308
  %4208 = vmatpush.bf16.msra.mxu0 %v3306
  %4209 = vmatpush.bf16.msra.mxu0 %v3304
  %4210 = vmatpush.bf16.msra.mxu0 %v3302
  %4211 = vmatpush.bf16.msra.mxu0 %v3300
  %4212 = vmatpush.bf16.msra.mxu0 %v3298
  %4213 = vmatmul.bf16.gmra.mxu0 %v2207
  %v4214 = vpop.f32.mrf.mxu0
  %v4215 = vadd.f32 %v4201, %v4214
  %v4216 = vpop.f32.mrf.mxu0
  %v4217 = vadd.f32 %v4203, %v4216
  %4218 = vdwg.mxu0
  %4219 = vmatpush.bf16.msra.mxu0 %v3328
  %4220 = vmatpush.bf16.msra.mxu0 %v3326
  %4221 = vmatpush.bf16.msra.mxu0 %v3324
  %4222 = vmatpush.bf16.msra.mxu0 %v3322
  %4223 = vmatpush.bf16.msra.mxu0 %v3320
  %4224 = vmatpush.bf16.msra.mxu0 %v3318
  %4225 = vmatpush.bf16.msra.mxu0 %v3316
  %4226 = vmatpush.bf16.msra.mxu0 %v3314
  %4227 = vmatmul.bf16.gmra.mxu0 %v2208
  %v4228 = vpop.f32.mrf.mxu0
  %v4229 = vadd.f32 %v4215, %v4228
  %v4230 = vpop.f32.mrf.mxu0
  %v4231 = vadd.f32 %v4217, %v4230
  %4232 = vdwg.mxu0
  %4233 = vmatpush.bf16.msra.mxu0 %v3344
  %4234 = vmatpush.bf16.msra.mxu0 %v3342
  %4235 = vmatpush.bf16.msra.mxu0 %v3340
  %4236 = vmatpush.bf16.msra.mxu0 %v3338
  %4237 = vmatpush.bf16.msra.mxu0 %v3336
  %4238 = vmatpush.bf16.msra.mxu0 %v3334
  %4239 = vmatpush.bf16.msra.mxu0 %v3332
  %4240 = vmatpush.bf16.msra.mxu0 %v3330
  %4241 = vmatmul.bf16.gmra.mxu0 %v2209
  %v4242 = vpop.f32.mrf.mxu0
  %v4243 = vadd.f32 %v4229, %v4242
  %v4244 = vpop.f32.mrf.mxu0
  %v4245 = vadd.f32 %v4231, %v4244
  %4246 = vdwg.mxu0
  %4247 = vmatpush.bf16.msra.mxu0 %v3360
  %4248 = vmatpush.bf16.msra.mxu0 %v3358
  %4249 = vmatpush.bf16.msra.mxu0 %v3356
  %4250 = vmatpush.bf16.msra.mxu0 %v3354
  %4251 = vmatpush.bf16.msra.mxu0 %v3352
  %4252 = vmatpush.bf16.msra.mxu0 %v3350
  %4253 = vmatpush.bf16.msra.mxu0 %v3348
  %4254 = vmatpush.bf16.msra.mxu0 %v3346
  %4255 = vmatmul.bf16.gmra.mxu0 %v2210
  %v4256 = vpop.f32.mrf.mxu0
  %v4257 = vadd.f32 %v4243, %v4256
  %v4258 = vpop.f32.mrf.mxu0
  %v4259 = vadd.f32 %v4245, %v4258
  %4260 = vdwg.mxu0
  %4261 = vmatpush.bf16.msra.mxu0 %v3376
  %4262 = vmatpush.bf16.msra.mxu0 %v3374
  %4263 = vmatpush.bf16.msra.mxu0 %v3372
  %4264 = vmatpush.bf16.msra.mxu0 %v3370
  %4265 = vmatpush.bf16.msra.mxu0 %v3368
  %4266 = vmatpush.bf16.msra.mxu0 %v3366
  %4267 = vmatpush.bf16.msra.mxu0 %v3364
  %4268 = vmatpush.bf16.msra.mxu0 %v3362
  %4269 = vmatmul.bf16.gmra.mxu0 %v2211
  %v4270 = vpop.f32.mrf.mxu0
  %v4271 = vadd.f32 %v4257, %v4270
  %v4272 = vpop.f32.mrf.mxu0
  %v4273 = vadd.f32 %v4259, %v4272
  %4274 = vdwg.mxu0
  %4275 = vmatpush.bf16.msra.mxu0 %v3392
  %4276 = vmatpush.bf16.msra.mxu0 %v3390
  %4277 = vmatpush.bf16.msra.mxu0 %v3388
  %4278 = vmatpush.bf16.msra.mxu0 %v3386
  %4279 = vmatpush.bf16.msra.mxu0 %v3384
  %4280 = vmatpush.bf16.msra.mxu0 %v3382
  %4281 = vmatpush.bf16.msra.mxu0 %v3380
  %4282 = vmatpush.bf16.msra.mxu0 %v3378
  %4283 = vmatmul.bf16.gmra.mxu0 %v2212
  %v4284 = vpop.f32.mrf.mxu0
  %v4285 = vadd.f32 %v4271, %v4284
  %v4286 = vpop.f32.mrf.mxu0
  %v4287 = vadd.f32 %v4273, %v4286
  %4288 = vdwg.mxu0
  %4289 = vmatpush.bf16.msra.mxu0 %v3408
  %4290 = vmatpush.bf16.msra.mxu0 %v3406
  %4291 = vmatpush.bf16.msra.mxu0 %v3404
  %4292 = vmatpush.bf16.msra.mxu0 %v3402
  %4293 = vmatpush.bf16.msra.mxu0 %v3400
  %4294 = vmatpush.bf16.msra.mxu0 %v3398
  %4295 = vmatpush.bf16.msra.mxu0 %v3396
  %4296 = vmatpush.bf16.msra.mxu0 %v3394
  %4297 = vmatmul.bf16.gmra.mxu0 %v2213
  %v4298 = vpop.f32.mrf.mxu0
  %v4299 = vadd.f32 %v4285, %v4298
  %v4300 = vpop.f32.mrf.mxu0
  %v4301 = vadd.f32 %v4287, %v4300
  %4302 = vdwg.mxu0
  %4303 = vmatpush.bf16.msra.mxu0 %v3424
  %4304 = vmatpush.bf16.msra.mxu0 %v3422
  %4305 = vmatpush.bf16.msra.mxu0 %v3420
  %4306 = vmatpush.bf16.msra.mxu0 %v3418
  %4307 = vmatpush.bf16.msra.mxu0 %v3416
  %4308 = vmatpush.bf16.msra.mxu0 %v3414
  %4309 = vmatpush.bf16.msra.mxu0 %v3412
  %4310 = vmatpush.bf16.msra.mxu0 %v3410
  %4311 = vmatmul.bf16.gmra.mxu0 %v2214
  %v4312 = vpop.f32.mrf.mxu0
  %v4313 = vadd.f32 %v4299, %v4312
  %v4314 = vpop.f32.mrf.mxu0
  %v4315 = vadd.f32 %v4301, %v4314
  %4316 = vdwg.mxu0
  %4317 = vmatpush.bf16.msra.mxu0 %v3440
  %4318 = vmatpush.bf16.msra.mxu0 %v3438
  %4319 = vmatpush.bf16.msra.mxu0 %v3436
  %4320 = vmatpush.bf16.msra.mxu0 %v3434
  %4321 = vmatpush.bf16.msra.mxu0 %v3432
  %4322 = vmatpush.bf16.msra.mxu0 %v3430
  %4323 = vmatpush.bf16.msra.mxu0 %v3428
  %4324 = vmatpush.bf16.msra.mxu0 %v3426
  %4325 = vmatmul.bf16.gmra.mxu0 %v2215
  %v4326 = vpop.f32.mrf.mxu0
  %v4327 = vadd.f32 %v4313, %v4326
  %v4328 = vpop.f32.mrf.mxu0
  %v4329 = vadd.f32 %v4315, %v4328
  %4330 = vdwg.mxu0
  %4331 = vmatpush.bf16.msra.mxu0 %v3456
  %4332 = vmatpush.bf16.msra.mxu0 %v3454
  %4333 = vmatpush.bf16.msra.mxu0 %v3452
  %4334 = vmatpush.bf16.msra.mxu0 %v3450
  %4335 = vmatpush.bf16.msra.mxu0 %v3448
  %4336 = vmatpush.bf16.msra.mxu0 %v3446
  %4337 = vmatpush.bf16.msra.mxu0 %v3444
  %4338 = vmatpush.bf16.msra.mxu0 %v3442
  %4339 = vmatmul.bf16.gmra.mxu0 %v2216
  %v4340 = vpop.f32.mrf.mxu0
  %v4341 = vadd.f32 %v4327, %v4340
  %v4342 = vpop.f32.mrf.mxu0
  %v4343 = vadd.f32 %v4329, %v4342
  %4344 = vdwg.mxu0
  %4345 = vmatpush.bf16.msra.mxu0 %v3472
  %4346 = vmatpush.bf16.msra.mxu0 %v3470
  %4347 = vmatpush.bf16.msra.mxu0 %v3468
  %4348 = vmatpush.bf16.msra.mxu0 %v3466
  %4349 = vmatpush.bf16.msra.mxu0 %v3464
  %4350 = vmatpush.bf16.msra.mxu0 %v3462
  %4351 = vmatpush.bf16.msra.mxu0 %v3460
  %4352 = vmatpush.bf16.msra.mxu0 %v3458
  %4353 = vmatmul.bf16.gmra.mxu0 %v2217
  %v4354 = vpop.f32.mrf.mxu0
  %v4355 = vadd.f32 %v4341, %v4354
  %v4356 = vpop.f32.mrf.mxu0
  %v4357 = vadd.f32 %v4343, %v4356
  %4358 = vdwg.mxu0
  %4359 = vmatpush.bf16.msra.mxu0 %v3488
  %4360 = vmatpush.bf16.msra.mxu0 %v3486
  %4361 = vmatpush.bf16.msra.mxu0 %v3484
  %4362 = vmatpush.bf16.msra.mxu0 %v3482
  %4363 = vmatpush.bf16.msra.mxu0 %v3480
  %4364 = vmatpush.bf16.msra.mxu0 %v3478
  %4365 = vmatpush.bf16.msra.mxu0 %v3476
  %4366 = vmatpush.bf16.msra.mxu0 %v3474
  %4367 = vmatmul.bf16.gmra.mxu0 %v2218
  %v4368 = vpop.f32.mrf.mxu0
  %v4369 = vadd.f32 %v4355, %v4368
  %v4370 = vpop.f32.mrf.mxu0
  %v4371 = vadd.f32 %v4357, %v4370
  %4372 = vdwg.mxu0
  %4373 = vmatpush.bf16.msra.mxu0 %v3504
  %4374 = vmatpush.bf16.msra.mxu0 %v3502
  %4375 = vmatpush.bf16.msra.mxu0 %v3500
  %4376 = vmatpush.bf16.msra.mxu0 %v3498
  %4377 = vmatpush.bf16.msra.mxu0 %v3496
  %4378 = vmatpush.bf16.msra.mxu0 %v3494
  %4379 = vmatpush.bf16.msra.mxu0 %v3492
  %4380 = vmatpush.bf16.msra.mxu0 %v3490
  %4381 = vmatmul.bf16.gmra.mxu0 %v2219
  %v4382 = vpop.f32.mrf.mxu0
  %v4383 = vadd.f32 %v4369, %v4382
  %v4384 = vpop.f32.mrf.mxu0
  %v4385 = vadd.f32 %v4371, %v4384
  %4386 = vdwg.mxu0
  %4387 = vmatpush.bf16.msra.mxu0 %v3520
  %4388 = vmatpush.bf16.msra.mxu0 %v3518
  %4389 = vmatpush.bf16.msra.mxu0 %v3516
  %4390 = vmatpush.bf16.msra.mxu0 %v3514
  %4391 = vmatpush.bf16.msra.mxu0 %v3512
  %4392 = vmatpush.bf16.msra.mxu0 %v3510
  %4393 = vmatpush.bf16.msra.mxu0 %v3508
  %4394 = vmatpush.bf16.msra.mxu0 %v3506
  %4395 = vmatmul.bf16.gmra.mxu0 %v2220
  %v4396 = vpop.f32.mrf.mxu0
  %v4397 = vadd.f32 %v4383, %v4396
  %v4398 = vpop.f32.mrf.mxu0
  %v4399 = vadd.f32 %v4385, %v4398
  %4400 = vdwg.mxu0
  %v4401 = vmax.f32 %v4117, 0.0
  %v4402 = vmax.f32 %v4397, 0.0
  %v4403 = vmax.f32 %v4119, 0.0
  %v4404 = vmax.f32 %v4399, 0.0
  %v4405 = vpack.c.bf16 %v4403, %v4401
  %v4406 = vpack.c.bf16 %v4404, %v4402
  %v4407 = vld [vmem:[%s4] sm:$0xf]
  %v4408 = vld [vmem:[%s4 + $0x4] sm:$0xf]
  %v4409 = vld [vmem:[%s4 + $0x8] sm:$0xf]
  %v4410 = vld [vmem:[%s4 + $0xc] sm:$0xf]
  %v4411 = vld [vmem:[%s4 + $0x10] sm:$0xf]
  %v4412 = vld [vmem:[%s4 + $0x14] sm:$0xf]
  %v4413 = vld [vmem:[%s4 + $0x18] sm:$0xf]
  %v4414 = vld [vmem:[%s4 + $0x1c] sm:$0xf]
  %v4415 = vld [vmem:[%s4 + $0x20] sm:$0xf]
  %v4416 = vld [vmem:[%s4 + $0x24] sm:$0xf]
  %v4417 = vld [vmem:[%s4 + $0x28] sm:$0xf]
  %v4418 = vld [vmem:[%s4 + $0x2c] sm:$0xf]
  %v4419 = vld [vmem:[%s4 + $0x30] sm:$0xf]
  %v4420 = vld [vmem:[%s4 + $0x34] sm:$0xf]
  %v4421 = vld [vmem:[%s4 + $0x38] sm:$0xf]
  %v4422 = vld [vmem:[%s4 + $0x3c] sm:$0xf]
  %v4423 = vld [vmem:[%s4 + $0x40] sm:$0xf]
  %v4424 = vld [vmem:[%s4 + $0x44] sm:$0xf]
  %v4425 = vld [vmem:[%s4 + $0x48] sm:$0xf]
  %v4426 = vld [vmem:[%s4 + $0x4c] sm:$0xf]
  %v4427 = vld [vmem:[%s4 + $0x50] sm:$0xf]
  %v4428 = vld [vmem:[%s4 + $0x54] sm:$0xf]
  %v4429 = vld [vmem:[%s4 + $0x58] sm:$0xf]
  %v4430 = vld [vmem:[%s4 + $0x5c] sm:$0xf]
  %v4431 = vld [vmem:[%s4 + $0x60] sm:$0xf]
  %v4432 = vld [vmem:[%s4 + $0x64] sm:$0xf]
  %v4433 = vld [vmem:[%s4 + $0x68] sm:$0xf]
  %v4434 = vld [vmem:[%s4 + $0x6c] sm:$0xf]
  %v4435 = vld [vmem:[%s4 + $0x70] sm:$0xf]
  %v4436 = vld [vmem:[%s4 + $0x74] sm:$0xf]
  %v4437 = vld [vmem:[%s4 + $0x78] sm:$0xf]
  %v4438 = vld [vmem:[%s4 + $0x7c] sm:$0xf]
  %v4439 = vld [vmem:[%s5] sm:$0x1]
  %v4441 = vperm.slane %v4439, 0
  %v4475 = vunpack.c.l.b16 %v4407
  %v4476 = vunpack.c.l.b16 %v4408
  %v4477 = vunpack.c.l.b16 %v4409
  %v4478 = vunpack.c.l.b16 %v4410
  %v4479 = vunpack.c.l.b16 %v4411
  %v4480 = vunpack.c.l.b16 %v4412
  %v4481 = vunpack.c.l.b16 %v4413
  %v4482 = vunpack.c.l.b16 %v4414
  %v4483 = vunpack.c.l.b16 %v4415
  %v4484 = vunpack.c.l.b16 %v4416
  %v4485 = vunpack.c.l.b16 %v4417
  %v4486 = vunpack.c.l.b16 %v4418
  %v4487 = vunpack.c.l.b16 %v4419
  %v4488 = vunpack.c.l.b16 %v4420
  %v4489 = vunpack.c.l.b16 %v4421
  %v4490 = vunpack.c.l.b16 %v4422
  %v4491 = vunpack.c.l.b16 %v4423
  %v4492 = vunpack.c.l.b16 %v4424
  %v4493 = vunpack.c.l.b16 %v4425
  %v4494 = vunpack.c.l.b16 %v4426
  %v4495 = vunpack.c.l.b16 %v4427
  %v4496 = vunpack.c.l.b16 %v4428
  %v4497 = vunpack.c.l.b16 %v4429
  %v4498 = vunpack.c.l.b16 %v4430
  %v4499 = vunpack.c.l.b16 %v4431
  %v4500 = vunpack.c.l.b16 %v4432
  %v4501 = vunpack.c.l.b16 %v4433
  %v4502 = vunpack.c.l.b16 %v4434
  %v4503 = vunpack.c.l.b16 %v4435
  %v4504 = vunpack.c.l.b16 %v4436
  %v4505 = vunpack.c.l.b16 %v4437
  %v4506 = vunpack.c.l.b16 %v4438
  %v4507 = vpack.c.b16 %v4476, %v4475
  %v4508 = vpack.c.b16 %v4478, %v4477
  %v4509 = vpack.c.b16 %v4480, %v4479
  %v4510 = vpack.c.b16 %v4482, %v4481
  %v4511 = vpack.c.b16 %v4484, %v4483
  %v4512 = vpack.c.b16 %v4486, %v4485
  %v4513 = vpack.c.b16 %v4488, %v4487
  %v4514 = vpack.c.b16 %v4490, %v4489
  %v4515 = vpack.c.b16 %v4492, %v4491
  %v4516 = vpack.c.b16 %v4494, %v4493
  %v4517 = vpack.c.b16 %v4496, %v4495
  %v4518 = vpack.c.b16 %v4498, %v4497
  %v4519 = vpack.c.b16 %v4500, %v4499
  %v4520 = vpack.c.b16 %v4502, %v4501
  %v4521 = vpack.c.b16 %v4504, %v4503
  %v4522 = vpack.c.b16 %v4506, %v4505
  %4539 = vmatpush.bf16.msra.mxu0 %v4514
  %4540 = vmatpush.bf16.msra.mxu0 %v4513
  %4541 = vmatpush.bf16.msra.mxu0 %v4512
  %4542 = vmatpush.bf16.msra.mxu0 %v4511
  %4543 = vmatpush.bf16.msra.mxu0 %v4510
  %4544 = vmatpush.bf16.msra.mxu0 %v4509
  %4545 = vmatpush.bf16.msra.mxu0 %v4508
  %4546 = vmatpush.bf16.msra.mxu0 %v4507
  %4547 = vmatmul.bf16.gmra.mxu0 %v4405
  %v4548 = vpop.f32.mrf.mxu0
  %v4549 = vadd.f32 %v4441, %v4548
  %v4550 = vpop.f32.mrf.mxu0
  %v4551 = vadd.f32 %v4441, %v4550
  %4552 = vdwg.mxu0
  %4553 = vmatpush.bf16.msra.mxu0 %v4522
  %4554 = vmatpush.bf16.msra.mxu0 %v4521
  %4555 = vmatpush.bf16.msra.mxu0 %v4520
  %4556 = vmatpush.bf16.msra.mxu0 %v4519
  %4557 = vmatpush.bf16.msra.mxu0 %v4518
  %4558 = vmatpush.bf16.msra.mxu0 %v4517
  %4559 = vmatpush.bf16.msra.mxu0 %v4516
  %4560 = vmatpush.bf16.msra.mxu0 %v4515
  %4561 = vmatmul.bf16.gmra.mxu0 %v4406
  %v4562 = vpop.f32.mrf.mxu0
  %v4563 = vadd.f32 %v4549, %v4562
  %v4564 = vpop.f32.mrf.mxu0
  %v4565 = vadd.f32 %v4551, %v4564
  %4566 = vdwg.mxu0
  %vm4567 = vcmask 80896
  %v4568 = vsel %vm4567, %v4563, -inf
  %4569 = vmax.xlane.f32.xlu0 %v4568
  %v4570 = vpop.xlane.xlu0 %4569
  %v4571 = vsel %vm4567, %v4565, -inf
  %4572 = vmax.xlane.f32.xlu0 %v4571
  %v4573 = vpop.xlane.xlu0 %4572
  %v4574 = vsub.f32 %v4563, %v4570
  %v4575 = vsub.f32 %v4565, %v4573
  %v4576 = vmul.f32 %v4574, 1.442695
  %v4577 = vpow.pop %v4576
  %v4578 = vmul.f32 %v4575, 1.442695
  %v4579 = vpow.pop %v4578
  %v4580 = vsel %vm4567, %v4577, 0.0
  %4581 = vadd.xlane.f32.xlu0 %v4580
  %v4582 = vpop.xlane.xlu0 %4581
  %v4583 = vsel %vm4567, %v4579, 0.0
  %4584 = vadd.xlane.f32.xlu0 %v4583
  %v4585 = vpop.xlane.xlu0 %4584
  %v4586 = vrcp.pop %v4582
  %v4587 = vrcp.pop %v4585
  %v4588 = vmul.f32 %v4577, %v4586
  %v4589 = vmul.f32 %v4579, %v4587
  %4590 = vst.msk [vmem:[%s6] sm:$0xff] %vm4567, %v4588
  %4591 = vst.msk [vmem:[%s6 + $0x8] sm:$0xff] %vm4567, %v4589
  // Predicated region
  $region26: #{cnn_forward.1} parent=0 // pred_check
    _
  $region27: #{cnn_forward.1} parent=0 // pred_check_branch
    %4593 = sbr.rel (0) target = $region29
  $region28: #{cnn_forward.1} parent=0 // pred_region
    _
  $region29: #{cnn_forward.1} parent=0 // pred_fallthru
    _
  // Predicated region
  $region30: #{cnn_forward.1} parent=0 // pred_check
    _
  $region31: #{cnn_forward.1} parent=0 // pred_check_branch
    %4595 = sbr.rel (0) target = $region33
  $region32: #{cnn_forward.1} parent=0 // pred_region
    _
  $region33: #{cnn_forward.1} parent=0 // pred_fallthru
    _

</llo_original>
